<compile_context>
chip_gen: v7x
topology: tpu7x:2x2x1
jax: 0.10.0
libtpu: 0.0.40
codegen_flags: <defaults>
</compile_context>

<pallas_src>
import functools

import jax
import jax.numpy as jnp
from jax.experimental import pallas as pl
from jax.experimental.pallas import tpu as pltpu

LANES = 128      # carried channel width between layers (lane-dense)
TM = 128         # M tile for the first (largest-M) layer
KSIZE = 4        # all convs are 4x4
BN_EPS = 1e-5
LEAKY_SLOPE = 0.2


# ----------------------------- Pallas kernels ------------------------------ #

def matmul_leaky_kernel(a_ref, b_ref, o_ref):
    """One M-tile of conv1: full-K matmul + LeakyReLU(0.2) epilogue."""
    acc = jnp.dot(a_ref[...], b_ref[...], preferred_element_type=jnp.float32)
    o_ref[...] = jnp.where(acc >= 0.0, acc, LEAKY_SLOPE * acc).astype(o_ref.dtype)


def matmul_bn_act_kernel(a_ref, b_ref, gamma_ref, beta_ref, o_ref, *, act):
    """Full conv layer in one tile: matmul + training-mode BatchNorm2d
    (batch stats over all rows = N*OH*OW, biased variance, eps=1e-5) +
    LeakyReLU(0.2) or sigmoid.  Epilogue math is f32 (v5e-safe)."""
    acc = jnp.dot(a_ref[...], b_ref[...], preferred_element_type=jnp.float32)
    mean = jnp.mean(acc, axis=0, keepdims=True)
    var = jnp.mean(jnp.square(acc - mean), axis=0, keepdims=True)
    y = (acc - mean) * jax.lax.rsqrt(var + BN_EPS) * gamma_ref[...] + beta_ref[...]
    if act == "leaky":
        y = jnp.where(y >= 0.0, y, LEAKY_SLOPE * y)
    else:  # "sigmoid"
        y = jax.nn.sigmoid(y)
    o_ref[...] = y.astype(o_ref.dtype)


# ----------------------------- Pallas wrappers ----------------------------- #

def conv_leaky(a, b, out_dtype=jnp.bfloat16):
    """[M, K] @ [K, N] with fused LeakyReLU.  Grid over M only (full K/N)."""
    M, K = a.shape
    K2, N = b.shape
    assert K == K2
    tm = TM if (M % TM == 0) else M
    return pl.pallas_call(
        matmul_leaky_kernel,
        out_shape=jax.ShapeDtypeStruct((M, N), out_dtype),
        grid=(M // tm,),
        in_specs=[pl.BlockSpec((tm, K), lambda i: (i, 0)),
                  pl.BlockSpec((K, N), lambda i: (0, 0))],
        out_specs=pl.BlockSpec((tm, N), lambda i: (i, 0)),
        compiler_params=pltpu.CompilerParams(
            dimension_semantics=("parallel",)),   # lets v7x split M over 2 TCs
    )(a, b)


def conv_bn_act(a, b, gamma, beta, act, out_dtype):
    """[M, K] @ [K, N] with fused BatchNorm (batch stats) + activation.
    Whole layer in a single tile (M <= 128 for these shapes)."""
    M, K = a.shape
    K2, N = b.shape
    assert K == K2
    kern = functools.partial(matmul_bn_act_kernel, act=act)
    return pl.pallas_call(
        kern,
        out_shape=jax.ShapeDtypeStruct((M, N), out_dtype),
        grid=(1,),
        in_specs=[pl.BlockSpec((M, K), lambda i: (0, 0)),
                  pl.BlockSpec((K, N), lambda i: (0, 0)),
                  pl.BlockSpec((1, N), lambda i: (0, 0)),
                  pl.BlockSpec((1, N), lambda i: (0, 0))],
        out_specs=pl.BlockSpec((M, N), lambda i: (0, 0)),
        compiler_params=pltpu.CompilerParams(
            dimension_semantics=("arbitrary",)),
    )(a, b, gamma.reshape(1, N), beta.reshape(1, N))


# ------------------------------- JAX glue ---------------------------------- #

def extract_patches(x_nhwc, stride, pad):
    """im2col via a single XLA op.  Feature ordering is channel-major:
    f = c*KH*KW + kh*KW + kw, matching w.reshape(OC, IC*KH*KW)."""
    patches = jax.lax.conv_general_dilated_patches(
        x_nhwc,
        filter_shape=(KSIZE, KSIZE),
        window_strides=(stride, stride),
        padding=((pad, pad), (pad, pad)),
        dimension_numbers=("NHWC", "OIHW", "NHWC"))
    n, oh, ow, kc = patches.shape
    return patches.reshape(n * oh * ow, kc), n, oh, ow


def init_params(key, conv_dim):
    """conv weights = randn * 0.001 (init_zero_weights), BN gamma=1 / beta=0.
    Weights are zero-padded to lane-dense [IC_pad*16, 128] bf16 at init
    (loop-invariant; no per-call padding)."""
    assert conv_dim * 4 <= LANES, "channel padding scheme assumes conv_dim*4 <= 128"
    ks = jax.random.split(key, 4)

    def conv_w(k, oc, ic, ic_pad):
        w = jax.random.normal(k, (oc, ic, KSIZE, KSIZE), jnp.float32) * 0.001
        w = jnp.pad(w, ((0, LANES - oc), (0, ic_pad - ic), (0, 0), (0, 0)))
        # [OC_pad, IC_pad, KH, KW] -> [IC_pad*KH*KW, OC_pad], channel-major K.
        return w.reshape(LANES, ic_pad * KSIZE * KSIZE).T.astype(jnp.bfloat16)

    gamma = jnp.ones((LANES,), jnp.float32)   # padded channels are all-zero;
    beta = jnp.zeros((LANES,), jnp.float32)   # gamma=1/beta=0 keeps them zero.

    return {
        "w1": conv_w(ks[0], conv_dim, 3, 8),          # input padded 3 -> 8 ch
        "w2": conv_w(ks[1], conv_dim * 2, conv_dim, LANES),
        "g2": gamma, "b2": beta,
        "w3": conv_w(ks[2], conv_dim * 4, conv_dim * 2, LANES),
        "g3": gamma, "b3": beta,
        "w4": conv_w(ks[3], 1, conv_dim * 4, LANES),
        "g4": gamma, "b4": beta,
    }


def dc_discriminator_forward(x_nchw, params):
    n, c, h, w = x_nchw.shape
    # NCHW -> NHWC, bf16 MXU inputs, pad image channels 3 -> 8 (K1 = 8*16 = 128).
    x = jnp.transpose(x_nchw, (0, 2, 3, 1)).astype(jnp.bfloat16)
    x = jnp.pad(x, ((0, 0), (0, 0), (0, 0), (0, 8 - c)))

    # conv1 (no BN) + leaky_relu(0.2)
    a, n, oh, ow = extract_patches(x, stride=2, pad=1)
    y = conv_leaky(a, params["w1"])                              # [M, 128] bf16
    x = y.reshape(n, oh, ow, LANES)

    # conv2 + BN + leaky_relu(0.2)
    a, n, oh, ow = extract_patches(x, stride=2, pad=1)
    y = conv_bn_act(a, params["w2"], params["g2"], params["b2"], "leaky",
                    jnp.bfloat16)
    x = y.reshape(n, oh, ow, LANES)

    # conv3 + BN + leaky_relu(0.2)
    a, n, oh, ow = extract_patches(x, stride=2, pad=1)
    y = conv_bn_act(a, params["w3"], params["g3"], params["b3"], "leaky",
                    jnp.bfloat16)
    x = y.reshape(n, oh, ow, LANES)

    # conv4 (k=4, s=1, p=0) + BN + sigmoid, then squeeze
    a, n, oh, ow = extract_patches(x, stride=1, pad=0)
    y = conv_bn_act(a, params["w4"], params["g4"], params["b4"], "sigmoid",
                    jnp.float32)
    out = y[:, :1].reshape(n, oh, ow, 1)   # keep the single real output channel
    return jnp.squeeze(out)                # [N,1,1,1] -> [N], matches torch .squeeze()


if __name__ == "__main__":
    key = jax.random.PRNGKey(0)
    conv_dim = 8
    params = init_params(key, conv_dim)

    x = jax.random.normal(jax.random.fold_in(key, 99), (2, 3, 32, 32),
                          jnp.float32)

    fwd = jax.jit(dc_discriminator_forward)
    out = jax.block_until_ready(fwd(x, params))

    assert out.shape == (2,), out.shape
    assert bool(jnp.all(jnp.isfinite(out)))
    print("KERNEL_OK")
</pallas_src>

<mosaic_0001>
module attributes {stable_mosaic.version = 11 : i64} {
  func.func @matmul_leaky_kernel(%arg0: i32, %arg1: memref<128x128xbf16, #tpu.memory_space<vmem>>, %arg2: memref<128x128xbf16, #tpu.memory_space<vmem>>, %arg3: memref<128x128xbf16, #tpu.memory_space<vmem>>) attributes {dimension_semantics = [#tpu.dimension_semantics<parallel>], iteration_bounds = array<i64: 4>, scalar_prefetch = 0 : i64, scratch_operands = 0 : i64, tpu.core_type = #tpu.core_type<tc>, window_params = [{transform_indices = @transform_0, window_bounds = array<i64: 128, 128>}, {pipeline_mode = #tpu.pipeline_mode<synchronous>, transform_indices = @transform_1, window_bounds = array<i64: 128, 128>}, {transform_indices = @transform_2, window_bounds = array<i64: 128, 128>}]} {
    %c0 = arith.constant 0 : index
    %c0_0 = arith.constant 0 : index
    %0 = vector.load %arg1[%c0, %c0_0] : memref<128x128xbf16, #tpu.memory_space<vmem>>, vector<128x128xbf16>
    %c0_1 = arith.constant 0 : index
    %c0_2 = arith.constant 0 : index
    %1 = vector.load %arg2[%c0_1, %c0_2] : memref<128x128xbf16, #tpu.memory_space<vmem>>, vector<128x128xbf16>
    %cst = arith.constant dense<0.000000e+00> : vector<128x128xf32>
    %2 = tpu.matmul %0, %1, %cst {dimension_numbers = #tpu.dot_dimension_numbers<[1], [0], [0], [1], [0, 0, 1, 1], [], []>} : vector<128x128xbf16>, vector<128x128xbf16>, vector<128x128xf32> -> vector<128x128xf32>
    %cst_3 = arith.constant 0.000000e+00 : f32
    %3 = vector.broadcast %cst_3 : f32 to vector<128x128xf32>
    %4 = arith.cmpf oge, %2, %3 : vector<128x128xf32>
    %cst_4 = arith.constant 2.000000e-01 : f32
    %5 = vector.broadcast %cst_4 : f32 to vector<128x128xf32>
    %6 = arith.mulf %5, %2 : vector<128x128xf32>
    %7 = arith.select %4, %2, %6 : vector<128x128xi1>, vector<128x128xf32>
    %8 = arith.truncf %7 : vector<128x128xf32> to vector<128x128xbf16>
    %c0_5 = arith.constant 0 : index
    %c0_6 = arith.constant 0 : index
    %9 = vector.load %arg3[%c0_5, %c0_6] : memref<128x128xbf16, #tpu.memory_space<vmem>>, vector<128x128xbf16>
    tpu.vector_store %arg3[%c0_5, %c0_6], %8 {strides = array<i32>} : memref<128x128xbf16, #tpu.memory_space<vmem>>, vector<128x128xbf16>,
    return
  }
  func.func @transform_0(%arg0: i32) -> (i32, i32) {
    %c0_i32 = arith.constant 0 : i32
    %c0_i32_0 = arith.constant 0 : i32
    return %arg0, %c0_i32 : i32, i32
  }
  func.func @transform_1(%arg0: i32) -> (i32, i32) {
    %c0_i32 = arith.constant 0 : i32
    %c0_i32_0 = arith.constant 0 : i32
    %c0_i32_1 = arith.constant 0 : i32
    return %c0_i32, %c0_i32_0 : i32, i32
  }
  func.func @transform_2(%arg0: i32) -> (i32, i32) {
    %c0_i32 = arith.constant 0 : i32
    %c0_i32_0 = arith.constant 0 : i32
    return %arg0, %c0_i32 : i32, i32
  }
}

module attributes {stable_mosaic.version = 11 : i64} {
  func.func @matmul_bn_act_kernel(%arg0: i32, %arg1: memref<128x2048xbf16, #tpu.memory_space<vmem>>, %arg2: memref<2048x128xbf16, #tpu.memory_space<vmem>>, %arg3: memref<1x128xf32, #tpu.memory_space<vmem>>, %arg4: memref<1x128xf32, #tpu.memory_space<vmem>>, %arg5: memref<128x128xbf16, #tpu.memory_space<vmem>>) attributes {dimension_semantics = [#tpu.dimension_semantics<arbitrary>], iteration_bounds = array<i64: 1>, scalar_prefetch = 0 : i64, scratch_operands = 0 : i64, tpu.core_type = #tpu.core_type<tc>, window_params = [{pipeline_mode = #tpu.pipeline_mode<synchronous>, transform_indices = @transform_0, window_bounds = array<i64: 128, 2048>}, {pipeline_mode = #tpu.pipeline_mode<synchronous>, transform_indices = @transform_1, window_bounds = array<i64: 2048, 128>}, {pipeline_mode = #tpu.pipeline_mode<synchronous>, transform_indices = @transform_2, window_bounds = array<i64: 1, 128>}, {pipeline_mode = #tpu.pipeline_mode<synchronous>, transform_indices = @transform_3, window_bounds = array<i64: 1, 128>}, {pipeline_mode = #tpu.pipeline_mode<synchronous>, transform_indices = @transform_4, window_bounds = array<i64: 128, 128>}]} {
    %c0 = arith.constant 0 : index
    %c0_0 = arith.constant 0 : index
    %0 = vector.load %arg1[%c0, %c0_0] : memref<128x2048xbf16, #tpu.memory_space<vmem>>, vector<128x2048xbf16>
    %c0_1 = arith.constant 0 : index
    %c0_2 = arith.constant 0 : index
    %1 = vector.load %arg2[%c0_1, %c0_2] : memref<2048x128xbf16, #tpu.memory_space<vmem>>, vector<2048x128xbf16>
    %cst = arith.constant dense<0.000000e+00> : vector<128x128xf32>
    %2 = tpu.matmul %0, %1, %cst {dimension_numbers = #tpu.dot_dimension_numbers<[1], [0], [0], [1], [0, 0, 1, 1], [], []>} : vector<128x2048xbf16>, vector<2048x128xbf16>, vector<128x128xf32> -> vector<128x128xf32>
    %cst_3 = arith.constant dense<0.000000e+00> : vector<128xf32>
    %3 = vector.multi_reduction <add>, %2, %cst_3 [0] : vector<128x128xf32> to vector<128xf32>
    %4 = vector.shape_cast %3 : vector<128xf32> to vector<1x128xf32>
    %cst_4 = arith.constant 1.280000e+02 : f32
    %5 = vector.broadcast %cst_4 : f32 to vector<1x128xf32>
    %6 = arith.divf %4, %5 : vector<1x128xf32>
    %7 = vector.broadcast %6 : vector<1x128xf32> to vector<128x128xf32>
    %8 = arith.subf %2, %7 : vector<128x128xf32>
    %9 = arith.mulf %8, %8 : vector<128x128xf32>
    %cst_5 = arith.constant dense<0.000000e+00> : vector<128xf32>
    %10 = vector.multi_reduction <add>, %9, %cst_5 [0] : vector<128x128xf32> to vector<128xf32>
    %11 = vector.shape_cast %10 : vector<128xf32> to vector<1x128xf32>
    %cst_6 = arith.constant 1.280000e+02 : f32
    %12 = vector.broadcast %cst_6 : f32 to vector<1x128xf32>
    %13 = arith.divf %11, %12 : vector<1x128xf32>
    %14 = vector.broadcast %6 : vector<1x128xf32> to vector<128x128xf32>
    %15 = arith.subf %2, %14 : vector<128x128xf32>
    %cst_7 = arith.constant 9.99999974E-6 : f32
    %16 = vector.broadcast %cst_7 : f32 to vector<1x128xf32>
    %17 = arith.addf %13, %16 : vector<1x128xf32>
    %18 = math.rsqrt %17 : vector<1x128xf32>
    %19 = vector.broadcast %18 : vector<1x128xf32> to vector<128x128xf32>
    %20 = arith.mulf %15, %19 : vector<128x128xf32>
    %c0_8 = arith.constant 0 : index
    %c0_9 = arith.constant 0 : index
    %21 = vector.load %arg3[%c0_8, %c0_9] : memref<1x128xf32, #tpu.memory_space<vmem>>, vector<1x128xf32>
    %22 = vector.broadcast %21 : vector<1x128xf32> to vector<128x128xf32>
    %23 = arith.mulf %20, %22 : vector<128x128xf32>
    %c0_10 = arith.constant 0 : index
    %c0_11 = arith.constant 0 : index
    %24 = vector.load %arg4[%c0_10, %c0_11] : memref<1x128xf32, #tpu.memory_space<vmem>>, vector<1x128xf32>
    %25 = vector.broadcast %24 : vector<1x128xf32> to vector<128x128xf32>
    %26 = arith.addf %23, %25 : vector<128x128xf32>
    %cst_12 = arith.constant 0.000000e+00 : f32
    %27 = vector.broadcast %cst_12 : f32 to vector<128x128xf32>
    %28 = arith.cmpf oge, %26, %27 : vector<128x128xf32>
    %cst_13 = arith.constant 2.000000e-01 : f32
    %29 = vector.broadcast %cst_13 : f32 to vector<128x128xf32>
    %30 = arith.mulf %29, %26 : vector<128x128xf32>
    %31 = arith.select %28, %26, %30 : vector<128x128xi1>, vector<128x128xf32>
    %32 = arith.truncf %31 : vector<128x128xf32> to vector<128x128xbf16>
    %c0_14 = arith.constant 0 : index
    %c0_15 = arith.constant 0 : index
    %33 = vector.load %arg5[%c0_14, %c0_15] : memref<128x128xbf16, #tpu.memory_space<vmem>>, vector<128x128xbf16>
    tpu.vector_store %arg5[%c0_14, %c0_15], %32 {strides = array<i32>} : memref<128x128xbf16, #tpu.memory_space<vmem>>, vector<128x128xbf16>,
    return
  }
  func.func @transform_0(%arg0: i32) -> (i32, i32) {
    %c0_i32 = arith.constant 0 : i32
    %c0_i32_0 = arith.constant 0 : i32
    %c0_i32_1 = arith.constant 0 : i32
    return %c0_i32, %c0_i32_0 : i32, i32
  }
  func.func @transform_1(%arg0: i32) -> (i32, i32) {
    %c0_i32 = arith.constant 0 : i32
    %c0_i32_0 = arith.constant 0 : i32
    %c0_i32_1 = arith.constant 0 : i32
    return %c0_i32, %c0_i32_0 : i32, i32
  }
  func.func @transform_2(%arg0: i32) -> (i32, i32) {
    %c0_i32 = arith.constant 0 : i32
    %c0_i32_0 = arith.constant 0 : i32
    %c0_i32_1 = arith.constant 0 : i32
    return %c0_i32, %c0_i32_0 : i32, i32
  }
  func.func @transform_3(%arg0: i32) -> (i32, i32) {
    %c0_i32 = arith.constant 0 : i32
    %c0_i32_0 = arith.constant 0 : i32
    %c0_i32_1 = arith.constant 0 : i32
    return %c0_i32, %c0_i32_0 : i32, i32
  }
  func.func @transform_4(%arg0: i32) -> (i32, i32) {
    %c0_i32 = arith.constant 0 : i32
    %c0_i32_0 = arith.constant 0 : i32
    %c0_i32_1 = arith.constant 0 : i32
    return %c0_i32, %c0_i32_0 : i32, i32
  }
}

module attributes {stable_mosaic.version = 11 : i64} {
  func.func @matmul_bn_act_kernel(%arg0: i32, %arg1: memref<32x2048xbf16, #tpu.memory_space<vmem>>, %arg2: memref<2048x128xbf16, #tpu.memory_space<vmem>>, %arg3: memref<1x128xf32, #tpu.memory_space<vmem>>, %arg4: memref<1x128xf32, #tpu.memory_space<vmem>>, %arg5: memref<32x128xbf16, #tpu.memory_space<vmem>>) attributes {dimension_semantics = [#tpu.dimension_semantics<arbitrary>], iteration_bounds = array<i64: 1>, scalar_prefetch = 0 : i64, scratch_operands = 0 : i64, tpu.core_type = #tpu.core_type<tc>, window_params = [{pipeline_mode = #tpu.pipeline_mode<synchronous>, transform_indices = @transform_0, window_bounds = array<i64: 32, 2048>}, {pipeline_mode = #tpu.pipeline_mode<synchronous>, transform_indices = @transform_1, window_bounds = array<i64: 2048, 128>}, {pipeline_mode = #tpu.pipeline_mode<synchronous>, transform_indices = @transform_2, window_bounds = array<i64: 1, 128>}, {pipeline_mode = #tpu.pipeline_mode<synchronous>, transform_indices = @transform_3, window_bounds = array<i64: 1, 128>}, {pipeline_mode = #tpu.pipeline_mode<synchronous>, transform_indices = @transform_4, window_bounds = array<i64: 32, 128>}]} {
    %c0 = arith.constant 0 : index
    %c0_0 = arith.constant 0 : index
    %0 = vector.load %arg1[%c0, %c0_0] : memref<32x2048xbf16, #tpu.memory_space<vmem>>, vector<32x2048xbf16>
    %c0_1 = arith.constant 0 : index
    %c0_2 = arith.constant 0 : index
    %1 = vector.load %arg2[%c0_1, %c0_2] : memref<2048x128xbf16, #tpu.memory_space<vmem>>, vector<2048x128xbf16>
    %cst = arith.constant dense<0.000000e+00> : vector<32x128xf32>
    %2 = tpu.matmul %0, %1, %cst {dimension_numbers = #tpu.dot_dimension_numbers<[1], [0], [0], [1], [0, 0, 1, 1], [], []>} : vector<32x2048xbf16>, vector<2048x128xbf16>, vector<32x128xf32> -> vector<32x128xf32>
    %cst_3 = arith.constant dense<0.000000e+00> : vector<128xf32>
    %3 = vector.multi_reduction <add>, %2, %cst_3 [0] : vector<32x128xf32> to vector<128xf32>
    %4 = vector.shape_cast %3 : vector<128xf32> to vector<1x128xf32>
    %cst_4 = arith.constant 3.200000e+01 : f32
    %5 = vector.broadcast %cst_4 : f32 to vector<1x128xf32>
    %6 = arith.divf %4, %5 : vector<1x128xf32>
    %7 = vector.broadcast %6 : vector<1x128xf32> to vector<32x128xf32>
    %8 = arith.subf %2, %7 : vector<32x128xf32>
    %9 = arith.mulf %8, %8 : vector<32x128xf32>
    %cst_5 = arith.constant dense<0.000000e+00> : vector<128xf32>
    %10 = vector.multi_reduction <add>, %9, %cst_5 [0] : vector<32x128xf32> to vector<128xf32>
    %11 = vector.shape_cast %10 : vector<128xf32> to vector<1x128xf32>
    %cst_6 = arith.constant 3.200000e+01 : f32
    %12 = vector.broadcast %cst_6 : f32 to vector<1x128xf32>
    %13 = arith.divf %11, %12 : vector<1x128xf32>
    %14 = vector.broadcast %6 : vector<1x128xf32> to vector<32x128xf32>
    %15 = arith.subf %2, %14 : vector<32x128xf32>
    %cst_7 = arith.constant 9.99999974E-6 : f32
    %16 = vector.broadcast %cst_7 : f32 to vector<1x128xf32>
    %17 = arith.addf %13, %16 : vector<1x128xf32>
    %18 = math.rsqrt %17 : vector<1x128xf32>
    %19 = vector.broadcast %18 : vector<1x128xf32> to vector<32x128xf32>
    %20 = arith.mulf %15, %19 : vector<32x128xf32>
    %c0_8 = arith.constant 0 : index
    %c0_9 = arith.constant 0 : index
    %21 = vector.load %arg3[%c0_8, %c0_9] : memref<1x128xf32, #tpu.memory_space<vmem>>, vector<1x128xf32>
    %22 = vector.broadcast %21 : vector<1x128xf32> to vector<32x128xf32>
    %23 = arith.mulf %20, %22 : vector<32x128xf32>
    %c0_10 = arith.constant 0 : index
    %c0_11 = arith.constant 0 : index
    %24 = vector.load %arg4[%c0_10, %c0_11] : memref<1x128xf32, #tpu.memory_space<vmem>>, vector<1x128xf32>
    %25 = vector.broadcast %24 : vector<1x128xf32> to vector<32x128xf32>
    %26 = arith.addf %23, %25 : vector<32x128xf32>
    %cst_12 = arith.constant 0.000000e+00 : f32
    %27 = vector.broadcast %cst_12 : f32 to vector<32x128xf32>
    %28 = arith.cmpf oge, %26, %27 : vector<32x128xf32>
    %cst_13 = arith.constant 2.000000e-01 : f32
    %29 = vector.broadcast %cst_13 : f32 to vector<32x128xf32>
    %30 = arith.mulf %29, %26 : vector<32x128xf32>
    %31 = arith.select %28, %26, %30 : vector<32x128xi1>, vector<32x128xf32>
    %32 = arith.truncf %31 : vector<32x128xf32> to vector<32x128xbf16>
    %c0_14 = arith.constant 0 : index
    %c0_15 = arith.constant 0 : index
    %33 = vector.load %arg5[%c0_14, %c0_15] : memref<32x128xbf16, #tpu.memory_space<vmem>>, vector<32x128xbf16>
    tpu.vector_store %arg5[%c0_14, %c0_15], %32 {strides = array<i32>} : memref<32x128xbf16, #tpu.memory_space<vmem>>, vector<32x128xbf16>,
    return
  }
  func.func @transform_0(%arg0: i32) -> (i32, i32) {
    %c0_i32 = arith.constant 0 : i32
    %c0_i32_0 = arith.constant 0 : i32
    %c0_i32_1 = arith.constant 0 : i32
    return %c0_i32, %c0_i32_0 : i32, i32
  }
  func.func @transform_1(%arg0: i32) -> (i32, i32) {
    %c0_i32 = arith.constant 0 : i32
    %c0_i32_0 = arith.constant 0 : i32
    %c0_i32_1 = arith.constant 0 : i32
    return %c0_i32, %c0_i32_0 : i32, i32
  }
  func.func @transform_2(%arg0: i32) -> (i32, i32) {
    %c0_i32 = arith.constant 0 : i32
    %c0_i32_0 = arith.constant 0 : i32
    %c0_i32_1 = arith.constant 0 : i32
    return %c0_i32, %c0_i32_0 : i32, i32
  }
  func.func @transform_3(%arg0: i32) -> (i32, i32) {
    %c0_i32 = arith.constant 0 : i32
    %c0_i32_0 = arith.constant 0 : i32
    %c0_i32_1 = arith.constant 0 : i32
    return %c0_i32, %c0_i32_0 : i32, i32
  }
  func.func @transform_4(%arg0: i32) -> (i32, i32) {
    %c0_i32 = arith.constant 0 : i32
    %c0_i32_0 = arith.constant 0 : i32
    %c0_i32_1 = arith.constant 0 : i32
    return %c0_i32, %c0_i32_0 : i32, i32
  }
}

module attributes {stable_mosaic.version = 11 : i64} {
  func.func @matmul_bn_act_kernel(%arg0: i32, %arg1: memref<2x2048xbf16, #tpu.memory_space<vmem>>, %arg2: memref<2048x128xbf16, #tpu.memory_space<vmem>>, %arg3: memref<1x128xf32, #tpu.memory_space<vmem>>, %arg4: memref<1x128xf32, #tpu.memory_space<vmem>>, %arg5: memref<2x128xf32, #tpu.memory_space<vmem>>) attributes {dimension_semantics = [#tpu.dimension_semantics<arbitrary>], iteration_bounds = array<i64: 1>, scalar_prefetch = 0 : i64, scratch_operands = 0 : i64, tpu.core_type = #tpu.core_type<tc>, window_params = [{pipeline_mode = #tpu.pipeline_mode<synchronous>, transform_indices = @transform_0, window_bounds = array<i64: 2, 2048>}, {pipeline_mode = #tpu.pipeline_mode<synchronous>, transform_indices = @transform_1, window_bounds = array<i64: 2048, 128>}, {pipeline_mode = #tpu.pipeline_mode<synchronous>, transform_indices = @transform_2, window_bounds = array<i64: 1, 128>}, {pipeline_mode = #tpu.pipeline_mode<synchronous>, transform_indices = @transform_3, window_bounds = array<i64: 1, 128>}, {pipeline_mode = #tpu.pipeline_mode<synchronous>, transform_indices = @transform_4, window_bounds = array<i64: 2, 128>}]} {
    %c0 = arith.constant 0 : index
    %c0_0 = arith.constant 0 : index
    %0 = vector.load %arg1[%c0, %c0_0] : memref<2x2048xbf16, #tpu.memory_space<vmem>>, vector<2x2048xbf16>
    %c0_1 = arith.constant 0 : index
    %c0_2 = arith.constant 0 : index
    %1 = vector.load %arg2[%c0_1, %c0_2] : memref<2048x128xbf16, #tpu.memory_space<vmem>>, vector<2048x128xbf16>
    %cst = arith.constant dense<0.000000e+00> : vector<2x128xf32>
    %2 = tpu.matmul %0, %1, %cst {dimension_numbers = #tpu.dot_dimension_numbers<[1], [0], [0], [1], [0, 0, 1, 1], [], []>} : vector<2x2048xbf16>, vector<2048x128xbf16>, vector<2x128xf32> -> vector<2x128xf32>
    %cst_3 = arith.constant dense<0.000000e+00> : vector<128xf32>
    %3 = vector.multi_reduction <add>, %2, %cst_3 [0] : vector<2x128xf32> to vector<128xf32>
    %4 = vector.shape_cast %3 : vector<128xf32> to vector<1x128xf32>
    %cst_4 = arith.constant 2.000000e+00 : f32
    %5 = vector.broadcast %cst_4 : f32 to vector<1x128xf32>
    %6 = arith.divf %4, %5 : vector<1x128xf32>
    %7 = vector.broadcast %6 : vector<1x128xf32> to vector<2x128xf32>
    %8 = arith.subf %2, %7 : vector<2x128xf32>
    %9 = arith.mulf %8, %8 : vector<2x128xf32>
    %cst_5 = arith.constant dense<0.000000e+00> : vector<128xf32>
    %10 = vector.multi_reduction <add>, %9, %cst_5 [0] : vector<2x128xf32> to vector<128xf32>
    %11 = vector.shape_cast %10 : vector<128xf32> to vector<1x128xf32>
    %cst_6 = arith.constant 2.000000e+00 : f32
    %12 = vector.broadcast %cst_6 : f32 to vector<1x128xf32>
    %13 = arith.divf %11, %12 : vector<1x128xf32>
    %14 = vector.broadcast %6 : vector<1x128xf32> to vector<2x128xf32>
    %15 = arith.subf %2, %14 : vector<2x128xf32>
    %cst_7 = arith.constant 9.99999974E-6 : f32
    %16 = vector.broadcast %cst_7 : f32 to vector<1x128xf32>
    %17 = arith.addf %13, %16 : vector<1x128xf32>
    %18 = math.rsqrt %17 : vector<1x128xf32>
    %19 = vector.broadcast %18 : vector<1x128xf32> to vector<2x128xf32>
    %20 = arith.mulf %15, %19 : vector<2x128xf32>
    %c0_8 = arith.constant 0 : index
    %c0_9 = arith.constant 0 : index
    %21 = vector.load %arg3[%c0_8, %c0_9] : memref<1x128xf32, #tpu.memory_space<vmem>>, vector<1x128xf32>
    %22 = vector.broadcast %21 : vector<1x128xf32> to vector<2x128xf32>
    %23 = arith.mulf %20, %22 : vector<2x128xf32>
    %c0_10 = arith.constant 0 : index
    %c0_11 = arith.constant 0 : index
    %24 = vector.load %arg4[%c0_10, %c0_11] : memref<1x128xf32, #tpu.memory_space<vmem>>, vector<1x128xf32>
    %25 = vector.broadcast %24 : vector<1x128xf32> to vector<2x128xf32>
    %26 = arith.addf %23, %25 : vector<2x128xf32>
    %27 = arith.negf %26 : vector<2x128xf32>
    %28 = math.exp %27 : vector<2x128xf32>
    %cst_12 = arith.constant 1.000000e+00 : f32
    %29 = vector.broadcast %cst_12 : f32 to vector<2x128xf32>
    %30 = arith.addf %29, %28 : vector<2x128xf32>
    %31 = arith.divf %29, %30 : vector<2x128xf32>
    %c0_13 = arith.constant 0 : index
    %c0_14 = arith.constant 0 : index
    %32 = vector.load %arg5[%c0_13, %c0_14] : memref<2x128xf32, #tpu.memory_space<vmem>>, vector<2x128xf32>
    tpu.vector_store %arg5[%c0_13, %c0_14], %31 {strides = array<i32>} : memref<2x128xf32, #tpu.memory_space<vmem>>, vector<2x128xf32>,
    return
  }
  func.func @transform_0(%arg0: i32) -> (i32, i32) {
    %c0_i32 = arith.constant 0 : i32
    %c0_i32_0 = arith.constant 0 : i32
    %c0_i32_1 = arith.constant 0 : i32
    return %c0_i32, %c0_i32_0 : i32, i32
  }
  func.func @transform_1(%arg0: i32) -> (i32, i32) {
    %c0_i32 = arith.constant 0 : i32
    %c0_i32_0 = arith.constant 0 : i32
    %c0_i32_1 = arith.constant 0 : i32
    return %c0_i32, %c0_i32_0 : i32, i32
  }
  func.func @transform_2(%arg0: i32) -> (i32, i32) {
    %c0_i32 = arith.constant 0 : i32
    %c0_i32_0 = arith.constant 0 : i32
    %c0_i32_1 = arith.constant 0 : i32
    return %c0_i32, %c0_i32_0 : i32, i32
  }
  func.func @transform_3(%arg0: i32) -> (i32, i32) {
    %c0_i32 = arith.constant 0 : i32
    %c0_i32_0 = arith.constant 0 : i32
    %c0_i32_1 = arith.constant 0 : i32
    return %c0_i32, %c0_i32_0 : i32, i32
  }
  func.func @transform_4(%arg0: i32) -> (i32, i32) {
    %c0_i32 = arith.constant 0 : i32
    %c0_i32_0 = arith.constant 0 : i32
    %c0_i32_1 = arith.constant 0 : i32
    return %c0_i32, %c0_i32_0 : i32, i32
  }
}

</mosaic_0001>

<llo_original>
// kernel: dc_discriminator_forward.4
$region0: #{dc_discriminator_forward.4}
  #allocation0 [shape = 'u32[]', space=smem, size = 0x4, offset = 0x4, fixed_abs, tag = 'smem constant byte address 0x4 - core index']
  #allocation1 [shape = 'u32[144,128]{1,0:T(1,128)}', space=vmem, size = 0x12000, scoped, tag = 'internal scratch']
  %s0 = inlined_call_operand.vmem [shape: bf16[512,128], index: 0, kind: input, shape index: {}]
  %s1 = inlined_call_operand.hbm [shape: bf16[128,128], index: 1, kind: input, shape index: {}]
  %s2 = inlined_call_operand.vmem [shape: bf16[512,128], index: 2, kind: output, shape index: {}]
  %s3 = sld [smem:[#allocation0]]
  $region45: #{dc_discriminator_forward.4} parent=0
    _
  %s5 = ssub.s32 1, %s3
  %s6 = scalar_select 0, %s5, %s3
  $region1: #{dc_discriminator_forward.4} parent=0
    #allocation2 [shape = 'u8[32768]{0}', space=vmem, size = 0x8000, scoped, tag = 'input window, operand 1, single buffered']
    #allocation3 [shape = 's32[2]{0}', space=sflag, size = 0x8, scoped, tag = 'scoped memory for dc_discriminator_forward.4']
    %7 = vsyncpa [#allocation3], 0
    loop: start=0, step=1, limit=6
    $region2: #{dc_discriminator_forward.4} parent=1 // loop_pre_header
      _
    $region3: #{dc_discriminator_forward.4} parent=1 // loop_header
      %s9 = sphi 0, %s13
      %p10 = scmp.ge.s32.totalorder %s9, 6
      %s19 = sphi 0, %s21
      %s22 = sphi 0, %s19
      %s23 = sphi 0, %s22
      %s39 = sphi 0, %s23
      %s43 = sphi 0, %s43
      %s45 = sphi 0, %s43
      %s46 = sphi 0, %s45
      %s60 = sphi 0, %s46
      %s66 = sphi 0, %s68
      %s69 = sphi 0, %s66
      %s70 = sphi 0, %s69
      %s86 = sphi 0, %s70
    $region4: #{dc_discriminator_forward.4} parent=1 // loop_header_branch
      %12 = sbr.rel (%p10) target = $region8
    $region5: #{dc_discriminator_forward.4} parent=1 // loop_body
      %s14 = ssub.s32 %s9, 1
      %s15 = ssub.s32 %s9, 2
      %s16 = sadd.s32 %s9, 1
      %s17 = ssub.s32 %s9, %s16
      %p18 = scmp.eq.s32.totalorder %s17, 0
      %s20 = sadd.s32 %s19, 1
      %s21 = scalar_select %p18, %s19, %s20
      %p24 = pneg %p18
      %p25 = scmp.eq.s32.totalorder %s9, 3
      %p26 = por %p24, %p25
      %p27 = scmp.ne.s32.totalorder %s19, %s22
      %p28 = scmp.eq.s32.totalorder %s9, 0
      %p29 = por %p27, %p28
      %p30 = scmp.ne.s32.totalorder %s19, %s22
      %p31 = scmp.eq.s32.totalorder %s14, 3
      %p32 = por %p30, %p31
      %p33 = scmp.ne.s32.totalorder %s22, %s23
      %p34 = scmp.eq.s32.totalorder %s14, 0
      %p35 = por %p33, %p34
      %p36 = scmp.ne.s32.totalorder %s22, %s23
      %p37 = scmp.eq.s32.totalorder %s15, 3
      %p38 = por %p36, %p37
      %p40 = scmp.ne.s32.totalorder %s23, %s39
      %p41 = scmp.eq.s32.totalorder %s15, 0
      %p42 = por %p40, %p41
      %s44 = sadd.s32 %s43, 1
      %p47 = scmp.eq.s32.totalorder %s9, 3
      %p48 = scmp.ne.s32.totalorder %s43, %s45
      %p49 = scmp.eq.s32.totalorder %s9, 0
      %p50 = por %p48, %p49
      %p51 = scmp.ne.s32.totalorder %s43, %s45
      %p52 = scmp.eq.s32.totalorder %s14, 3
      %p53 = por %p51, %p52
      %p54 = scmp.ne.s32.totalorder %s45, %s46
      %p55 = scmp.eq.s32.totalorder %s14, 0
      %p56 = por %p54, %p55
      %p57 = scmp.ne.s32.totalorder %s45, %s46
      %p58 = scmp.eq.s32.totalorder %s15, 3
      %p59 = por %p57, %p58
      %p61 = scmp.ne.s32.totalorder %s46, %s60
      %p62 = scmp.eq.s32.totalorder %s15, 0
      %p63 = por %p61, %p62
      %s64 = ssub.s32 %s9, %s16
      %p65 = scmp.eq.s32.totalorder %s64, 0
      %s67 = sadd.s32 %s66, 1
      %s68 = scalar_select %p65, %s66, %s67
      %p71 = pneg %p65
      %p72 = scmp.eq.s32.totalorder %s9, 3
      %p73 = por %p71, %p72
      %p74 = scmp.ne.s32.totalorder %s66, %s69
      %p75 = scmp.eq.s32.totalorder %s9, 0
      %p76 = por %p74, %p75
      %p77 = scmp.ne.s32.totalorder %s66, %s69
      %p78 = scmp.eq.s32.totalorder %s14, 3
      %p79 = por %p77, %p78
      %p80 = scmp.ne.s32.totalorder %s69, %s70
      %p81 = scmp.eq.s32.totalorder %s14, 0
      %p82 = por %p80, %p81
      %p83 = scmp.ne.s32.totalorder %s69, %s70
      %p84 = scmp.eq.s32.totalorder %s15, 3
      %p85 = por %p83, %p84
      %p87 = scmp.ne.s32.totalorder %s70, %s86
      %p88 = scmp.eq.s32.totalorder %s15, 0
      %p89 = por %p87, %p88
      %p90 = scmp.le.s32.totalorder 1, %s9
      %p91 = scmp.lt.s32.totalorder %s9, 5
      %p92 = pnand %p90, %p91
      %p93 = pneg %p92
      // Predicated region
      $region9: #{dc_discriminator_forward.4} parent=5 // pred_check
        _
      $region10: #{dc_discriminator_forward.4} parent=5 // pred_check_branch
        %95 = sbr.rel (%p92) target = $region12
      $region11: #{dc_discriminator_forward.4} parent=5 // pred_region
        %s96 = ssub.s32 %s9, 1
        // Predicated region
        $region13: #{dc_discriminator_forward.4} parent=11 // pred_check
          %p97 = pneg %p56
        $region14: #{dc_discriminator_forward.4} parent=11 // pred_check_branch
          %99 = sbr.rel (%p97) target = $region16
        $region15: #{dc_discriminator_forward.4} parent=11 // pred_region
          %s101 = ssub.s32 1024, 1024
          %102 = vsyncadd [#allocation3], %s101
          %s103 = sshll.u32 [#allocation2], 4
          %s104 = int_to_ptr.vmem [resolvable:$true] %s103
          %109 = dma.hbm_to_vmem [thread:$0]  %s1, 1024, %s104, [#allocation3], 64, 64, 4
        $region16: #{dc_discriminator_forward.4} parent=11 // pred_fallthru
          _
      $region12: #{dc_discriminator_forward.4} parent=5 // pred_fallthru
        _
      %p110 = scmp.lt.s32.totalorder %s9, 4
      // Predicated region
      $region17: #{dc_discriminator_forward.4} parent=5 // pred_check
        %p111 = pneg %p110
      $region18: #{dc_discriminator_forward.4} parent=5 // pred_check_branch
        %113 = sbr.rel (%p111) target = $region20
      $region19: #{dc_discriminator_forward.4} parent=5 // pred_region
        // Predicated region
        $region21: #{dc_discriminator_forward.4} parent=19 // pred_check
          %p114 = pneg %p29
        $region22: #{dc_discriminator_forward.4} parent=19 // pred_check_branch
          %116 = sbr.rel (%p114) target = $region24
        $region23: #{dc_discriminator_forward.4} parent=19 // pred_region
          %s117 = smul.u32 16, %s9
          %p118 = scmp.lt.s32.totalorder %s117, 63
          %s119 = scalar_select %p118, %s117, 63
          %s120 = smul.addr %s119, 4
          %s121 = scalar_lea.vmem %s0, %s120
          %s122 = smul.u32 16, %s9
        $region24: #{dc_discriminator_forward.4} parent=19 // pred_fallthru
          _
      $region20: #{dc_discriminator_forward.4} parent=5 // pred_fallthru
        _
      %p123 = scmp.le.s32.totalorder 1, %s9
      %p124 = scmp.lt.s32.totalorder %s9, 5
      %p125 = pnand %p123, %p124
      %p126 = pneg %p125
      // Predicated region
      $region25: #{dc_discriminator_forward.4} parent=5 // pred_check
        _
      $region26: #{dc_discriminator_forward.4} parent=5 // pred_check_branch
        %128 = sbr.rel (%p125) target = $region28
      $region27: #{dc_discriminator_forward.4} parent=5 // pred_region
        %s129 = ssub.s32 %s9, 1
        // Predicated region
        $region29: #{dc_discriminator_forward.4} parent=27 // pred_check
          %p130 = pneg %p56
        $region30: #{dc_discriminator_forward.4} parent=27 // pred_check_branch
          %132 = sbr.rel (%p130) target = $region32
        $region31: #{dc_discriminator_forward.4} parent=27 // pred_region
          %133 = dma.done [#allocation3], 1024
        $region32: #{dc_discriminator_forward.4} parent=27 // pred_fallthru
          _
        %s134 = smul.u32 16, %s14
        %p135 = scmp.lt.s32.totalorder %s134, 63
        %s136 = scalar_select %p135, %s134, 63
        %s137 = smul.addr %s136, 4
        %s138 = scalar_lea.vmem %s0, %s137
        %p139 = pneg %p35
        %p140 = pneg %p32
        %p141 = pneg %p56
        %p142 = pneg %p53
        %p143 = pneg %p82
        %p144 = pneg %p79
        %s145 = smul.u32 16, %s14
        %p146 = scmp.lt.s32.totalorder %s145, 63
        %s147 = scalar_select %p146, %s145, 63
        %s148 = smul.addr %s147, 4
        %s149 = scalar_lea.vmem %s2, %s148
        %s150 = smul.u32 16, %s14
        %p151 = scmp.lt.s32.totalorder %s150, 63
        %s152 = scalar_select %p151, %s150, 63
        %s153 = smul.addr %s152, 4
        %s154 = scalar_lea.vmem %s0, %s153
        %s155 = smul.u32 16, %s14
        %s156 = smul.u32 16, %s14
        %p157 = scmp.lt.s32.totalorder %s156, 63
        %s158 = scalar_select %p157, %s156, 63
        %s159 = smul.addr %s158, 4
        %s160 = scalar_lea.vmem %s2, %s159
        %s161 = smul.u32 16, %s14
        %v163 = vld [vmem:[%s154] sm:$0xf]
        %v164 = vld [vmem:[%s154 + $0x4] sm:$0xf]
        %v165 = vld [vmem:[%s154 + $0x8] sm:$0xf]
        %v166 = vld [vmem:[%s154 + $0xc] sm:$0xf]
        %v167 = vld [vmem:[%s154 + $0x10] sm:$0xf]
        %v168 = vld [vmem:[%s154 + $0x14] sm:$0xf]
        %v169 = vld [vmem:[%s154 + $0x18] sm:$0xf]
        %v170 = vld [vmem:[%s154 + $0x1c] sm:$0xf]
        %v171 = vld [vmem:[%s154 + $0x20] sm:$0xf]
        %v172 = vld [vmem:[%s154 + $0x24] sm:$0xf]
        %v173 = vld [vmem:[%s154 + $0x28] sm:$0xf]
        %v174 = vld [vmem:[%s154 + $0x2c] sm:$0xf]
        %v175 = vld [vmem:[%s154 + $0x30] sm:$0xf]
        %v176 = vld [vmem:[%s154 + $0x34] sm:$0xf]
        %v177 = vld [vmem:[%s154 + $0x38] sm:$0xf]
        %v178 = vld [vmem:[%s154 + $0x3c] sm:$0xf]
        %v179 = vld [vmem:[#allocation2] sm:$0xf]
        %v180 = vld [vmem:[#allocation2 + $0x4] sm:$0xf]
        %v181 = vld [vmem:[#allocation2 + $0x8] sm:$0xf]
        %v182 = vld [vmem:[#allocation2 + $0xc] sm:$0xf]
        %v183 = vld [vmem:[#allocation2 + $0x10] sm:$0xf]
        %v184 = vld [vmem:[#allocation2 + $0x14] sm:$0xf]
        %v185 = vld [vmem:[#allocation2 + $0x18] sm:$0xf]
        %v186 = vld [vmem:[#allocation2 + $0x1c] sm:$0xf]
        %v187 = vld [vmem:[#allocation2 + $0x20] sm:$0xf]
        %v188 = vld [vmem:[#allocation2 + $0x24] sm:$0xf]
        %v189 = vld [vmem:[#allocation2 + $0x28] sm:$0xf]
        %v190 = vld [vmem:[#allocation2 + $0x2c] sm:$0xf]
        %v191 = vld [vmem:[#allocation2 + $0x30] sm:$0xf]
        %v192 = vld [vmem:[#allocation2 + $0x34] sm:$0xf]
        %v193 = vld [vmem:[#allocation2 + $0x38] sm:$0xf]
        %v194 = vld [vmem:[#allocation2 + $0x3c] sm:$0xf]
        %v211 = vunpack.c.l.b16 %v163
        %v212 = vunpack.c.l.b16 %v164
        %v213 = vunpack.c.l.b16 %v165
        %v214 = vunpack.c.l.b16 %v166
        %v215 = vunpack.c.l.b16 %v167
        %v216 = vunpack.c.l.b16 %v168
        %v217 = vunpack.c.l.b16 %v169
        %v218 = vunpack.c.l.b16 %v170
        %v219 = vunpack.c.l.b16 %v171
        %v220 = vunpack.c.l.b16 %v172
        %v221 = vunpack.c.l.b16 %v173
        %v222 = vunpack.c.l.b16 %v174
        %v223 = vunpack.c.l.b16 %v175
        %v224 = vunpack.c.l.b16 %v176
        %v225 = vunpack.c.l.b16 %v177
        %v226 = vunpack.c.l.b16 %v178
        %v227 = vpack.c.b16 %v212, %v211
        %v228 = vpack.c.b16 %v214, %v213
        %v229 = vpack.c.b16 %v216, %v215
        %v230 = vpack.c.b16 %v218, %v217
        %v231 = vpack.c.b16 %v220, %v219
        %v232 = vpack.c.b16 %v222, %v221
        %v233 = vpack.c.b16 %v224, %v223
        %v234 = vpack.c.b16 %v226, %v225
        %v259 = vunpack.c.l.b16 %v179
        %v260 = vunpack.c.l.b16 %v180
        %v261 = vunpack.c.l.b16 %v181
        %v262 = vunpack.c.l.b16 %v182
        %v263 = vunpack.c.l.b16 %v183
        %v264 = vunpack.c.l.b16 %v184
        %v265 = vunpack.c.l.b16 %v185
        %v266 = vunpack.c.l.b16 %v186
        %v267 = vunpack.c.l.b16 %v187
        %v268 = vunpack.c.l.b16 %v188
        %v269 = vunpack.c.l.b16 %v189
        %v270 = vunpack.c.l.b16 %v190
        %v271 = vunpack.c.l.b16 %v191
        %v272 = vunpack.c.l.b16 %v192
        %v273 = vunpack.c.l.b16 %v193
        %v274 = vunpack.c.l.b16 %v194
        %v275 = vpack.c.b16 %v260, %v259
        %v276 = vpack.c.b16 %v262, %v261
        %v277 = vpack.c.b16 %v264, %v263
        %v278 = vpack.c.b16 %v266, %v265
        %v279 = vpack.c.b16 %v268, %v267
        %v280 = vpack.c.b16 %v270, %v269
        %v281 = vpack.c.b16 %v272, %v271
        %v282 = vpack.c.b16 %v274, %v273
        %291 = vmatprep.subr.bf16.mxu0 0
        %292 = vmatpush1.bf16.msra.mxu0 %v275
        %293 = vmatprep.subr.bf16.mxu0 0
        %294 = vmatpush1.bf16.msra.mxu0 %v276
        %295 = vmatprep.subr.bf16.mxu0 0
        %296 = vmatpush1.bf16.msra.mxu0 %v277
        %297 = vmatprep.subr.bf16.mxu0 0
        %298 = vmatpush1.bf16.msra.mxu0 %v278
        %299 = vmatprep.subr.bf16.mxu0 0
        %300 = vmatpush1.bf16.msra.mxu0 %v279
        %301 = vmatprep.subr.bf16.mxu0 0
        %302 = vmatpush1.bf16.msra.mxu0 %v280
        %303 = vmatprep.subr.bf16.mxu0 0
        %304 = vmatpush1.bf16.msra.mxu0 %v281
        %305 = vmatprep.subr.bf16.mxu0 0
        %306 = vmatpush1.bf16.msra.mxu0 %v282
        %307 = vmatprep.subr.bf16.mxu0 0
        %308 = vmatpush1.bf16.msra.mxu0 0
        %309 = vmatprep.subr.bf16.mxu0 0
        %310 = vmatpush1.bf16.msra.mxu0 0
        %311 = vmatprep.subr.bf16.mxu0 0
        %312 = vmatpush1.bf16.msra.mxu0 0
        %313 = vmatprep.subr.bf16.mxu0 0
        %314 = vmatpush1.bf16.msra.mxu0 0
        %315 = vmatprep.subr.bf16.mxu0 0
        %316 = vmatpush1.bf16.msra.mxu0 0
        %317 = vmatprep.subr.bf16.mxu0 0
        %318 = vmatpush1.bf16.msra.mxu0 0
        %319 = vmatprep.subr.bf16.mxu0 0
        %320 = vmatpush1.bf16.msra.mxu0 0
        %321 = vmatprep.subr.bf16.mxu0 0
        %322 = vmatpush1.bf16.msra.mxu0 0
        %323 = vmatprep.mubr.bf16.mxu0 0
        %324 = vmatmul.mubr.bf16.gmra.mrb[0].mxu0 %v227
        %v325 = vpop.f32.mrb[0].mxu0
        %v326 = vadd.f32 0.0, %v325
        %v327 = vpop.f32.mrb[0].mxu0
        %v328 = vpop.f32.mrb[0].mxu0
        %v329 = vadd.f32 0.0, %v328
        %v330 = vpop.f32.mrb[0].mxu0
        %331 = vmatprep.mubr.bf16.mxu0 0
        %332 = vmatmul.mubr.bf16.gmra.mrb[0].mxu0 %v228
        %v333 = vpop.f32.mrb[0].mxu0
        %v334 = vadd.f32 0.0, %v333
        %v335 = vpop.f32.mrb[0].mxu0
        %v336 = vpop.f32.mrb[0].mxu0
        %v337 = vadd.f32 0.0, %v336
        %v338 = vpop.f32.mrb[0].mxu0
        %339 = vmatprep.mubr.bf16.mxu0 0
        %340 = vmatmul.mubr.bf16.gmra.mrb[0].mxu0 %v229
        %v341 = vpop.f32.mrb[0].mxu0
        %v342 = vadd.f32 0.0, %v341
        %v343 = vpop.f32.mrb[0].mxu0
        %v344 = vpop.f32.mrb[0].mxu0
        %v345 = vadd.f32 0.0, %v344
        %v346 = vpop.f32.mrb[0].mxu0
        %347 = vmatprep.mubr.bf16.mxu0 0
        %348 = vmatmul.mubr.bf16.gmra.mrb[0].mxu0 %v230
        %v349 = vpop.f32.mrb[0].mxu0
        %v350 = vadd.f32 0.0, %v349
        %v351 = vpop.f32.mrb[0].mxu0
        %v352 = vpop.f32.mrb[0].mxu0
        %v353 = vadd.f32 0.0, %v352
        %v354 = vpop.f32.mrb[0].mxu0
        %355 = vmatprep.mubr.bf16.mxu0 0
        %356 = vmatmul.mubr.bf16.gmra.mrb[0].mxu0 %v231
        %v357 = vpop.f32.mrb[0].mxu0
        %v358 = vadd.f32 0.0, %v357
        %v359 = vpop.f32.mrb[0].mxu0
        %v360 = vpop.f32.mrb[0].mxu0
        %v361 = vadd.f32 0.0, %v360
        %v362 = vpop.f32.mrb[0].mxu0
        %363 = vmatprep.mubr.bf16.mxu0 0
        %364 = vmatmul.mubr.bf16.gmra.mrb[0].mxu0 %v232
        %v365 = vpop.f32.mrb[0].mxu0
        %v366 = vadd.f32 0.0, %v365
        %v367 = vpop.f32.mrb[0].mxu0
        %v368 = vpop.f32.mrb[0].mxu0
        %v369 = vadd.f32 0.0, %v368
        %v370 = vpop.f32.mrb[0].mxu0
        %371 = vmatprep.mubr.bf16.mxu0 0
        %372 = vmatmul.mubr.bf16.gmra.mrb[0].mxu0 %v233
        %v373 = vpop.f32.mrb[0].mxu0
        %v374 = vadd.f32 0.0, %v373
        %v375 = vpop.f32.mrb[0].mxu0
        %v376 = vpop.f32.mrb[0].mxu0
        %v377 = vadd.f32 0.0, %v376
        %v378 = vpop.f32.mrb[0].mxu0
        %379 = vmatprep.mubr.bf16.mxu0 0
        %380 = vmatmul.mubr.bf16.gmra.mrb[0].mxu0 %v234
        %v381 = vpop.f32.mrb[0].mxu0
        %v382 = vadd.f32 0.0, %v381
        %v383 = vpop.f32.mrb[0].mxu0
        %v384 = vpop.f32.mrb[0].mxu0
        %v385 = vadd.f32 0.0, %v384
        %v386 = vpop.f32.mrb[0].mxu0
        %387 = vdwg.mxu0
        %vm388 = vcmp.ge.f32.partialorder %v326, 0.0
        %vm389 = vcmp.ge.f32.partialorder %v329, 0.0
        %vm390 = vcmp.ge.f32.partialorder %v334, 0.0
        %vm391 = vcmp.ge.f32.partialorder %v337, 0.0
        %vm392 = vcmp.ge.f32.partialorder %v342, 0.0
        %vm393 = vcmp.ge.f32.partialorder %v345, 0.0
        %vm394 = vcmp.ge.f32.partialorder %v350, 0.0
        %vm395 = vcmp.ge.f32.partialorder %v353, 0.0
        %vm396 = vcmp.ge.f32.partialorder %v358, 0.0
        %vm397 = vcmp.ge.f32.partialorder %v361, 0.0
        %vm398 = vcmp.ge.f32.partialorder %v366, 0.0
        %vm399 = vcmp.ge.f32.partialorder %v369, 0.0
        %vm400 = vcmp.ge.f32.partialorder %v374, 0.0
        %vm401 = vcmp.ge.f32.partialorder %v377, 0.0
        %vm402 = vcmp.ge.f32.partialorder %v382, 0.0
        %vm403 = vcmp.ge.f32.partialorder %v385, 0.0
        %v404 = vmul.f32 %v326, 0.2
        %v405 = vmul.f32 %v329, 0.2
        %v406 = vmul.f32 %v334, 0.2
        %v407 = vmul.f32 %v337, 0.2
        %v408 = vmul.f32 %v342, 0.2
        %v409 = vmul.f32 %v345, 0.2
        %v410 = vmul.f32 %v350, 0.2
        %v411 = vmul.f32 %v353, 0.2
        %v412 = vmul.f32 %v358, 0.2
        %v413 = vmul.f32 %v361, 0.2
        %v414 = vmul.f32 %v366, 0.2
        %v415 = vmul.f32 %v369, 0.2
        %v416 = vmul.f32 %v374, 0.2
        %v417 = vmul.f32 %v377, 0.2
        %v418 = vmul.f32 %v382, 0.2
        %v419 = vmul.f32 %v385, 0.2
        %v420 = vsel %vm388, %v326, %v404
        %v421 = vsel %vm389, %v329, %v405
        %v422 = vsel %vm390, %v334, %v406
        %v423 = vsel %vm391, %v337, %v407
        %v424 = vsel %vm392, %v342, %v408
        %v425 = vsel %vm393, %v345, %v409
        %v426 = vsel %vm394, %v350, %v410
        %v427 = vsel %vm395, %v353, %v411
        %v428 = vsel %vm396, %v358, %v412
        %v429 = vsel %vm397, %v361, %v413
        %v430 = vsel %vm398, %v366, %v414
        %v431 = vsel %vm399, %v369, %v415
        %v432 = vsel %vm400, %v374, %v416
        %v433 = vsel %vm401, %v377, %v417
        %v434 = vsel %vm402, %v382, %v418
        %v435 = vsel %vm403, %v385, %v419
        %v436 = vpack.c.bf16 %v421, %v420
        %v437 = vpack.c.bf16 %v423, %v422
        %v438 = vpack.c.bf16 %v425, %v424
        %v439 = vpack.c.bf16 %v427, %v426
        %v440 = vpack.c.bf16 %v429, %v428
        %v441 = vpack.c.bf16 %v431, %v430
        %v442 = vpack.c.bf16 %v433, %v432
        %v443 = vpack.c.bf16 %v435, %v434
        %v452 = vunpack.c.l.b16 %v436
        %v453 = vunpack.c.h.b16 %v436
        %v454 = vunpack.c.l.b16 %v437
        %v455 = vunpack.c.h.b16 %v437
        %v456 = vunpack.c.l.b16 %v438
        %v457 = vunpack.c.h.b16 %v438
        %v458 = vunpack.c.l.b16 %v439
        %v459 = vunpack.c.h.b16 %v439
        %v460 = vunpack.c.l.b16 %v440
        %v461 = vunpack.c.h.b16 %v440
        %v462 = vunpack.c.l.b16 %v441
        %v463 = vunpack.c.h.b16 %v441
        %v464 = vunpack.c.l.b16 %v442
        %v465 = vunpack.c.h.b16 %v442
        %v466 = vunpack.c.l.b16 %v443
        %v467 = vunpack.c.h.b16 %v443
        %v468 = vpack.c.b16 %v452, %v452
        %v469 = vpack.c.b16 %v453, %v453
        %v470 = vpack.c.b16 %v454, %v454
        %v471 = vpack.c.b16 %v455, %v455
        %v472 = vpack.c.b16 %v456, %v456
        %v473 = vpack.c.b16 %v457, %v457
        %v474 = vpack.c.b16 %v458, %v458
        %v475 = vpack.c.b16 %v459, %v459
        %v476 = vpack.c.b16 %v460, %v460
        %v477 = vpack.c.b16 %v461, %v461
        %v478 = vpack.c.b16 %v462, %v462
        %v479 = vpack.c.b16 %v463, %v463
        %v480 = vpack.c.b16 %v464, %v464
        %v481 = vpack.c.b16 %v465, %v465
        %v482 = vpack.c.b16 %v466, %v466
        %v483 = vpack.c.b16 %v467, %v467
        %500 = vst [vmem:[%s160] sm:$0xf] %v468
        %501 = vst [vmem:[%s160 + $0x4] sm:$0xf] %v469
        %502 = vst [vmem:[%s160 + $0x8] sm:$0xf] %v470
        %503 = vst [vmem:[%s160 + $0xc] sm:$0xf] %v471
        %504 = vst [vmem:[%s160 + $0x10] sm:$0xf] %v472
        %505 = vst [vmem:[%s160 + $0x14] sm:$0xf] %v473
        %506 = vst [vmem:[%s160 + $0x18] sm:$0xf] %v474
        %507 = vst [vmem:[%s160 + $0x1c] sm:$0xf] %v475
        %508 = vst [vmem:[%s160 + $0x20] sm:$0xf] %v476
        %509 = vst [vmem:[%s160 + $0x24] sm:$0xf] %v477
        %510 = vst [vmem:[%s160 + $0x28] sm:$0xf] %v478
        %511 = vst [vmem:[%s160 + $0x2c] sm:$0xf] %v479
        %512 = vst [vmem:[%s160 + $0x30] sm:$0xf] %v480
        %513 = vst [vmem:[%s160 + $0x34] sm:$0xf] %v481
        %514 = vst [vmem:[%s160 + $0x38] sm:$0xf] %v482
        %515 = vst [vmem:[%s160 + $0x3c] sm:$0xf] %v483
        %s516 = smul.u32 16, %s14
        %p517 = scmp.lt.s32.totalorder %s516, 63
        %s518 = scalar_select %p517, %s516, 63
        %s519 = smul.addr %s518, 4
        %s520 = scalar_lea.vmem %s2, %s519
        // Predicated region
        $region33: #{dc_discriminator_forward.4} parent=27 // pred_check
          %p521 = pneg %p79
        $region34: #{dc_discriminator_forward.4} parent=27 // pred_check_branch
          %523 = sbr.rel (%p521) target = $region36
        $region35: #{dc_discriminator_forward.4} parent=27 // pred_region
          %s524 = smul.u32 16, %s14
        $region36: #{dc_discriminator_forward.4} parent=27 // pred_fallthru
          _
      $region28: #{dc_discriminator_forward.4} parent=5 // pred_fallthru
        _
      %p525 = scmp.le.s32.totalorder 2, %s9
      // Predicated region
      $region37: #{dc_discriminator_forward.4} parent=5 // pred_check
        %p526 = pneg %p525
      $region38: #{dc_discriminator_forward.4} parent=5 // pred_check_branch
        %528 = sbr.rel (%p526) target = $region40
      $region39: #{dc_discriminator_forward.4} parent=5 // pred_region
        %s529 = ssub.s32 %s9, 2
        // Predicated region
        $region41: #{dc_discriminator_forward.4} parent=39 // pred_check
          %p530 = pneg %p85
        $region42: #{dc_discriminator_forward.4} parent=39 // pred_check_branch
          %532 = sbr.rel (%p530) target = $region44
        $region43: #{dc_discriminator_forward.4} parent=39 // pred_region
          %s533 = smul.u32 16, %s15
          %p534 = scmp.lt.s32.totalorder %s533, 63
          %s535 = scalar_select %p534, %s533, 63
          %s536 = smul.addr %s535, 4
          %s537 = scalar_lea.vmem %s2, %s536
        $region44: #{dc_discriminator_forward.4} parent=39 // pred_fallthru
          _
      $region40: #{dc_discriminator_forward.4} parent=5 // pred_fallthru
        _
    $region6: #{dc_discriminator_forward.4} parent=1 // loop_footer
      %s13 = sadd.s32 1, %s9
    $region7: #{dc_discriminator_forward.4} parent=1 // loop_footer_branch
      %8 = sbr.rel target = $region3
    $region8: #{dc_discriminator_forward.4} parent=1 // loop_exit
      _
    %538 = vsyncpa [#allocation3], 1
    %s539 = scalar_lea.sflag [#allocation3], 1
    %540 = vsyncpa %s539, 1

// kernel: dc_discriminator_forward.5
$region0: #{dc_discriminator_forward.5}
  #allocation0 [shape = 'u32[]', space=smem, size = 0x4, offset = 0x4, fixed_abs, tag = 'smem constant byte address 0x4 - core index']
  #allocation1 [shape = 'u32[144,128]{1,0:T(1,128)}', space=vmem, size = 0x12000, scoped, tag = 'internal scratch']
  %s0 = inlined_call_operand.vmem [shape: bf16[128,2048], index: 0, kind: input, shape index: {}]
  %s1 = inlined_call_operand.vmem [shape: bf16[2048,128], index: 1, kind: input, shape index: {}]
  %s2 = inlined_call_operand.vmem [shape: f32[1,128], index: 2, kind: input, shape index: {}]
  %s3 = inlined_call_operand.vmem [shape: f32[1,128], index: 3, kind: input, shape index: {}]
  %s4 = inlined_call_operand.vmem [shape: bf16[128,128], index: 4, kind: output, shape index: {}]
  %s5 = sld [smem:[#allocation0]]
  $region26: #{dc_discriminator_forward.5} parent=0
    _
  %s7 = ssub.s32 1, %s5
  %s8 = scalar_select 0, %s7, %s5
  // Predicated region
  $region2: #{dc_discriminator_forward.5} parent=0 // pred_check
    _
  $region3: #{dc_discriminator_forward.5} parent=0 // pred_check_branch
    %10 = sbr.rel (0) target = $region5
  $region4: #{dc_discriminator_forward.5} parent=0 // pred_region
    _
  $region5: #{dc_discriminator_forward.5} parent=0 // pred_fallthru
    _
  // Predicated region
  $region6: #{dc_discriminator_forward.5} parent=0 // pred_check
    _
  $region7: #{dc_discriminator_forward.5} parent=0 // pred_check_branch
    %12 = sbr.rel (0) target = $region9
  $region8: #{dc_discriminator_forward.5} parent=0 // pred_region
    _
  $region9: #{dc_discriminator_forward.5} parent=0 // pred_fallthru
    _
  // Predicated region
  $region10: #{dc_discriminator_forward.5} parent=0 // pred_check
    _
  $region11: #{dc_discriminator_forward.5} parent=0 // pred_check_branch
    %14 = sbr.rel (0) target = $region13
  $region12: #{dc_discriminator_forward.5} parent=0 // pred_region
    _
  $region13: #{dc_discriminator_forward.5} parent=0 // pred_fallthru
    _
  // Predicated region
  $region14: #{dc_discriminator_forward.5} parent=0 // pred_check
    _
  $region15: #{dc_discriminator_forward.5} parent=0 // pred_check_branch
    %16 = sbr.rel (0) target = $region17
  $region16: #{dc_discriminator_forward.5} parent=0 // pred_region
    _
  $region17: #{dc_discriminator_forward.5} parent=0 // pred_fallthru
    _
  %v18 = vld [vmem:[%s0] sm:$0xff]
  %v19 = vld [vmem:[%s0 + $0x8] sm:$0xff]
  %v20 = vld [vmem:[%s0 + $0x10] sm:$0xff]
  %v21 = vld [vmem:[%s0 + $0x18] sm:$0xff]
  %v22 = vld [vmem:[%s0 + $0x20] sm:$0xff]
  %v23 = vld [vmem:[%s0 + $0x28] sm:$0xff]
  %v24 = vld [vmem:[%s0 + $0x30] sm:$0xff]
  %v25 = vld [vmem:[%s0 + $0x38] sm:$0xff]
  %v26 = vld [vmem:[%s0 + $0x40] sm:$0xff]
  %v27 = vld [vmem:[%s0 + $0x48] sm:$0xff]
  %v28 = vld [vmem:[%s0 + $0x50] sm:$0xff]
  %v29 = vld [vmem:[%s0 + $0x58] sm:$0xff]
  %v30 = vld [vmem:[%s0 + $0x60] sm:$0xff]
  %v31 = vld [vmem:[%s0 + $0x68] sm:$0xff]
  %v32 = vld [vmem:[%s0 + $0x70] sm:$0xff]
  %v33 = vld [vmem:[%s0 + $0x78] sm:$0xff]
  %v34 = vld [vmem:[%s0 + $0x80] sm:$0xff]
  %v35 = vld [vmem:[%s0 + $0x88] sm:$0xff]
  %v36 = vld [vmem:[%s0 + $0x90] sm:$0xff]
  %v37 = vld [vmem:[%s0 + $0x98] sm:$0xff]
  %v38 = vld [vmem:[%s0 + $0xa0] sm:$0xff]
  %v39 = vld [vmem:[%s0 + $0xa8] sm:$0xff]
  %v40 = vld [vmem:[%s0 + $0xb0] sm:$0xff]
  %v41 = vld [vmem:[%s0 + $0xb8] sm:$0xff]
  %v42 = vld [vmem:[%s0 + $0xc0] sm:$0xff]
  %v43 = vld [vmem:[%s0 + $0xc8] sm:$0xff]
  %v44 = vld [vmem:[%s0 + $0xd0] sm:$0xff]
  %v45 = vld [vmem:[%s0 + $0xd8] sm:$0xff]
  %v46 = vld [vmem:[%s0 + $0xe0] sm:$0xff]
  %v47 = vld [vmem:[%s0 + $0xe8] sm:$0xff]
  %v48 = vld [vmem:[%s0 + $0xf0] sm:$0xff]
  %v49 = vld [vmem:[%s0 + $0xf8] sm:$0xff]
  %v50 = vld [vmem:[%s0 + $0x100] sm:$0xff]
  %v51 = vld [vmem:[%s0 + $0x108] sm:$0xff]
  %v52 = vld [vmem:[%s0 + $0x110] sm:$0xff]
  %v53 = vld [vmem:[%s0 + $0x118] sm:$0xff]
  %v54 = vld [vmem:[%s0 + $0x120] sm:$0xff]
  %v55 = vld [vmem:[%s0 + $0x128] sm:$0xff]
  %v56 = vld [vmem:[%s0 + $0x130] sm:$0xff]
  %v57 = vld [vmem:[%s0 + $0x138] sm:$0xff]
  %v58 = vld [vmem:[%s0 + $0x140] sm:$0xff]
  %v59 = vld [vmem:[%s0 + $0x148] sm:$0xff]
  %v60 = vld [vmem:[%s0 + $0x150] sm:$0xff]
  %v61 = vld [vmem:[%s0 + $0x158] sm:$0xff]
  %v62 = vld [vmem:[%s0 + $0x160] sm:$0xff]
  %v63 = vld [vmem:[%s0 + $0x168] sm:$0xff]
  %v64 = vld [vmem:[%s0 + $0x170] sm:$0xff]
  %v65 = vld [vmem:[%s0 + $0x178] sm:$0xff]
  %v66 = vld [vmem:[%s0 + $0x180] sm:$0xff]
  %v67 = vld [vmem:[%s0 + $0x188] sm:$0xff]
  %v68 = vld [vmem:[%s0 + $0x190] sm:$0xff]
  %v69 = vld [vmem:[%s0 + $0x198] sm:$0xff]
  %v70 = vld [vmem:[%s0 + $0x1a0] sm:$0xff]
  %v71 = vld [vmem:[%s0 + $0x1a8] sm:$0xff]
  %v72 = vld [vmem:[%s0 + $0x1b0] sm:$0xff]
  %v73 = vld [vmem:[%s0 + $0x1b8] sm:$0xff]
  %v74 = vld [vmem:[%s0 + $0x1c0] sm:$0xff]
  %v75 = vld [vmem:[%s0 + $0x1c8] sm:$0xff]
  %v76 = vld [vmem:[%s0 + $0x1d0] sm:$0xff]
  %v77 = vld [vmem:[%s0 + $0x1d8] sm:$0xff]
  %v78 = vld [vmem:[%s0 + $0x1e0] sm:$0xff]
  %v79 = vld [vmem:[%s0 + $0x1e8] sm:$0xff]
  %v80 = vld [vmem:[%s0 + $0x1f0] sm:$0xff]
  %v81 = vld [vmem:[%s0 + $0x1f8] sm:$0xff]
  %v82 = vld [vmem:[%s0 + $0x200] sm:$0xff]
  %v83 = vld [vmem:[%s0 + $0x208] sm:$0xff]
  %v84 = vld [vmem:[%s0 + $0x210] sm:$0xff]
  %v85 = vld [vmem:[%s0 + $0x218] sm:$0xff]
  %v86 = vld [vmem:[%s0 + $0x220] sm:$0xff]
  %v87 = vld [vmem:[%s0 + $0x228] sm:$0xff]
  %v88 = vld [vmem:[%s0 + $0x230] sm:$0xff]
  %v89 = vld [vmem:[%s0 + $0x238] sm:$0xff]
  %v90 = vld [vmem:[%s0 + $0x240] sm:$0xff]
  %v91 = vld [vmem:[%s0 + $0x248] sm:$0xff]
  %v92 = vld [vmem:[%s0 + $0x250] sm:$0xff]
  %v93 = vld [vmem:[%s0 + $0x258] sm:$0xff]
  %v94 = vld [vmem:[%s0 + $0x260] sm:$0xff]
  %v95 = vld [vmem:[%s0 + $0x268] sm:$0xff]
  %v96 = vld [vmem:[%s0 + $0x270] sm:$0xff]
  %v97 = vld [vmem:[%s0 + $0x278] sm:$0xff]
  %v98 = vld [vmem:[%s0 + $0x280] sm:$0xff]
  %v99 = vld [vmem:[%s0 + $0x288] sm:$0xff]
  %v100 = vld [vmem:[%s0 + $0x290] sm:$0xff]
  %v101 = vld [vmem:[%s0 + $0x298] sm:$0xff]
  %v102 = vld [vmem:[%s0 + $0x2a0] sm:$0xff]
  %v103 = vld [vmem:[%s0 + $0x2a8] sm:$0xff]
  %v104 = vld [vmem:[%s0 + $0x2b0] sm:$0xff]
  %v105 = vld [vmem:[%s0 + $0x2b8] sm:$0xff]
  %v106 = vld [vmem:[%s0 + $0x2c0] sm:$0xff]
  %v107 = vld [vmem:[%s0 + $0x2c8] sm:$0xff]
  %v108 = vld [vmem:[%s0 + $0x2d0] sm:$0xff]
  %v109 = vld [vmem:[%s0 + $0x2d8] sm:$0xff]
  %v110 = vld [vmem:[%s0 + $0x2e0] sm:$0xff]
  %v111 = vld [vmem:[%s0 + $0x2e8] sm:$0xff]
  %v112 = vld [vmem:[%s0 + $0x2f0] sm:$0xff]
  %v113 = vld [vmem:[%s0 + $0x2f8] sm:$0xff]
  %v114 = vld [vmem:[%s0 + $0x300] sm:$0xff]
  %v115 = vld [vmem:[%s0 + $0x308] sm:$0xff]
  %v116 = vld [vmem:[%s0 + $0x310] sm:$0xff]
  %v117 = vld [vmem:[%s0 + $0x318] sm:$0xff]
  %v118 = vld [vmem:[%s0 + $0x320] sm:$0xff]
  %v119 = vld [vmem:[%s0 + $0x328] sm:$0xff]
  %v120 = vld [vmem:[%s0 + $0x330] sm:$0xff]
  %v121 = vld [vmem:[%s0 + $0x338] sm:$0xff]
  %v122 = vld [vmem:[%s0 + $0x340] sm:$0xff]
  %v123 = vld [vmem:[%s0 + $0x348] sm:$0xff]
  %v124 = vld [vmem:[%s0 + $0x350] sm:$0xff]
  %v125 = vld [vmem:[%s0 + $0x358] sm:$0xff]
  %v126 = vld [vmem:[%s0 + $0x360] sm:$0xff]
  %v127 = vld [vmem:[%s0 + $0x368] sm:$0xff]
  %v128 = vld [vmem:[%s0 + $0x370] sm:$0xff]
  %v129 = vld [vmem:[%s0 + $0x378] sm:$0xff]
  %v130 = vld [vmem:[%s0 + $0x380] sm:$0xff]
  %v131 = vld [vmem:[%s0 + $0x388] sm:$0xff]
  %v132 = vld [vmem:[%s0 + $0x390] sm:$0xff]
  %v133 = vld [vmem:[%s0 + $0x398] sm:$0xff]
  %v134 = vld [vmem:[%s0 + $0x3a0] sm:$0xff]
  %v135 = vld [vmem:[%s0 + $0x3a8] sm:$0xff]
  %v136 = vld [vmem:[%s0 + $0x3b0] sm:$0xff]
  %v137 = vld [vmem:[%s0 + $0x3b8] sm:$0xff]
  %v138 = vld [vmem:[%s0 + $0x3c0] sm:$0xff]
  %v139 = vld [vmem:[%s0 + $0x3c8] sm:$0xff]
  %v140 = vld [vmem:[%s0 + $0x3d0] sm:$0xff]
  %v141 = vld [vmem:[%s0 + $0x3d8] sm:$0xff]
  %v142 = vld [vmem:[%s0 + $0x3e0] sm:$0xff]
  %v143 = vld [vmem:[%s0 + $0x3e8] sm:$0xff]
  %v144 = vld [vmem:[%s0 + $0x3f0] sm:$0xff]
  %v145 = vld [vmem:[%s0 + $0x3f8] sm:$0xff]
  %v146 = vld [vmem:[%s1] sm:$0xf]
  %v147 = vld [vmem:[%s1 + $0x4] sm:$0xf]
  %v148 = vld [vmem:[%s1 + $0x8] sm:$0xf]
  %v149 = vld [vmem:[%s1 + $0xc] sm:$0xf]
  %v150 = vld [vmem:[%s1 + $0x10] sm:$0xf]
  %v151 = vld [vmem:[%s1 + $0x14] sm:$0xf]
  %v152 = vld [vmem:[%s1 + $0x18] sm:$0xf]
  %v153 = vld [vmem:[%s1 + $0x1c] sm:$0xf]
  %v154 = vld [vmem:[%s1 + $0x20] sm:$0xf]
  %v155 = vld [vmem:[%s1 + $0x24] sm:$0xf]
  %v156 = vld [vmem:[%s1 + $0x28] sm:$0xf]
  %v157 = vld [vmem:[%s1 + $0x2c] sm:$0xf]
  %v158 = vld [vmem:[%s1 + $0x30] sm:$0xf]
  %v159 = vld [vmem:[%s1 + $0x34] sm:$0xf]
  %v160 = vld [vmem:[%s1 + $0x38] sm:$0xf]
  %v161 = vld [vmem:[%s1 + $0x3c] sm:$0xf]
  %v162 = vld [vmem:[%s1 + $0x40] sm:$0xf]
  %v163 = vld [vmem:[%s1 + $0x44] sm:$0xf]
  %v164 = vld [vmem:[%s1 + $0x48] sm:$0xf]
  %v165 = vld [vmem:[%s1 + $0x4c] sm:$0xf]
  %v166 = vld [vmem:[%s1 + $0x50] sm:$0xf]
  %v167 = vld [vmem:[%s1 + $0x54] sm:$0xf]
  %v168 = vld [vmem:[%s1 + $0x58] sm:$0xf]
  %v169 = vld [vmem:[%s1 + $0x5c] sm:$0xf]
  %v170 = vld [vmem:[%s1 + $0x60] sm:$0xf]
  %v171 = vld [vmem:[%s1 + $0x64] sm:$0xf]
  %v172 = vld [vmem:[%s1 + $0x68] sm:$0xf]
  %v173 = vld [vmem:[%s1 + $0x6c] sm:$0xf]
  %v174 = vld [vmem:[%s1 + $0x70] sm:$0xf]
  %v175 = vld [vmem:[%s1 + $0x74] sm:$0xf]
  %v176 = vld [vmem:[%s1 + $0x78] sm:$0xf]
  %v177 = vld [vmem:[%s1 + $0x7c] sm:$0xf]
  %v178 = vld [vmem:[%s1 + $0x80] sm:$0xf]
  %v179 = vld [vmem:[%s1 + $0x84] sm:$0xf]
  %v180 = vld [vmem:[%s1 + $0x88] sm:$0xf]
  %v181 = vld [vmem:[%s1 + $0x8c] sm:$0xf]
  %v182 = vld [vmem:[%s1 + $0x90] sm:$0xf]
  %v183 = vld [vmem:[%s1 + $0x94] sm:$0xf]
  %v184 = vld [vmem:[%s1 + $0x98] sm:$0xf]
  %v185 = vld [vmem:[%s1 + $0x9c] sm:$0xf]
  %v186 = vld [vmem:[%s1 + $0xa0] sm:$0xf]
  %v187 = vld [vmem:[%s1 + $0xa4] sm:$0xf]
  %v188 = vld [vmem:[%s1 + $0xa8] sm:$0xf]
  %v189 = vld [vmem:[%s1 + $0xac] sm:$0xf]
  %v190 = vld [vmem:[%s1 + $0xb0] sm:$0xf]
  %v191 = vld [vmem:[%s1 + $0xb4] sm:$0xf]
  %v192 = vld [vmem:[%s1 + $0xb8] sm:$0xf]
  %v193 = vld [vmem:[%s1 + $0xbc] sm:$0xf]
  %v194 = vld [vmem:[%s1 + $0xc0] sm:$0xf]
  %v195 = vld [vmem:[%s1 + $0xc4] sm:$0xf]
  %v196 = vld [vmem:[%s1 + $0xc8] sm:$0xf]
  %v197 = vld [vmem:[%s1 + $0xcc] sm:$0xf]
  %v198 = vld [vmem:[%s1 + $0xd0] sm:$0xf]
  %v199 = vld [vmem:[%s1 + $0xd4] sm:$0xf]
  %v200 = vld [vmem:[%s1 + $0xd8] sm:$0xf]
  %v201 = vld [vmem:[%s1 + $0xdc] sm:$0xf]
  %v202 = vld [vmem:[%s1 + $0xe0] sm:$0xf]
  %v203 = vld [vmem:[%s1 + $0xe4] sm:$0xf]
  %v204 = vld [vmem:[%s1 + $0xe8] sm:$0xf]
  %v205 = vld [vmem:[%s1 + $0xec] sm:$0xf]
  %v206 = vld [vmem:[%s1 + $0xf0] sm:$0xf]
  %v207 = vld [vmem:[%s1 + $0xf4] sm:$0xf]
  %v208 = vld [vmem:[%s1 + $0xf8] sm:$0xf]
  %v209 = vld [vmem:[%s1 + $0xfc] sm:$0xf]
  %v210 = vld [vmem:[%s1 + $0x100] sm:$0xf]
  %v211 = vld [vmem:[%s1 + $0x104] sm:$0xf]
  %v212 = vld [vmem:[%s1 + $0x108] sm:$0xf]
  %v213 = vld [vmem:[%s1 + $0x10c] sm:$0xf]
  %v214 = vld [vmem:[%s1 + $0x110] sm:$0xf]
  %v215 = vld [vmem:[%s1 + $0x114] sm:$0xf]
  %v216 = vld [vmem:[%s1 + $0x118] sm:$0xf]
  %v217 = vld [vmem:[%s1 + $0x11c] sm:$0xf]
  %v218 = vld [vmem:[%s1 + $0x120] sm:$0xf]
  %v219 = vld [vmem:[%s1 + $0x124] sm:$0xf]
  %v220 = vld [vmem:[%s1 + $0x128] sm:$0xf]
  %v221 = vld [vmem:[%s1 + $0x12c] sm:$0xf]
  %v222 = vld [vmem:[%s1 + $0x130] sm:$0xf]
  %v223 = vld [vmem:[%s1 + $0x134] sm:$0xf]
  %v224 = vld [vmem:[%s1 + $0x138] sm:$0xf]
  %v225 = vld [vmem:[%s1 + $0x13c] sm:$0xf]
  %v226 = vld [vmem:[%s1 + $0x140] sm:$0xf]
  %v227 = vld [vmem:[%s1 + $0x144] sm:$0xf]
  %v228 = vld [vmem:[%s1 + $0x148] sm:$0xf]
  %v229 = vld [vmem:[%s1 + $0x14c] sm:$0xf]
  %v230 = vld [vmem:[%s1 + $0x150] sm:$0xf]
  %v231 = vld [vmem:[%s1 + $0x154] sm:$0xf]
  %v232 = vld [vmem:[%s1 + $0x158] sm:$0xf]
  %v233 = vld [vmem:[%s1 + $0x15c] sm:$0xf]
  %v234 = vld [vmem:[%s1 + $0x160] sm:$0xf]
  %v235 = vld [vmem:[%s1 + $0x164] sm:$0xf]
  %v236 = vld [vmem:[%s1 + $0x168] sm:$0xf]
  %v237 = vld [vmem:[%s1 + $0x16c] sm:$0xf]
  %v238 = vld [vmem:[%s1 + $0x170] sm:$0xf]
  %v239 = vld [vmem:[%s1 + $0x174] sm:$0xf]
  %v240 = vld [vmem:[%s1 + $0x178] sm:$0xf]
  %v241 = vld [vmem:[%s1 + $0x17c] sm:$0xf]
  %v242 = vld [vmem:[%s1 + $0x180] sm:$0xf]
  %v243 = vld [vmem:[%s1 + $0x184] sm:$0xf]
  %v244 = vld [vmem:[%s1 + $0x188] sm:$0xf]
  %v245 = vld [vmem:[%s1 + $0x18c] sm:$0xf]
  %v246 = vld [vmem:[%s1 + $0x190] sm:$0xf]
  %v247 = vld [vmem:[%s1 + $0x194] sm:$0xf]
  %v248 = vld [vmem:[%s1 + $0x198] sm:$0xf]
  %v249 = vld [vmem:[%s1 + $0x19c] sm:$0xf]
  %v250 = vld [vmem:[%s1 + $0x1a0] sm:$0xf]
  %v251 = vld [vmem:[%s1 + $0x1a4] sm:$0xf]
  %v252 = vld [vmem:[%s1 + $0x1a8] sm:$0xf]
  %v253 = vld [vmem:[%s1 + $0x1ac] sm:$0xf]
  %v254 = vld [vmem:[%s1 + $0x1b0] sm:$0xf]
  %v255 = vld [vmem:[%s1 + $0x1b4] sm:$0xf]
  %v256 = vld [vmem:[%s1 + $0x1b8] sm:$0xf]
  %v257 = vld [vmem:[%s1 + $0x1bc] sm:$0xf]
  %v258 = vld [vmem:[%s1 + $0x1c0] sm:$0xf]
  %v259 = vld [vmem:[%s1 + $0x1c4] sm:$0xf]
  %v260 = vld [vmem:[%s1 + $0x1c8] sm:$0xf]
  %v261 = vld [vmem:[%s1 + $0x1cc] sm:$0xf]
  %v262 = vld [vmem:[%s1 + $0x1d0] sm:$0xf]
  %v263 = vld [vmem:[%s1 + $0x1d4] sm:$0xf]
  %v264 = vld [vmem:[%s1 + $0x1d8] sm:$0xf]
  %v265 = vld [vmem:[%s1 + $0x1dc] sm:$0xf]
  %v266 = vld [vmem:[%s1 + $0x1e0] sm:$0xf]
  %v267 = vld [vmem:[%s1 + $0x1e4] sm:$0xf]
  %v268 = vld [vmem:[%s1 + $0x1e8] sm:$0xf]
  %v269 = vld [vmem:[%s1 + $0x1ec] sm:$0xf]
  %v270 = vld [vmem:[%s1 + $0x1f0] sm:$0xf]
  %v271 = vld [vmem:[%s1 + $0x1f4] sm:$0xf]
  %v272 = vld [vmem:[%s1 + $0x1f8] sm:$0xf]
  %v273 = vld [vmem:[%s1 + $0x1fc] sm:$0xf]
  %v274 = vld [vmem:[%s1 + $0x200] sm:$0xf]
  %v275 = vld [vmem:[%s1 + $0x204] sm:$0xf]
  %v276 = vld [vmem:[%s1 + $0x208] sm:$0xf]
  %v277 = vld [vmem:[%s1 + $0x20c] sm:$0xf]
  %v278 = vld [vmem:[%s1 + $0x210] sm:$0xf]
  %v279 = vld [vmem:[%s1 + $0x214] sm:$0xf]
  %v280 = vld [vmem:[%s1 + $0x218] sm:$0xf]
  %v281 = vld [vmem:[%s1 + $0x21c] sm:$0xf]
  %v282 = vld [vmem:[%s1 + $0x220] sm:$0xf]
  %v283 = vld [vmem:[%s1 + $0x224] sm:$0xf]
  %v284 = vld [vmem:[%s1 + $0x228] sm:$0xf]
  %v285 = vld [vmem:[%s1 + $0x22c] sm:$0xf]
  %v286 = vld [vmem:[%s1 + $0x230] sm:$0xf]
  %v287 = vld [vmem:[%s1 + $0x234] sm:$0xf]
  %v288 = vld [vmem:[%s1 + $0x238] sm:$0xf]
  %v289 = vld [vmem:[%s1 + $0x23c] sm:$0xf]
  %v290 = vld [vmem:[%s1 + $0x240] sm:$0xf]
  %v291 = vld [vmem:[%s1 + $0x244] sm:$0xf]
  %v292 = vld [vmem:[%s1 + $0x248] sm:$0xf]
  %v293 = vld [vmem:[%s1 + $0x24c] sm:$0xf]
  %v294 = vld [vmem:[%s1 + $0x250] sm:$0xf]
  %v295 = vld [vmem:[%s1 + $0x254] sm:$0xf]
  %v296 = vld [vmem:[%s1 + $0x258] sm:$0xf]
  %v297 = vld [vmem:[%s1 + $0x25c] sm:$0xf]
  %v298 = vld [vmem:[%s1 + $0x260] sm:$0xf]
  %v299 = vld [vmem:[%s1 + $0x264] sm:$0xf]
  %v300 = vld [vmem:[%s1 + $0x268] sm:$0xf]
  %v301 = vld [vmem:[%s1 + $0x26c] sm:$0xf]
  %v302 = vld [vmem:[%s1 + $0x270] sm:$0xf]
  %v303 = vld [vmem:[%s1 + $0x274] sm:$0xf]
  %v304 = vld [vmem:[%s1 + $0x278] sm:$0xf]
  %v305 = vld [vmem:[%s1 + $0x27c] sm:$0xf]
  %v306 = vld [vmem:[%s1 + $0x280] sm:$0xf]
  %v307 = vld [vmem:[%s1 + $0x284] sm:$0xf]
  %v308 = vld [vmem:[%s1 + $0x288] sm:$0xf]
  %v309 = vld [vmem:[%s1 + $0x28c] sm:$0xf]
  %v310 = vld [vmem:[%s1 + $0x290] sm:$0xf]
  %v311 = vld [vmem:[%s1 + $0x294] sm:$0xf]
  %v312 = vld [vmem:[%s1 + $0x298] sm:$0xf]
  %v313 = vld [vmem:[%s1 + $0x29c] sm:$0xf]
  %v314 = vld [vmem:[%s1 + $0x2a0] sm:$0xf]
  %v315 = vld [vmem:[%s1 + $0x2a4] sm:$0xf]
  %v316 = vld [vmem:[%s1 + $0x2a8] sm:$0xf]
  %v317 = vld [vmem:[%s1 + $0x2ac] sm:$0xf]
  %v318 = vld [vmem:[%s1 + $0x2b0] sm:$0xf]
  %v319 = vld [vmem:[%s1 + $0x2b4] sm:$0xf]
  %v320 = vld [vmem:[%s1 + $0x2b8] sm:$0xf]
  %v321 = vld [vmem:[%s1 + $0x2bc] sm:$0xf]
  %v322 = vld [vmem:[%s1 + $0x2c0] sm:$0xf]
  %v323 = vld [vmem:[%s1 + $0x2c4] sm:$0xf]
  %v324 = vld [vmem:[%s1 + $0x2c8] sm:$0xf]
  %v325 = vld [vmem:[%s1 + $0x2cc] sm:$0xf]
  %v326 = vld [vmem:[%s1 + $0x2d0] sm:$0xf]
  %v327 = vld [vmem:[%s1 + $0x2d4] sm:$0xf]
  %v328 = vld [vmem:[%s1 + $0x2d8] sm:$0xf]
  %v329 = vld [vmem:[%s1 + $0x2dc] sm:$0xf]
  %v330 = vld [vmem:[%s1 + $0x2e0] sm:$0xf]
  %v331 = vld [vmem:[%s1 + $0x2e4] sm:$0xf]
  %v332 = vld [vmem:[%s1 + $0x2e8] sm:$0xf]
  %v333 = vld [vmem:[%s1 + $0x2ec] sm:$0xf]
  %v334 = vld [vmem:[%s1 + $0x2f0] sm:$0xf]
  %v335 = vld [vmem:[%s1 + $0x2f4] sm:$0xf]
  %v336 = vld [vmem:[%s1 + $0x2f8] sm:$0xf]
  %v337 = vld [vmem:[%s1 + $0x2fc] sm:$0xf]
  %v338 = vld [vmem:[%s1 + $0x300] sm:$0xf]
  %v339 = vld [vmem:[%s1 + $0x304] sm:$0xf]
  %v340 = vld [vmem:[%s1 + $0x308] sm:$0xf]
  %v341 = vld [vmem:[%s1 + $0x30c] sm:$0xf]
  %v342 = vld [vmem:[%s1 + $0x310] sm:$0xf]
  %v343 = vld [vmem:[%s1 + $0x314] sm:$0xf]
  %v344 = vld [vmem:[%s1 + $0x318] sm:$0xf]
  %v345 = vld [vmem:[%s1 + $0x31c] sm:$0xf]
  %v346 = vld [vmem:[%s1 + $0x320] sm:$0xf]
  %v347 = vld [vmem:[%s1 + $0x324] sm:$0xf]
  %v348 = vld [vmem:[%s1 + $0x328] sm:$0xf]
  %v349 = vld [vmem:[%s1 + $0x32c] sm:$0xf]
  %v350 = vld [vmem:[%s1 + $0x330] sm:$0xf]
  %v351 = vld [vmem:[%s1 + $0x334] sm:$0xf]
  %v352 = vld [vmem:[%s1 + $0x338] sm:$0xf]
  %v353 = vld [vmem:[%s1 + $0x33c] sm:$0xf]
  %v354 = vld [vmem:[%s1 + $0x340] sm:$0xf]
  %v355 = vld [vmem:[%s1 + $0x344] sm:$0xf]
  %v356 = vld [vmem:[%s1 + $0x348] sm:$0xf]
  %v357 = vld [vmem:[%s1 + $0x34c] sm:$0xf]
  %v358 = vld [vmem:[%s1 + $0x350] sm:$0xf]
  %v359 = vld [vmem:[%s1 + $0x354] sm:$0xf]
  %v360 = vld [vmem:[%s1 + $0x358] sm:$0xf]
  %v361 = vld [vmem:[%s1 + $0x35c] sm:$0xf]
  %v362 = vld [vmem:[%s1 + $0x360] sm:$0xf]
  %v363 = vld [vmem:[%s1 + $0x364] sm:$0xf]
  %v364 = vld [vmem:[%s1 + $0x368] sm:$0xf]
  %v365 = vld [vmem:[%s1 + $0x36c] sm:$0xf]
  %v366 = vld [vmem:[%s1 + $0x370] sm:$0xf]
  %v367 = vld [vmem:[%s1 + $0x374] sm:$0xf]
  %v368 = vld [vmem:[%s1 + $0x378] sm:$0xf]
  %v369 = vld [vmem:[%s1 + $0x37c] sm:$0xf]
  %v370 = vld [vmem:[%s1 + $0x380] sm:$0xf]
  %v371 = vld [vmem:[%s1 + $0x384] sm:$0xf]
  %v372 = vld [vmem:[%s1 + $0x388] sm:$0xf]
  %v373 = vld [vmem:[%s1 + $0x38c] sm:$0xf]
  %v374 = vld [vmem:[%s1 + $0x390] sm:$0xf]
  %v375 = vld [vmem:[%s1 + $0x394] sm:$0xf]
  %v376 = vld [vmem:[%s1 + $0x398] sm:$0xf]
  %v377 = vld [vmem:[%s1 + $0x39c] sm:$0xf]
  %v378 = vld [vmem:[%s1 + $0x3a0] sm:$0xf]
  %v379 = vld [vmem:[%s1 + $0x3a4] sm:$0xf]
  %v380 = vld [vmem:[%s1 + $0x3a8] sm:$0xf]
  %v381 = vld [vmem:[%s1 + $0x3ac] sm:$0xf]
  %v382 = vld [vmem:[%s1 + $0x3b0] sm:$0xf]
  %v383 = vld [vmem:[%s1 + $0x3b4] sm:$0xf]
  %v384 = vld [vmem:[%s1 + $0x3b8] sm:$0xf]
  %v385 = vld [vmem:[%s1 + $0x3bc] sm:$0xf]
  %v386 = vld [vmem:[%s1 + $0x3c0] sm:$0xf]
  %v387 = vld [vmem:[%s1 + $0x3c4] sm:$0xf]
  %v388 = vld [vmem:[%s1 + $0x3c8] sm:$0xf]
  %v389 = vld [vmem:[%s1 + $0x3cc] sm:$0xf]
  %v390 = vld [vmem:[%s1 + $0x3d0] sm:$0xf]
  %v391 = vld [vmem:[%s1 + $0x3d4] sm:$0xf]
  %v392 = vld [vmem:[%s1 + $0x3d8] sm:$0xf]
  %v393 = vld [vmem:[%s1 + $0x3dc] sm:$0xf]
  %v394 = vld [vmem:[%s1 + $0x3e0] sm:$0xf]
  %v395 = vld [vmem:[%s1 + $0x3e4] sm:$0xf]
  %v396 = vld [vmem:[%s1 + $0x3e8] sm:$0xf]
  %v397 = vld [vmem:[%s1 + $0x3ec] sm:$0xf]
  %v398 = vld [vmem:[%s1 + $0x3f0] sm:$0xf]
  %v399 = vld [vmem:[%s1 + $0x3f4] sm:$0xf]
  %v400 = vld [vmem:[%s1 + $0x3f8] sm:$0xf]
  %v401 = vld [vmem:[%s1 + $0x3fc] sm:$0xf]
  %v530 = vunpack.c.l.b16 %v18
  %v531 = vunpack.c.h.b16 %v18
  %v532 = vunpack.c.l.b16 %v19
  %v533 = vunpack.c.h.b16 %v19
  %v534 = vunpack.c.l.b16 %v20
  %v535 = vunpack.c.h.b16 %v20
  %v536 = vunpack.c.l.b16 %v21
  %v537 = vunpack.c.h.b16 %v21
  %v538 = vunpack.c.l.b16 %v22
  %v539 = vunpack.c.h.b16 %v22
  %v540 = vunpack.c.l.b16 %v23
  %v541 = vunpack.c.h.b16 %v23
  %v542 = vunpack.c.l.b16 %v24
  %v543 = vunpack.c.h.b16 %v24
  %v544 = vunpack.c.l.b16 %v25
  %v545 = vunpack.c.h.b16 %v25
  %v546 = vunpack.c.l.b16 %v26
  %v547 = vunpack.c.h.b16 %v26
  %v548 = vunpack.c.l.b16 %v27
  %v549 = vunpack.c.h.b16 %v27
  %v550 = vunpack.c.l.b16 %v28
  %v551 = vunpack.c.h.b16 %v28
  %v552 = vunpack.c.l.b16 %v29
  %v553 = vunpack.c.h.b16 %v29
  %v554 = vunpack.c.l.b16 %v30
  %v555 = vunpack.c.h.b16 %v30
  %v556 = vunpack.c.l.b16 %v31
  %v557 = vunpack.c.h.b16 %v31
  %v558 = vunpack.c.l.b16 %v32
  %v559 = vunpack.c.h.b16 %v32
  %v560 = vunpack.c.l.b16 %v33
  %v561 = vunpack.c.h.b16 %v33
  %v562 = vunpack.c.l.b16 %v34
  %v563 = vunpack.c.h.b16 %v34
  %v564 = vunpack.c.l.b16 %v35
  %v565 = vunpack.c.h.b16 %v35
  %v566 = vunpack.c.l.b16 %v36
  %v567 = vunpack.c.h.b16 %v36
  %v568 = vunpack.c.l.b16 %v37
  %v569 = vunpack.c.h.b16 %v37
  %v570 = vunpack.c.l.b16 %v38
  %v571 = vunpack.c.h.b16 %v38
  %v572 = vunpack.c.l.b16 %v39
  %v573 = vunpack.c.h.b16 %v39
  %v574 = vunpack.c.l.b16 %v40
  %v575 = vunpack.c.h.b16 %v40
  %v576 = vunpack.c.l.b16 %v41
  %v577 = vunpack.c.h.b16 %v41
  %v578 = vunpack.c.l.b16 %v42
  %v579 = vunpack.c.h.b16 %v42
  %v580 = vunpack.c.l.b16 %v43
  %v581 = vunpack.c.h.b16 %v43
  %v582 = vunpack.c.l.b16 %v44
  %v583 = vunpack.c.h.b16 %v44
  %v584 = vunpack.c.l.b16 %v45
  %v585 = vunpack.c.h.b16 %v45
  %v586 = vunpack.c.l.b16 %v46
  %v587 = vunpack.c.h.b16 %v46
  %v588 = vunpack.c.l.b16 %v47
  %v589 = vunpack.c.h.b16 %v47
  %v590 = vunpack.c.l.b16 %v48
  %v591 = vunpack.c.h.b16 %v48
  %v592 = vunpack.c.l.b16 %v49
  %v593 = vunpack.c.h.b16 %v49
  %v594 = vunpack.c.l.b16 %v50
  %v595 = vunpack.c.h.b16 %v50
  %v596 = vunpack.c.l.b16 %v51
  %v597 = vunpack.c.h.b16 %v51
  %v598 = vunpack.c.l.b16 %v52
  %v599 = vunpack.c.h.b16 %v52
  %v600 = vunpack.c.l.b16 %v53
  %v601 = vunpack.c.h.b16 %v53
  %v602 = vunpack.c.l.b16 %v54
  %v603 = vunpack.c.h.b16 %v54
  %v604 = vunpack.c.l.b16 %v55
  %v605 = vunpack.c.h.b16 %v55
  %v606 = vunpack.c.l.b16 %v56
  %v607 = vunpack.c.h.b16 %v56
  %v608 = vunpack.c.l.b16 %v57
  %v609 = vunpack.c.h.b16 %v57
  %v610 = vunpack.c.l.b16 %v58
  %v611 = vunpack.c.h.b16 %v58
  %v612 = vunpack.c.l.b16 %v59
  %v613 = vunpack.c.h.b16 %v59
  %v614 = vunpack.c.l.b16 %v60
  %v615 = vunpack.c.h.b16 %v60
  %v616 = vunpack.c.l.b16 %v61
  %v617 = vunpack.c.h.b16 %v61
  %v618 = vunpack.c.l.b16 %v62
  %v619 = vunpack.c.h.b16 %v62
  %v620 = vunpack.c.l.b16 %v63
  %v621 = vunpack.c.h.b16 %v63
  %v622 = vunpack.c.l.b16 %v64
  %v623 = vunpack.c.h.b16 %v64
  %v624 = vunpack.c.l.b16 %v65
  %v625 = vunpack.c.h.b16 %v65
  %v626 = vunpack.c.l.b16 %v66
  %v627 = vunpack.c.h.b16 %v66
  %v628 = vunpack.c.l.b16 %v67
  %v629 = vunpack.c.h.b16 %v67
  %v630 = vunpack.c.l.b16 %v68
  %v631 = vunpack.c.h.b16 %v68
  %v632 = vunpack.c.l.b16 %v69
  %v633 = vunpack.c.h.b16 %v69
  %v634 = vunpack.c.l.b16 %v70
  %v635 = vunpack.c.h.b16 %v70
  %v636 = vunpack.c.l.b16 %v71
  %v637 = vunpack.c.h.b16 %v71
  %v638 = vunpack.c.l.b16 %v72
  %v639 = vunpack.c.h.b16 %v72
  %v640 = vunpack.c.l.b16 %v73
  %v641 = vunpack.c.h.b16 %v73
  %v642 = vunpack.c.l.b16 %v74
  %v643 = vunpack.c.h.b16 %v74
  %v644 = vunpack.c.l.b16 %v75
  %v645 = vunpack.c.h.b16 %v75
  %v646 = vunpack.c.l.b16 %v76
  %v647 = vunpack.c.h.b16 %v76
  %v648 = vunpack.c.l.b16 %v77
  %v649 = vunpack.c.h.b16 %v77
  %v650 = vunpack.c.l.b16 %v78
  %v651 = vunpack.c.h.b16 %v78
  %v652 = vunpack.c.l.b16 %v79
  %v653 = vunpack.c.h.b16 %v79
  %v654 = vunpack.c.l.b16 %v80
  %v655 = vunpack.c.h.b16 %v80
  %v656 = vunpack.c.l.b16 %v81
  %v657 = vunpack.c.h.b16 %v81
  %v658 = vunpack.c.l.b16 %v82
  %v659 = vunpack.c.h.b16 %v82
  %v660 = vunpack.c.l.b16 %v83
  %v661 = vunpack.c.h.b16 %v83
  %v662 = vunpack.c.l.b16 %v84
  %v663 = vunpack.c.h.b16 %v84
  %v664 = vunpack.c.l.b16 %v85
  %v665 = vunpack.c.h.b16 %v85
  %v666 = vunpack.c.l.b16 %v86
  %v667 = vunpack.c.h.b16 %v86
  %v668 = vunpack.c.l.b16 %v87
  %v669 = vunpack.c.h.b16 %v87
  %v670 = vunpack.c.l.b16 %v88
  %v671 = vunpack.c.h.b16 %v88
  %v672 = vunpack.c.l.b16 %v89
  %v673 = vunpack.c.h.b16 %v89
  %v674 = vunpack.c.l.b16 %v90
  %v675 = vunpack.c.h.b16 %v90
  %v676 = vunpack.c.l.b16 %v91
  %v677 = vunpack.c.h.b16 %v91
  %v678 = vunpack.c.l.b16 %v92
  %v679 = vunpack.c.h.b16 %v92
  %v680 = vunpack.c.l.b16 %v93
  %v681 = vunpack.c.h.b16 %v93
  %v682 = vunpack.c.l.b16 %v94
  %v683 = vunpack.c.h.b16 %v94
  %v684 = vunpack.c.l.b16 %v95
  %v685 = vunpack.c.h.b16 %v95
  %v686 = vunpack.c.l.b16 %v96
  %v687 = vunpack.c.h.b16 %v96
  %v688 = vunpack.c.l.b16 %v97
  %v689 = vunpack.c.h.b16 %v97
  %v690 = vunpack.c.l.b16 %v98
  %v691 = vunpack.c.h.b16 %v98
  %v692 = vunpack.c.l.b16 %v99
  %v693 = vunpack.c.h.b16 %v99
  %v694 = vunpack.c.l.b16 %v100
  %v695 = vunpack.c.h.b16 %v100
  %v696 = vunpack.c.l.b16 %v101
  %v697 = vunpack.c.h.b16 %v101
  %v698 = vunpack.c.l.b16 %v102
  %v699 = vunpack.c.h.b16 %v102
  %v700 = vunpack.c.l.b16 %v103
  %v701 = vunpack.c.h.b16 %v103
  %v702 = vunpack.c.l.b16 %v104
  %v703 = vunpack.c.h.b16 %v104
  %v704 = vunpack.c.l.b16 %v105
  %v705 = vunpack.c.h.b16 %v105
  %v706 = vunpack.c.l.b16 %v106
  %v707 = vunpack.c.h.b16 %v106
  %v708 = vunpack.c.l.b16 %v107
  %v709 = vunpack.c.h.b16 %v107
  %v710 = vunpack.c.l.b16 %v108
  %v711 = vunpack.c.h.b16 %v108
  %v712 = vunpack.c.l.b16 %v109
  %v713 = vunpack.c.h.b16 %v109
  %v714 = vunpack.c.l.b16 %v110
  %v715 = vunpack.c.h.b16 %v110
  %v716 = vunpack.c.l.b16 %v111
  %v717 = vunpack.c.h.b16 %v111
  %v718 = vunpack.c.l.b16 %v112
  %v719 = vunpack.c.h.b16 %v112
  %v720 = vunpack.c.l.b16 %v113
  %v721 = vunpack.c.h.b16 %v113
  %v722 = vunpack.c.l.b16 %v114
  %v723 = vunpack.c.h.b16 %v114
  %v724 = vunpack.c.l.b16 %v115
  %v725 = vunpack.c.h.b16 %v115
  %v726 = vunpack.c.l.b16 %v116
  %v727 = vunpack.c.h.b16 %v116
  %v728 = vunpack.c.l.b16 %v117
  %v729 = vunpack.c.h.b16 %v117
  %v730 = vunpack.c.l.b16 %v118
  %v731 = vunpack.c.h.b16 %v118
  %v732 = vunpack.c.l.b16 %v119
  %v733 = vunpack.c.h.b16 %v119
  %v734 = vunpack.c.l.b16 %v120
  %v735 = vunpack.c.h.b16 %v120
  %v736 = vunpack.c.l.b16 %v121
  %v737 = vunpack.c.h.b16 %v121
  %v738 = vunpack.c.l.b16 %v122
  %v739 = vunpack.c.h.b16 %v122
  %v740 = vunpack.c.l.b16 %v123
  %v741 = vunpack.c.h.b16 %v123
  %v742 = vunpack.c.l.b16 %v124
  %v743 = vunpack.c.h.b16 %v124
  %v744 = vunpack.c.l.b16 %v125
  %v745 = vunpack.c.h.b16 %v125
  %v746 = vunpack.c.l.b16 %v126
  %v747 = vunpack.c.h.b16 %v126
  %v748 = vunpack.c.l.b16 %v127
  %v749 = vunpack.c.h.b16 %v127
  %v750 = vunpack.c.l.b16 %v128
  %v751 = vunpack.c.h.b16 %v128
  %v752 = vunpack.c.l.b16 %v129
  %v753 = vunpack.c.h.b16 %v129
  %v754 = vunpack.c.l.b16 %v130
  %v755 = vunpack.c.h.b16 %v130
  %v756 = vunpack.c.l.b16 %v131
  %v757 = vunpack.c.h.b16 %v131
  %v758 = vunpack.c.l.b16 %v132
  %v759 = vunpack.c.h.b16 %v132
  %v760 = vunpack.c.l.b16 %v133
  %v761 = vunpack.c.h.b16 %v133
  %v762 = vunpack.c.l.b16 %v134
  %v763 = vunpack.c.h.b16 %v134
  %v764 = vunpack.c.l.b16 %v135
  %v765 = vunpack.c.h.b16 %v135
  %v766 = vunpack.c.l.b16 %v136
  %v767 = vunpack.c.h.b16 %v136
  %v768 = vunpack.c.l.b16 %v137
  %v769 = vunpack.c.h.b16 %v137
  %v770 = vunpack.c.l.b16 %v138
  %v771 = vunpack.c.h.b16 %v138
  %v772 = vunpack.c.l.b16 %v139
  %v773 = vunpack.c.h.b16 %v139
  %v774 = vunpack.c.l.b16 %v140
  %v775 = vunpack.c.h.b16 %v140
  %v776 = vunpack.c.l.b16 %v141
  %v777 = vunpack.c.h.b16 %v141
  %v778 = vunpack.c.l.b16 %v142
  %v779 = vunpack.c.h.b16 %v142
  %v780 = vunpack.c.l.b16 %v143
  %v781 = vunpack.c.h.b16 %v143
  %v782 = vunpack.c.l.b16 %v144
  %v783 = vunpack.c.h.b16 %v144
  %v784 = vunpack.c.l.b16 %v145
  %v785 = vunpack.c.h.b16 %v145
  %v786 = vpack.c.b16 %v546, %v530
  %v787 = vpack.c.b16 %v547, %v531
  %v788 = vpack.c.b16 %v548, %v532
  %v789 = vpack.c.b16 %v549, %v533
  %v790 = vpack.c.b16 %v550, %v534
  %v791 = vpack.c.b16 %v551, %v535
  %v792 = vpack.c.b16 %v552, %v536
  %v793 = vpack.c.b16 %v553, %v537
  %v794 = vpack.c.b16 %v554, %v538
  %v795 = vpack.c.b16 %v555, %v539
  %v796 = vpack.c.b16 %v556, %v540
  %v797 = vpack.c.b16 %v557, %v541
  %v798 = vpack.c.b16 %v558, %v542
  %v799 = vpack.c.b16 %v559, %v543
  %v800 = vpack.c.b16 %v560, %v544
  %v801 = vpack.c.b16 %v561, %v545
  %v802 = vpack.c.b16 %v578, %v562
  %v803 = vpack.c.b16 %v579, %v563
  %v804 = vpack.c.b16 %v580, %v564
  %v805 = vpack.c.b16 %v581, %v565
  %v806 = vpack.c.b16 %v582, %v566
  %v807 = vpack.c.b16 %v583, %v567
  %v808 = vpack.c.b16 %v584, %v568
  %v809 = vpack.c.b16 %v585, %v569
  %v810 = vpack.c.b16 %v586, %v570
  %v811 = vpack.c.b16 %v587, %v571
  %v812 = vpack.c.b16 %v588, %v572
  %v813 = vpack.c.b16 %v589, %v573
  %v814 = vpack.c.b16 %v590, %v574
  %v815 = vpack.c.b16 %v591, %v575
  %v816 = vpack.c.b16 %v592, %v576
  %v817 = vpack.c.b16 %v593, %v577
  %v818 = vpack.c.b16 %v610, %v594
  %v819 = vpack.c.b16 %v611, %v595
  %v820 = vpack.c.b16 %v612, %v596
  %v821 = vpack.c.b16 %v613, %v597
  %v822 = vpack.c.b16 %v614, %v598
  %v823 = vpack.c.b16 %v615, %v599
  %v824 = vpack.c.b16 %v616, %v600
  %v825 = vpack.c.b16 %v617, %v601
  %v826 = vpack.c.b16 %v618, %v602
  %v827 = vpack.c.b16 %v619, %v603
  %v828 = vpack.c.b16 %v620, %v604
  %v829 = vpack.c.b16 %v621, %v605
  %v830 = vpack.c.b16 %v622, %v606
  %v831 = vpack.c.b16 %v623, %v607
  %v832 = vpack.c.b16 %v624, %v608
  %v833 = vpack.c.b16 %v625, %v609
  %v834 = vpack.c.b16 %v642, %v626
  %v835 = vpack.c.b16 %v643, %v627
  %v836 = vpack.c.b16 %v644, %v628
  %v837 = vpack.c.b16 %v645, %v629
  %v838 = vpack.c.b16 %v646, %v630
  %v839 = vpack.c.b16 %v647, %v631
  %v840 = vpack.c.b16 %v648, %v632
  %v841 = vpack.c.b16 %v649, %v633
  %v842 = vpack.c.b16 %v650, %v634
  %v843 = vpack.c.b16 %v651, %v635
  %v844 = vpack.c.b16 %v652, %v636
  %v845 = vpack.c.b16 %v653, %v637
  %v846 = vpack.c.b16 %v654, %v638
  %v847 = vpack.c.b16 %v655, %v639
  %v848 = vpack.c.b16 %v656, %v640
  %v849 = vpack.c.b16 %v657, %v641
  %v850 = vpack.c.b16 %v674, %v658
  %v851 = vpack.c.b16 %v675, %v659
  %v852 = vpack.c.b16 %v676, %v660
  %v853 = vpack.c.b16 %v677, %v661
  %v854 = vpack.c.b16 %v678, %v662
  %v855 = vpack.c.b16 %v679, %v663
  %v856 = vpack.c.b16 %v680, %v664
  %v857 = vpack.c.b16 %v681, %v665
  %v858 = vpack.c.b16 %v682, %v666
  %v859 = vpack.c.b16 %v683, %v667
  %v860 = vpack.c.b16 %v684, %v668
  %v861 = vpack.c.b16 %v685, %v669
  %v862 = vpack.c.b16 %v686, %v670
  %v863 = vpack.c.b16 %v687, %v671
  %v864 = vpack.c.b16 %v688, %v672
  %v865 = vpack.c.b16 %v689, %v673
  %v866 = vpack.c.b16 %v706, %v690
  %v867 = vpack.c.b16 %v707, %v691
  %v868 = vpack.c.b16 %v708, %v692
  %v869 = vpack.c.b16 %v709, %v693
  %v870 = vpack.c.b16 %v710, %v694
  %v871 = vpack.c.b16 %v711, %v695
  %v872 = vpack.c.b16 %v712, %v696
  %v873 = vpack.c.b16 %v713, %v697
  %v874 = vpack.c.b16 %v714, %v698
  %v875 = vpack.c.b16 %v715, %v699
  %v876 = vpack.c.b16 %v716, %v700
  %v877 = vpack.c.b16 %v717, %v701
  %v878 = vpack.c.b16 %v718, %v702
  %v879 = vpack.c.b16 %v719, %v703
  %v880 = vpack.c.b16 %v720, %v704
  %v881 = vpack.c.b16 %v721, %v705
  %v882 = vpack.c.b16 %v738, %v722
  %v883 = vpack.c.b16 %v739, %v723
  %v884 = vpack.c.b16 %v740, %v724
  %v885 = vpack.c.b16 %v741, %v725
  %v886 = vpack.c.b16 %v742, %v726
  %v887 = vpack.c.b16 %v743, %v727
  %v888 = vpack.c.b16 %v744, %v728
  %v889 = vpack.c.b16 %v745, %v729
  %v890 = vpack.c.b16 %v746, %v730
  %v891 = vpack.c.b16 %v747, %v731
  %v892 = vpack.c.b16 %v748, %v732
  %v893 = vpack.c.b16 %v749, %v733
  %v894 = vpack.c.b16 %v750, %v734
  %v895 = vpack.c.b16 %v751, %v735
  %v896 = vpack.c.b16 %v752, %v736
  %v897 = vpack.c.b16 %v753, %v737
  %v898 = vpack.c.b16 %v770, %v754
  %v899 = vpack.c.b16 %v771, %v755
  %v900 = vpack.c.b16 %v772, %v756
  %v901 = vpack.c.b16 %v773, %v757
  %v902 = vpack.c.b16 %v774, %v758
  %v903 = vpack.c.b16 %v775, %v759
  %v904 = vpack.c.b16 %v776, %v760
  %v905 = vpack.c.b16 %v777, %v761
  %v906 = vpack.c.b16 %v778, %v762
  %v907 = vpack.c.b16 %v779, %v763
  %v908 = vpack.c.b16 %v780, %v764
  %v909 = vpack.c.b16 %v781, %v765
  %v910 = vpack.c.b16 %v782, %v766
  %v911 = vpack.c.b16 %v783, %v767
  %v912 = vpack.c.b16 %v784, %v768
  %v913 = vpack.c.b16 %v785, %v769
  %v1298 = vunpack.c.l.b16 %v146
  %v1299 = vunpack.c.l.b16 %v147
  %v1300 = vunpack.c.l.b16 %v148
  %v1301 = vunpack.c.l.b16 %v149
  %v1302 = vunpack.c.l.b16 %v150
  %v1303 = vunpack.c.l.b16 %v151
  %v1304 = vunpack.c.l.b16 %v152
  %v1305 = vunpack.c.l.b16 %v153
  %v1306 = vunpack.c.l.b16 %v154
  %v1307 = vunpack.c.l.b16 %v155
  %v1308 = vunpack.c.l.b16 %v156
  %v1309 = vunpack.c.l.b16 %v157
  %v1310 = vunpack.c.l.b16 %v158
  %v1311 = vunpack.c.l.b16 %v159
  %v1312 = vunpack.c.l.b16 %v160
  %v1313 = vunpack.c.l.b16 %v161
  %v1314 = vunpack.c.l.b16 %v162
  %v1315 = vunpack.c.l.b16 %v163
  %v1316 = vunpack.c.l.b16 %v164
  %v1317 = vunpack.c.l.b16 %v165
  %v1318 = vunpack.c.l.b16 %v166
  %v1319 = vunpack.c.l.b16 %v167
  %v1320 = vunpack.c.l.b16 %v168
  %v1321 = vunpack.c.l.b16 %v169
  %v1322 = vunpack.c.l.b16 %v170
  %v1323 = vunpack.c.l.b16 %v171
  %v1324 = vunpack.c.l.b16 %v172
  %v1325 = vunpack.c.l.b16 %v173
  %v1326 = vunpack.c.l.b16 %v174
  %v1327 = vunpack.c.l.b16 %v175
  %v1328 = vunpack.c.l.b16 %v176
  %v1329 = vunpack.c.l.b16 %v177
  %v1330 = vunpack.c.l.b16 %v178
  %v1331 = vunpack.c.l.b16 %v179
  %v1332 = vunpack.c.l.b16 %v180
  %v1333 = vunpack.c.l.b16 %v181
  %v1334 = vunpack.c.l.b16 %v182
  %v1335 = vunpack.c.l.b16 %v183
  %v1336 = vunpack.c.l.b16 %v184
  %v1337 = vunpack.c.l.b16 %v185
  %v1338 = vunpack.c.l.b16 %v186
  %v1339 = vunpack.c.l.b16 %v187
  %v1340 = vunpack.c.l.b16 %v188
  %v1341 = vunpack.c.l.b16 %v189
  %v1342 = vunpack.c.l.b16 %v190
  %v1343 = vunpack.c.l.b16 %v191
  %v1344 = vunpack.c.l.b16 %v192
  %v1345 = vunpack.c.l.b16 %v193
  %v1346 = vunpack.c.l.b16 %v194
  %v1347 = vunpack.c.l.b16 %v195
  %v1348 = vunpack.c.l.b16 %v196
  %v1349 = vunpack.c.l.b16 %v197
  %v1350 = vunpack.c.l.b16 %v198
  %v1351 = vunpack.c.l.b16 %v199
  %v1352 = vunpack.c.l.b16 %v200
  %v1353 = vunpack.c.l.b16 %v201
  %v1354 = vunpack.c.l.b16 %v202
  %v1355 = vunpack.c.l.b16 %v203
  %v1356 = vunpack.c.l.b16 %v204
  %v1357 = vunpack.c.l.b16 %v205
  %v1358 = vunpack.c.l.b16 %v206
  %v1359 = vunpack.c.l.b16 %v207
  %v1360 = vunpack.c.l.b16 %v208
  %v1361 = vunpack.c.l.b16 %v209
  %v1362 = vunpack.c.l.b16 %v210
  %v1363 = vunpack.c.l.b16 %v211
  %v1364 = vunpack.c.l.b16 %v212
  %v1365 = vunpack.c.l.b16 %v213
  %v1366 = vunpack.c.l.b16 %v214
  %v1367 = vunpack.c.l.b16 %v215
  %v1368 = vunpack.c.l.b16 %v216
  %v1369 = vunpack.c.l.b16 %v217
  %v1370 = vunpack.c.l.b16 %v218
  %v1371 = vunpack.c.l.b16 %v219
  %v1372 = vunpack.c.l.b16 %v220
  %v1373 = vunpack.c.l.b16 %v221
  %v1374 = vunpack.c.l.b16 %v222
  %v1375 = vunpack.c.l.b16 %v223
  %v1376 = vunpack.c.l.b16 %v224
  %v1377 = vunpack.c.l.b16 %v225
  %v1378 = vunpack.c.l.b16 %v226
  %v1379 = vunpack.c.l.b16 %v227
  %v1380 = vunpack.c.l.b16 %v228
  %v1381 = vunpack.c.l.b16 %v229
  %v1382 = vunpack.c.l.b16 %v230
  %v1383 = vunpack.c.l.b16 %v231
  %v1384 = vunpack.c.l.b16 %v232
  %v1385 = vunpack.c.l.b16 %v233
  %v1386 = vunpack.c.l.b16 %v234
  %v1387 = vunpack.c.l.b16 %v235
  %v1388 = vunpack.c.l.b16 %v236
  %v1389 = vunpack.c.l.b16 %v237
  %v1390 = vunpack.c.l.b16 %v238
  %v1391 = vunpack.c.l.b16 %v239
  %v1392 = vunpack.c.l.b16 %v240
  %v1393 = vunpack.c.l.b16 %v241
  %v1394 = vunpack.c.l.b16 %v242
  %v1395 = vunpack.c.l.b16 %v243
  %v1396 = vunpack.c.l.b16 %v244
  %v1397 = vunpack.c.l.b16 %v245
  %v1398 = vunpack.c.l.b16 %v246
  %v1399 = vunpack.c.l.b16 %v247
  %v1400 = vunpack.c.l.b16 %v248
  %v1401 = vunpack.c.l.b16 %v249
  %v1402 = vunpack.c.l.b16 %v250
  %v1403 = vunpack.c.l.b16 %v251
  %v1404 = vunpack.c.l.b16 %v252
  %v1405 = vunpack.c.l.b16 %v253
  %v1406 = vunpack.c.l.b16 %v254
  %v1407 = vunpack.c.l.b16 %v255
  %v1408 = vunpack.c.l.b16 %v256
  %v1409 = vunpack.c.l.b16 %v257
  %v1410 = vunpack.c.l.b16 %v258
  %v1411 = vunpack.c.l.b16 %v259
  %v1412 = vunpack.c.l.b16 %v260
  %v1413 = vunpack.c.l.b16 %v261
  %v1414 = vunpack.c.l.b16 %v262
  %v1415 = vunpack.c.l.b16 %v263
  %v1416 = vunpack.c.l.b16 %v264
  %v1417 = vunpack.c.l.b16 %v265
  %v1418 = vunpack.c.l.b16 %v266
  %v1419 = vunpack.c.l.b16 %v267
  %v1420 = vunpack.c.l.b16 %v268
  %v1421 = vunpack.c.l.b16 %v269
  %v1422 = vunpack.c.l.b16 %v270
  %v1423 = vunpack.c.l.b16 %v271
  %v1424 = vunpack.c.l.b16 %v272
  %v1425 = vunpack.c.l.b16 %v273
  %v1426 = vunpack.c.l.b16 %v274
  %v1427 = vunpack.c.l.b16 %v275
  %v1428 = vunpack.c.l.b16 %v276
  %v1429 = vunpack.c.l.b16 %v277
  %v1430 = vunpack.c.l.b16 %v278
  %v1431 = vunpack.c.l.b16 %v279
  %v1432 = vunpack.c.l.b16 %v280
  %v1433 = vunpack.c.l.b16 %v281
  %v1434 = vunpack.c.l.b16 %v282
  %v1435 = vunpack.c.l.b16 %v283
  %v1436 = vunpack.c.l.b16 %v284
  %v1437 = vunpack.c.l.b16 %v285
  %v1438 = vunpack.c.l.b16 %v286
  %v1439 = vunpack.c.l.b16 %v287
  %v1440 = vunpack.c.l.b16 %v288
  %v1441 = vunpack.c.l.b16 %v289
  %v1442 = vunpack.c.l.b16 %v290
  %v1443 = vunpack.c.l.b16 %v291
  %v1444 = vunpack.c.l.b16 %v292
  %v1445 = vunpack.c.l.b16 %v293
  %v1446 = vunpack.c.l.b16 %v294
  %v1447 = vunpack.c.l.b16 %v295
  %v1448 = vunpack.c.l.b16 %v296
  %v1449 = vunpack.c.l.b16 %v297
  %v1450 = vunpack.c.l.b16 %v298
  %v1451 = vunpack.c.l.b16 %v299
  %v1452 = vunpack.c.l.b16 %v300
  %v1453 = vunpack.c.l.b16 %v301
  %v1454 = vunpack.c.l.b16 %v302
  %v1455 = vunpack.c.l.b16 %v303
  %v1456 = vunpack.c.l.b16 %v304
  %v1457 = vunpack.c.l.b16 %v305
  %v1458 = vunpack.c.l.b16 %v306
  %v1459 = vunpack.c.l.b16 %v307
  %v1460 = vunpack.c.l.b16 %v308
  %v1461 = vunpack.c.l.b16 %v309
  %v1462 = vunpack.c.l.b16 %v310
  %v1463 = vunpack.c.l.b16 %v311
  %v1464 = vunpack.c.l.b16 %v312
  %v1465 = vunpack.c.l.b16 %v313
  %v1466 = vunpack.c.l.b16 %v314
  %v1467 = vunpack.c.l.b16 %v315
  %v1468 = vunpack.c.l.b16 %v316
  %v1469 = vunpack.c.l.b16 %v317
  %v1470 = vunpack.c.l.b16 %v318
  %v1471 = vunpack.c.l.b16 %v319
  %v1472 = vunpack.c.l.b16 %v320
  %v1473 = vunpack.c.l.b16 %v321
  %v1474 = vunpack.c.l.b16 %v322
  %v1475 = vunpack.c.l.b16 %v323
  %v1476 = vunpack.c.l.b16 %v324
  %v1477 = vunpack.c.l.b16 %v325
  %v1478 = vunpack.c.l.b16 %v326
  %v1479 = vunpack.c.l.b16 %v327
  %v1480 = vunpack.c.l.b16 %v328
  %v1481 = vunpack.c.l.b16 %v329
  %v1482 = vunpack.c.l.b16 %v330
  %v1483 = vunpack.c.l.b16 %v331
  %v1484 = vunpack.c.l.b16 %v332
  %v1485 = vunpack.c.l.b16 %v333
  %v1486 = vunpack.c.l.b16 %v334
  %v1487 = vunpack.c.l.b16 %v335
  %v1488 = vunpack.c.l.b16 %v336
  %v1489 = vunpack.c.l.b16 %v337
  %v1490 = vunpack.c.l.b16 %v338
  %v1491 = vunpack.c.l.b16 %v339
  %v1492 = vunpack.c.l.b16 %v340
  %v1493 = vunpack.c.l.b16 %v341
  %v1494 = vunpack.c.l.b16 %v342
  %v1495 = vunpack.c.l.b16 %v343
  %v1496 = vunpack.c.l.b16 %v344
  %v1497 = vunpack.c.l.b16 %v345
  %v1498 = vunpack.c.l.b16 %v346
  %v1499 = vunpack.c.l.b16 %v347
  %v1500 = vunpack.c.l.b16 %v348
  %v1501 = vunpack.c.l.b16 %v349
  %v1502 = vunpack.c.l.b16 %v350
  %v1503 = vunpack.c.l.b16 %v351
  %v1504 = vunpack.c.l.b16 %v352
  %v1505 = vunpack.c.l.b16 %v353
  %v1506 = vunpack.c.l.b16 %v354
  %v1507 = vunpack.c.l.b16 %v355
  %v1508 = vunpack.c.l.b16 %v356
  %v1509 = vunpack.c.l.b16 %v357
  %v1510 = vunpack.c.l.b16 %v358
  %v1511 = vunpack.c.l.b16 %v359
  %v1512 = vunpack.c.l.b16 %v360
  %v1513 = vunpack.c.l.b16 %v361
  %v1514 = vunpack.c.l.b16 %v362
  %v1515 = vunpack.c.l.b16 %v363
  %v1516 = vunpack.c.l.b16 %v364
  %v1517 = vunpack.c.l.b16 %v365
  %v1518 = vunpack.c.l.b16 %v366
  %v1519 = vunpack.c.l.b16 %v367
  %v1520 = vunpack.c.l.b16 %v368
  %v1521 = vunpack.c.l.b16 %v369
  %v1522 = vunpack.c.l.b16 %v370
  %v1523 = vunpack.c.l.b16 %v371
  %v1524 = vunpack.c.l.b16 %v372
  %v1525 = vunpack.c.l.b16 %v373
  %v1526 = vunpack.c.l.b16 %v374
  %v1527 = vunpack.c.l.b16 %v375
  %v1528 = vunpack.c.l.b16 %v376
  %v1529 = vunpack.c.l.b16 %v377
  %v1530 = vunpack.c.l.b16 %v378
  %v1531 = vunpack.c.l.b16 %v379
  %v1532 = vunpack.c.l.b16 %v380
  %v1533 = vunpack.c.l.b16 %v381
  %v1534 = vunpack.c.l.b16 %v382
  %v1535 = vunpack.c.l.b16 %v383
  %v1536 = vunpack.c.l.b16 %v384
  %v1537 = vunpack.c.l.b16 %v385
  %v1538 = vunpack.c.l.b16 %v386
  %v1539 = vunpack.c.l.b16 %v387
  %v1540 = vunpack.c.l.b16 %v388
  %v1541 = vunpack.c.l.b16 %v389
  %v1542 = vunpack.c.l.b16 %v390
  %v1543 = vunpack.c.l.b16 %v391
  %v1544 = vunpack.c.l.b16 %v392
  %v1545 = vunpack.c.l.b16 %v393
  %v1546 = vunpack.c.l.b16 %v394
  %v1547 = vunpack.c.l.b16 %v395
  %v1548 = vunpack.c.l.b16 %v396
  %v1549 = vunpack.c.l.b16 %v397
  %v1550 = vunpack.c.l.b16 %v398
  %v1551 = vunpack.c.l.b16 %v399
  %v1552 = vunpack.c.l.b16 %v400
  %v1553 = vunpack.c.l.b16 %v401
  %v1554 = vpack.c.b16 %v1299, %v1298
  %v1555 = vpack.c.b16 %v1301, %v1300
  %v1556 = vpack.c.b16 %v1303, %v1302
  %v1557 = vpack.c.b16 %v1305, %v1304
  %v1558 = vpack.c.b16 %v1307, %v1306
  %v1559 = vpack.c.b16 %v1309, %v1308
  %v1560 = vpack.c.b16 %v1311, %v1310
  %v1561 = vpack.c.b16 %v1313, %v1312
  %v1562 = vpack.c.b16 %v1315, %v1314
  %v1563 = vpack.c.b16 %v1317, %v1316
  %v1564 = vpack.c.b16 %v1319, %v1318
  %v1565 = vpack.c.b16 %v1321, %v1320
  %v1566 = vpack.c.b16 %v1323, %v1322
  %v1567 = vpack.c.b16 %v1325, %v1324
  %v1568 = vpack.c.b16 %v1327, %v1326
  %v1569 = vpack.c.b16 %v1329, %v1328
  %v1570 = vpack.c.b16 %v1331, %v1330
  %v1571 = vpack.c.b16 %v1333, %v1332
  %v1572 = vpack.c.b16 %v1335, %v1334
  %v1573 = vpack.c.b16 %v1337, %v1336
  %v1574 = vpack.c.b16 %v1339, %v1338
  %v1575 = vpack.c.b16 %v1341, %v1340
  %v1576 = vpack.c.b16 %v1343, %v1342
  %v1577 = vpack.c.b16 %v1345, %v1344
  %v1578 = vpack.c.b16 %v1347, %v1346
  %v1579 = vpack.c.b16 %v1349, %v1348
  %v1580 = vpack.c.b16 %v1351, %v1350
  %v1581 = vpack.c.b16 %v1353, %v1352
  %v1582 = vpack.c.b16 %v1355, %v1354
  %v1583 = vpack.c.b16 %v1357, %v1356
  %v1584 = vpack.c.b16 %v1359, %v1358
  %v1585 = vpack.c.b16 %v1361, %v1360
  %v1586 = vpack.c.b16 %v1363, %v1362
  %v1587 = vpack.c.b16 %v1365, %v1364
  %v1588 = vpack.c.b16 %v1367, %v1366
  %v1589 = vpack.c.b16 %v1369, %v1368
  %v1590 = vpack.c.b16 %v1371, %v1370
  %v1591 = vpack.c.b16 %v1373, %v1372
  %v1592 = vpack.c.b16 %v1375, %v1374
  %v1593 = vpack.c.b16 %v1377, %v1376
  %v1594 = vpack.c.b16 %v1379, %v1378
  %v1595 = vpack.c.b16 %v1381, %v1380
  %v1596 = vpack.c.b16 %v1383, %v1382
  %v1597 = vpack.c.b16 %v1385, %v1384
  %v1598 = vpack.c.b16 %v1387, %v1386
  %v1599 = vpack.c.b16 %v1389, %v1388
  %v1600 = vpack.c.b16 %v1391, %v1390
  %v1601 = vpack.c.b16 %v1393, %v1392
  %v1602 = vpack.c.b16 %v1395, %v1394
  %v1603 = vpack.c.b16 %v1397, %v1396
  %v1604 = vpack.c.b16 %v1399, %v1398
  %v1605 = vpack.c.b16 %v1401, %v1400
  %v1606 = vpack.c.b16 %v1403, %v1402
  %v1607 = vpack.c.b16 %v1405, %v1404
  %v1608 = vpack.c.b16 %v1407, %v1406
  %v1609 = vpack.c.b16 %v1409, %v1408
  %v1610 = vpack.c.b16 %v1411, %v1410
  %v1611 = vpack.c.b16 %v1413, %v1412
  %v1612 = vpack.c.b16 %v1415, %v1414
  %v1613 = vpack.c.b16 %v1417, %v1416
  %v1614 = vpack.c.b16 %v1419, %v1418
  %v1615 = vpack.c.b16 %v1421, %v1420
  %v1616 = vpack.c.b16 %v1423, %v1422
  %v1617 = vpack.c.b16 %v1425, %v1424
  %v1618 = vpack.c.b16 %v1427, %v1426
  %v1619 = vpack.c.b16 %v1429, %v1428
  %v1620 = vpack.c.b16 %v1431, %v1430
  %v1621 = vpack.c.b16 %v1433, %v1432
  %v1622 = vpack.c.b16 %v1435, %v1434
  %v1623 = vpack.c.b16 %v1437, %v1436
  %v1624 = vpack.c.b16 %v1439, %v1438
  %v1625 = vpack.c.b16 %v1441, %v1440
  %v1626 = vpack.c.b16 %v1443, %v1442
  %v1627 = vpack.c.b16 %v1445, %v1444
  %v1628 = vpack.c.b16 %v1447, %v1446
  %v1629 = vpack.c.b16 %v1449, %v1448
  %v1630 = vpack.c.b16 %v1451, %v1450
  %v1631 = vpack.c.b16 %v1453, %v1452
  %v1632 = vpack.c.b16 %v1455, %v1454
  %v1633 = vpack.c.b16 %v1457, %v1456
  %v1634 = vpack.c.b16 %v1459, %v1458
  %v1635 = vpack.c.b16 %v1461, %v1460
  %v1636 = vpack.c.b16 %v1463, %v1462
  %v1637 = vpack.c.b16 %v1465, %v1464
  %v1638 = vpack.c.b16 %v1467, %v1466
  %v1639 = vpack.c.b16 %v1469, %v1468
  %v1640 = vpack.c.b16 %v1471, %v1470
  %v1641 = vpack.c.b16 %v1473, %v1472
  %v1642 = vpack.c.b16 %v1475, %v1474
  %v1643 = vpack.c.b16 %v1477, %v1476
  %v1644 = vpack.c.b16 %v1479, %v1478
  %v1645 = vpack.c.b16 %v1481, %v1480
  %v1646 = vpack.c.b16 %v1483, %v1482
  %v1647 = vpack.c.b16 %v1485, %v1484
  %v1648 = vpack.c.b16 %v1487, %v1486
  %v1649 = vpack.c.b16 %v1489, %v1488
  %v1650 = vpack.c.b16 %v1491, %v1490
  %v1651 = vpack.c.b16 %v1493, %v1492
  %v1652 = vpack.c.b16 %v1495, %v1494
  %v1653 = vpack.c.b16 %v1497, %v1496
  %v1654 = vpack.c.b16 %v1499, %v1498
  %v1655 = vpack.c.b16 %v1501, %v1500
  %v1656 = vpack.c.b16 %v1503, %v1502
  %v1657 = vpack.c.b16 %v1505, %v1504
  %v1658 = vpack.c.b16 %v1507, %v1506
  %v1659 = vpack.c.b16 %v1509, %v1508
  %v1660 = vpack.c.b16 %v1511, %v1510
  %v1661 = vpack.c.b16 %v1513, %v1512
  %v1662 = vpack.c.b16 %v1515, %v1514
  %v1663 = vpack.c.b16 %v1517, %v1516
  %v1664 = vpack.c.b16 %v1519, %v1518
  %v1665 = vpack.c.b16 %v1521, %v1520
  %v1666 = vpack.c.b16 %v1523, %v1522
  %v1667 = vpack.c.b16 %v1525, %v1524
  %v1668 = vpack.c.b16 %v1527, %v1526
  %v1669 = vpack.c.b16 %v1529, %v1528
  %v1670 = vpack.c.b16 %v1531, %v1530
  %v1671 = vpack.c.b16 %v1533, %v1532
  %v1672 = vpack.c.b16 %v1535, %v1534
  %v1673 = vpack.c.b16 %v1537, %v1536
  %v1674 = vpack.c.b16 %v1539, %v1538
  %v1675 = vpack.c.b16 %v1541, %v1540
  %v1676 = vpack.c.b16 %v1543, %v1542
  %v1677 = vpack.c.b16 %v1545, %v1544
  %v1678 = vpack.c.b16 %v1547, %v1546
  %v1679 = vpack.c.b16 %v1549, %v1548
  %v1680 = vpack.c.b16 %v1551, %v1550
  %v1681 = vpack.c.b16 %v1553, %v1552
  %1810 = vmatprep.subr.bf16.mxu0 0
  %1811 = vmatpush1.bf16.msra.mxu0 %v1554
  %1812 = vmatprep.subr.bf16.mxu0 0
  %1813 = vmatpush1.bf16.msra.mxu0 %v1555
  %1814 = vmatprep.subr.bf16.mxu0 0
  %1815 = vmatpush1.bf16.msra.mxu0 %v1556
  %1816 = vmatprep.subr.bf16.mxu0 0
  %1817 = vmatpush1.bf16.msra.mxu0 %v1557
  %1818 = vmatprep.subr.bf16.mxu0 0
  %1819 = vmatpush1.bf16.msra.mxu0 %v1558
  %1820 = vmatprep.subr.bf16.mxu0 0
  %1821 = vmatpush1.bf16.msra.mxu0 %v1559
  %1822 = vmatprep.subr.bf16.mxu0 0
  %1823 = vmatpush1.bf16.msra.mxu0 %v1560
  %1824 = vmatprep.subr.bf16.mxu0 0
  %1825 = vmatpush1.bf16.msra.mxu0 %v1561
  %1826 = vmatprep.subr.bf16.mxu0 0
  %1827 = vmatpush1.bf16.msra.mxu0 %v1562
  %1828 = vmatprep.subr.bf16.mxu0 0
  %1829 = vmatpush1.bf16.msra.mxu0 %v1563
  %1830 = vmatprep.subr.bf16.mxu0 0
  %1831 = vmatpush1.bf16.msra.mxu0 %v1564
  %1832 = vmatprep.subr.bf16.mxu0 0
  %1833 = vmatpush1.bf16.msra.mxu0 %v1565
  %1834 = vmatprep.subr.bf16.mxu0 0
  %1835 = vmatpush1.bf16.msra.mxu0 %v1566
  %1836 = vmatprep.subr.bf16.mxu0 0
  %1837 = vmatpush1.bf16.msra.mxu0 %v1567
  %1838 = vmatprep.subr.bf16.mxu0 0
  %1839 = vmatpush1.bf16.msra.mxu0 %v1568
  %1840 = vmatprep.subr.bf16.mxu0 0
  %1841 = vmatpush1.bf16.msra.mxu0 %v1569
  %1842 = vmatprep.mubr.bf16.mxu0 %v787
  %1843 = vmatmul.mubr.bf16.gmra.mrb[0].mxu0 %v786
  %v1844 = vpop.f32.mrb[0].mxu0
  %v1845 = vadd.f32 0.0, %v1844
  %v1846 = vpop.f32.mrb[0].mxu0
  %v1847 = vpop.f32.mrb[0].mxu0
  %v1848 = vadd.f32 0.0, %v1847
  %v1849 = vpop.f32.mrb[0].mxu0
  %1850 = vmatprep.mubr.bf16.mxu0 %v803
  %1851 = vmatmul.mubr.bf16.gmra.mrb[0].mxu0 %v802
  %v1852 = vpop.f32.mrb[0].mxu0
  %v1853 = vadd.f32 0.0, %v1852
  %v1854 = vpop.f32.mrb[0].mxu0
  %v1855 = vpop.f32.mrb[0].mxu0
  %v1856 = vadd.f32 0.0, %v1855
  %v1857 = vpop.f32.mrb[0].mxu0
  %1858 = vmatprep.mubr.bf16.mxu0 %v819
  %1859 = vmatmul.mubr.bf16.gmra.mrb[0].mxu0 %v818
  %v1860 = vpop.f32.mrb[0].mxu0
  %v1861 = vadd.f32 0.0, %v1860
  %v1862 = vpop.f32.mrb[0].mxu0
  %v1863 = vpop.f32.mrb[0].mxu0
  %v1864 = vadd.f32 0.0, %v1863
  %v1865 = vpop.f32.mrb[0].mxu0
  %1866 = vmatprep.mubr.bf16.mxu0 %v835
  %1867 = vmatmul.mubr.bf16.gmra.mrb[0].mxu0 %v834
  %v1868 = vpop.f32.mrb[0].mxu0
  %v1869 = vadd.f32 0.0, %v1868
  %v1870 = vpop.f32.mrb[0].mxu0
  %v1871 = vpop.f32.mrb[0].mxu0
  %v1872 = vadd.f32 0.0, %v1871
  %v1873 = vpop.f32.mrb[0].mxu0
  %1874 = vmatprep.mubr.bf16.mxu0 %v851
  %1875 = vmatmul.mubr.bf16.gmra.mrb[0].mxu0 %v850
  %v1876 = vpop.f32.mrb[0].mxu0
  %v1877 = vadd.f32 0.0, %v1876
  %v1878 = vpop.f32.mrb[0].mxu0
  %v1879 = vpop.f32.mrb[0].mxu0
  %v1880 = vadd.f32 0.0, %v1879
  %v1881 = vpop.f32.mrb[0].mxu0
  %1882 = vmatprep.mubr.bf16.mxu0 %v867
  %1883 = vmatmul.mubr.bf16.gmra.mrb[0].mxu0 %v866
  %v1884 = vpop.f32.mrb[0].mxu0
  %v1885 = vadd.f32 0.0, %v1884
  %v1886 = vpop.f32.mrb[0].mxu0
  %v1887 = vpop.f32.mrb[0].mxu0
  %v1888 = vadd.f32 0.0, %v1887
  %v1889 = vpop.f32.mrb[0].mxu0
  %1890 = vmatprep.mubr.bf16.mxu0 %v883
  %1891 = vmatmul.mubr.bf16.gmra.mrb[0].mxu0 %v882
  %v1892 = vpop.f32.mrb[0].mxu0
  %v1893 = vadd.f32 0.0, %v1892
  %v1894 = vpop.f32.mrb[0].mxu0
  %v1895 = vpop.f32.mrb[0].mxu0
  %v1896 = vadd.f32 0.0, %v1895
  %v1897 = vpop.f32.mrb[0].mxu0
  %1898 = vmatprep.mubr.bf16.mxu0 %v899
  %1899 = vmatmul.mubr.bf16.gmra.mrb[0].mxu0 %v898
  %v1900 = vpop.f32.mrb[0].mxu0
  %v1901 = vadd.f32 0.0, %v1900
  %v1902 = vpop.f32.mrb[0].mxu0
  %v1903 = vpop.f32.mrb[0].mxu0
  %v1904 = vadd.f32 0.0, %v1903
  %v1905 = vpop.f32.mrb[0].mxu0
  %1906 = vdwg.mxu0
  %1907 = vmatprep.subr.bf16.mxu0 0
  %1908 = vmatpush1.bf16.msra.mxu0 %v1570
  %1909 = vmatprep.subr.bf16.mxu0 0
  %1910 = vmatpush1.bf16.msra.mxu0 %v1571
  %1911 = vmatprep.subr.bf16.mxu0 0
  %1912 = vmatpush1.bf16.msra.mxu0 %v1572
  %1913 = vmatprep.subr.bf16.mxu0 0
  %1914 = vmatpush1.bf16.msra.mxu0 %v1573
  %1915 = vmatprep.subr.bf16.mxu0 0
  %1916 = vmatpush1.bf16.msra.mxu0 %v1574
  %1917 = vmatprep.subr.bf16.mxu0 0
  %1918 = vmatpush1.bf16.msra.mxu0 %v1575
  %1919 = vmatprep.subr.bf16.mxu0 0
  %1920 = vmatpush1.bf16.msra.mxu0 %v1576
  %1921 = vmatprep.subr.bf16.mxu0 0
  %1922 = vmatpush1.bf16.msra.mxu0 %v1577
  %1923 = vmatprep.subr.bf16.mxu0 0
  %1924 = vmatpush1.bf16.msra.mxu0 %v1578
  %1925 = vmatprep.subr.bf16.mxu0 0
  %1926 = vmatpush1.bf16.msra.mxu0 %v1579
  %1927 = vmatprep.subr.bf16.mxu0 0
  %1928 = vmatpush1.bf16.msra.mxu0 %v1580
  %1929 = vmatprep.subr.bf16.mxu0 0
  %1930 = vmatpush1.bf16.msra.mxu0 %v1581
  %1931 = vmatprep.subr.bf16.mxu0 0
  %1932 = vmatpush1.bf16.msra.mxu0 %v1582
  %1933 = vmatprep.subr.bf16.mxu0 0
  %1934 = vmatpush1.bf16.msra.mxu0 %v1583
  %1935 = vmatprep.subr.bf16.mxu0 0
  %1936 = vmatpush1.bf16.msra.mxu0 %v1584
  %1937 = vmatprep.subr.bf16.mxu0 0
  %1938 = vmatpush1.bf16.msra.mxu0 %v1585
  %1939 = vmatprep.mubr.bf16.mxu0 %v789
  %1940 = vmatmul.mubr.bf16.gmra.mrb[0].mxu0 %v788
  %v1941 = vpop.f32.mrb[0].mxu0
  %v1942 = vadd.f32 %v1845, %v1941
  %v1943 = vpop.f32.mrb[0].mxu0
  %v1944 = vpop.f32.mrb[0].mxu0
  %v1945 = vadd.f32 %v1848, %v1944
  %v1946 = vpop.f32.mrb[0].mxu0
  %1947 = vmatprep.mubr.bf16.mxu0 %v805
  %1948 = vmatmul.mubr.bf16.gmra.mrb[0].mxu0 %v804
  %v1949 = vpop.f32.mrb[0].mxu0
  %v1950 = vadd.f32 %v1853, %v1949
  %v1951 = vpop.f32.mrb[0].mxu0
  %v1952 = vpop.f32.mrb[0].mxu0
  %v1953 = vadd.f32 %v1856, %v1952
  %v1954 = vpop.f32.mrb[0].mxu0
  %1955 = vmatprep.mubr.bf16.mxu0 %v821
  %1956 = vmatmul.mubr.bf16.gmra.mrb[0].mxu0 %v820
  %v1957 = vpop.f32.mrb[0].mxu0
  %v1958 = vadd.f32 %v1861, %v1957
  %v1959 = vpop.f32.mrb[0].mxu0
  %v1960 = vpop.f32.mrb[0].mxu0
  %v1961 = vadd.f32 %v1864, %v1960
  %v1962 = vpop.f32.mrb[0].mxu0
  %1963 = vmatprep.mubr.bf16.mxu0 %v837
  %1964 = vmatmul.mubr.bf16.gmra.mrb[0].mxu0 %v836
  %v1965 = vpop.f32.mrb[0].mxu0
  %v1966 = vadd.f32 %v1869, %v1965
  %v1967 = vpop.f32.mrb[0].mxu0
  %v1968 = vpop.f32.mrb[0].mxu0
  %v1969 = vadd.f32 %v1872, %v1968
  %v1970 = vpop.f32.mrb[0].mxu0
  %1971 = vmatprep.mubr.bf16.mxu0 %v853
  %1972 = vmatmul.mubr.bf16.gmra.mrb[0].mxu0 %v852
  %v1973 = vpop.f32.mrb[0].mxu0
  %v1974 = vadd.f32 %v1877, %v1973
  %v1975 = vpop.f32.mrb[0].mxu0
  %v1976 = vpop.f32.mrb[0].mxu0
  %v1977 = vadd.f32 %v1880, %v1976
  %v1978 = vpop.f32.mrb[0].mxu0
  %1979 = vmatprep.mubr.bf16.mxu0 %v869
  %1980 = vmatmul.mubr.bf16.gmra.mrb[0].mxu0 %v868
  %v1981 = vpop.f32.mrb[0].mxu0
  %v1982 = vadd.f32 %v1885, %v1981
  %v1983 = vpop.f32.mrb[0].mxu0
  %v1984 = vpop.f32.mrb[0].mxu0
  %v1985 = vadd.f32 %v1888, %v1984
  %v1986 = vpop.f32.mrb[0].mxu0
  %1987 = vmatprep.mubr.bf16.mxu0 %v885
  %1988 = vmatmul.mubr.bf16.gmra.mrb[0].mxu0 %v884
  %v1989 = vpop.f32.mrb[0].mxu0
  %v1990 = vadd.f32 %v1893, %v1989
  %v1991 = vpop.f32.mrb[0].mxu0
  %v1992 = vpop.f32.mrb[0].mxu0
  %v1993 = vadd.f32 %v1896, %v1992
  %v1994 = vpop.f32.mrb[0].mxu0
  %1995 = vmatprep.mubr.bf16.mxu0 %v901
  %1996 = vmatmul.mubr.bf16.gmra.mrb[0].mxu0 %v900
  %v1997 = vpop.f32.mrb[0].mxu0
  %v1998 = vadd.f32 %v1901, %v1997
  %v1999 = vpop.f32.mrb[0].mxu0
  %v2000 = vpop.f32.mrb[0].mxu0
  %v2001 = vadd.f32 %v1904, %v2000
  %v2002 = vpop.f32.mrb[0].mxu0
  %2003 = vdwg.mxu0
  %2004 = vmatprep.subr.bf16.mxu0 0
  %2005 = vmatpush1.bf16.msra.mxu0 %v1586
  %2006 = vmatprep.subr.bf16.mxu0 0
  %2007 = vmatpush1.bf16.msra.mxu0 %v1587
  %2008 = vmatprep.subr.bf16.mxu0 0
  %2009 = vmatpush1.bf16.msra.mxu0 %v1588
  %2010 = vmatprep.subr.bf16.mxu0 0
  %2011 = vmatpush1.bf16.msra.mxu0 %v1589
  %2012 = vmatprep.subr.bf16.mxu0 0
  %2013 = vmatpush1.bf16.msra.mxu0 %v1590
  %2014 = vmatprep.subr.bf16.mxu0 0
  %2015 = vmatpush1.bf16.msra.mxu0 %v1591
  %2016 = vmatprep.subr.bf16.mxu0 0
  %2017 = vmatpush1.bf16.msra.mxu0 %v1592
  %2018 = vmatprep.subr.bf16.mxu0 0
  %2019 = vmatpush1.bf16.msra.mxu0 %v1593
  %2020 = vmatprep.subr.bf16.mxu0 0
  %2021 = vmatpush1.bf16.msra.mxu0 %v1594
  %2022 = vmatprep.subr.bf16.mxu0 0
  %2023 = vmatpush1.bf16.msra.mxu0 %v1595
  %2024 = vmatprep.subr.bf16.mxu0 0
  %2025 = vmatpush1.bf16.msra.mxu0 %v1596
  %2026 = vmatprep.subr.bf16.mxu0 0
  %2027 = vmatpush1.bf16.msra.mxu0 %v1597
  %2028 = vmatprep.subr.bf16.mxu0 0
  %2029 = vmatpush1.bf16.msra.mxu0 %v1598
  %2030 = vmatprep.subr.bf16.mxu0 0
  %2031 = vmatpush1.bf16.msra.mxu0 %v1599
  %2032 = vmatprep.subr.bf16.mxu0 0
  %2033 = vmatpush1.bf16.msra.mxu0 %v1600
  %2034 = vmatprep.subr.bf16.mxu0 0
  %2035 = vmatpush1.bf16.msra.mxu0 %v1601
  %2036 = vmatprep.mubr.bf16.mxu0 %v791
  %2037 = vmatmul.mubr.bf16.gmra.mrb[0].mxu0 %v790
  %v2038 = vpop.f32.mrb[0].mxu0
  %v2039 = vadd.f32 %v1942, %v2038
  %v2040 = vpop.f32.mrb[0].mxu0
  %v2041 = vpop.f32.mrb[0].mxu0
  %v2042 = vadd.f32 %v1945, %v2041
  %v2043 = vpop.f32.mrb[0].mxu0
  %2044 = vmatprep.mubr.bf16.mxu0 %v807
  %2045 = vmatmul.mubr.bf16.gmra.mrb[0].mxu0 %v806
  %v2046 = vpop.f32.mrb[0].mxu0
  %v2047 = vadd.f32 %v1950, %v2046
  %v2048 = vpop.f32.mrb[0].mxu0
  %v2049 = vpop.f32.mrb[0].mxu0
  %v2050 = vadd.f32 %v1953, %v2049
  %v2051 = vpop.f32.mrb[0].mxu0
  %2052 = vmatprep.mubr.bf16.mxu0 %v823
  %2053 = vmatmul.mubr.bf16.gmra.mrb[0].mxu0 %v822
  %v2054 = vpop.f32.mrb[0].mxu0
  %v2055 = vadd.f32 %v1958, %v2054
  %v2056 = vpop.f32.mrb[0].mxu0
  %v2057 = vpop.f32.mrb[0].mxu0
  %v2058 = vadd.f32 %v1961, %v2057
  %v2059 = vpop.f32.mrb[0].mxu0
  %2060 = vmatprep.mubr.bf16.mxu0 %v839
  %2061 = vmatmul.mubr.bf16.gmra.mrb[0].mxu0 %v838
  %v2062 = vpop.f32.mrb[0].mxu0
  %v2063 = vadd.f32 %v1966, %v2062
  %v2064 = vpop.f32.mrb[0].mxu0
  %v2065 = vpop.f32.mrb[0].mxu0
  %v2066 = vadd.f32 %v1969, %v2065
  %v2067 = vpop.f32.mrb[0].mxu0
  %2068 = vmatprep.mubr.bf16.mxu0 %v855
  %2069 = vmatmul.mubr.bf16.gmra.mrb[0].mxu0 %v854
  %v2070 = vpop.f32.mrb[0].mxu0
  %v2071 = vadd.f32 %v1974, %v2070
  %v2072 = vpop.f32.mrb[0].mxu0
  %v2073 = vpop.f32.mrb[0].mxu0
  %v2074 = vadd.f32 %v1977, %v2073
  %v2075 = vpop.f32.mrb[0].mxu0
  %2076 = vmatprep.mubr.bf16.mxu0 %v871
  %2077 = vmatmul.mubr.bf16.gmra.mrb[0].mxu0 %v870
  %v2078 = vpop.f32.mrb[0].mxu0
  %v2079 = vadd.f32 %v1982, %v2078
  %v2080 = vpop.f32.mrb[0].mxu0
  %v2081 = vpop.f32.mrb[0].mxu0
  %v2082 = vadd.f32 %v1985, %v2081
  %v2083 = vpop.f32.mrb[0].mxu0
  %2084 = vmatprep.mubr.bf16.mxu0 %v887
  %2085 = vmatmul.mubr.bf16.gmra.mrb[0].mxu0 %v886
  %v2086 = vpop.f32.mrb[0].mxu0
  %v2087 = vadd.f32 %v1990, %v2086
  %v2088 = vpop.f32.mrb[0].mxu0
  %v2089 = vpop.f32.mrb[0].mxu0
  %v2090 = vadd.f32 %v1993, %v2089
  %v2091 = vpop.f32.mrb[0].mxu0
  %2092 = vmatprep.mubr.bf16.mxu0 %v903
  %2093 = vmatmul.mubr.bf16.gmra.mrb[0].mxu0 %v902
  %v2094 = vpop.f32.mrb[0].mxu0
  %v2095 = vadd.f32 %v1998, %v2094
  %v2096 = vpop.f32.mrb[0].mxu0
  %v2097 = vpop.f32.mrb[0].mxu0
  %v2098 = vadd.f32 %v2001, %v2097
  %v2099 = vpop.f32.mrb[0].mxu0
  %2100 = vdwg.mxu0
  %2101 = vmatprep.subr.bf16.mxu0 0
  %2102 = vmatpush1.bf16.msra.mxu0 %v1602
  %2103 = vmatprep.subr.bf16.mxu0 0
  %2104 = vmatpush1.bf16.msra.mxu0 %v1603
  %2105 = vmatprep.subr.bf16.mxu0 0
  %2106 = vmatpush1.bf16.msra.mxu0 %v1604
  %2107 = vmatprep.subr.bf16.mxu0 0
  %2108 = vmatpush1.bf16.msra.mxu0 %v1605
  %2109 = vmatprep.subr.bf16.mxu0 0
  %2110 = vmatpush1.bf16.msra.mxu0 %v1606
  %2111 = vmatprep.subr.bf16.mxu0 0
  %2112 = vmatpush1.bf16.msra.mxu0 %v1607
  %2113 = vmatprep.subr.bf16.mxu0 0
  %2114 = vmatpush1.bf16.msra.mxu0 %v1608
  %2115 = vmatprep.subr.bf16.mxu0 0
  %2116 = vmatpush1.bf16.msra.mxu0 %v1609
  %2117 = vmatprep.subr.bf16.mxu0 0
  %2118 = vmatpush1.bf16.msra.mxu0 %v1610
  %2119 = vmatprep.subr.bf16.mxu0 0
  %2120 = vmatpush1.bf16.msra.mxu0 %v1611
  %2121 = vmatprep.subr.bf16.mxu0 0
  %2122 = vmatpush1.bf16.msra.mxu0 %v1612
  %2123 = vmatprep.subr.bf16.mxu0 0
  %2124 = vmatpush1.bf16.msra.mxu0 %v1613
  %2125 = vmatprep.subr.bf16.mxu0 0
  %2126 = vmatpush1.bf16.msra.mxu0 %v1614
  %2127 = vmatprep.subr.bf16.mxu0 0
  %2128 = vmatpush1.bf16.msra.mxu0 %v1615
  %2129 = vmatprep.subr.bf16.mxu0 0
  %2130 = vmatpush1.bf16.msra.mxu0 %v1616
  %2131 = vmatprep.subr.bf16.mxu0 0
  %2132 = vmatpush1.bf16.msra.mxu0 %v1617
  %2133 = vmatprep.mubr.bf16.mxu0 %v793
  %2134 = vmatmul.mubr.bf16.gmra.mrb[0].mxu0 %v792
  %v2135 = vpop.f32.mrb[0].mxu0
  %v2136 = vadd.f32 %v2039, %v2135
  %v2137 = vpop.f32.mrb[0].mxu0
  %v2138 = vpop.f32.mrb[0].mxu0
  %v2139 = vadd.f32 %v2042, %v2138
  %v2140 = vpop.f32.mrb[0].mxu0
  %2141 = vmatprep.mubr.bf16.mxu0 %v809
  %2142 = vmatmul.mubr.bf16.gmra.mrb[0].mxu0 %v808
  %v2143 = vpop.f32.mrb[0].mxu0
  %v2144 = vadd.f32 %v2047, %v2143
  %v2145 = vpop.f32.mrb[0].mxu0
  %v2146 = vpop.f32.mrb[0].mxu0
  %v2147 = vadd.f32 %v2050, %v2146
  %v2148 = vpop.f32.mrb[0].mxu0
  %2149 = vmatprep.mubr.bf16.mxu0 %v825
  %2150 = vmatmul.mubr.bf16.gmra.mrb[0].mxu0 %v824
  %v2151 = vpop.f32.mrb[0].mxu0
  %v2152 = vadd.f32 %v2055, %v2151
  %v2153 = vpop.f32.mrb[0].mxu0
  %v2154 = vpop.f32.mrb[0].mxu0
  %v2155 = vadd.f32 %v2058, %v2154
  %v2156 = vpop.f32.mrb[0].mxu0
  %2157 = vmatprep.mubr.bf16.mxu0 %v841
  %2158 = vmatmul.mubr.bf16.gmra.mrb[0].mxu0 %v840
  %v2159 = vpop.f32.mrb[0].mxu0
  %v2160 = vadd.f32 %v2063, %v2159
  %v2161 = vpop.f32.mrb[0].mxu0
  %v2162 = vpop.f32.mrb[0].mxu0
  %v2163 = vadd.f32 %v2066, %v2162
  %v2164 = vpop.f32.mrb[0].mxu0
  %2165 = vmatprep.mubr.bf16.mxu0 %v857
  %2166 = vmatmul.mubr.bf16.gmra.mrb[0].mxu0 %v856
  %v2167 = vpop.f32.mrb[0].mxu0
  %v2168 = vadd.f32 %v2071, %v2167
  %v2169 = vpop.f32.mrb[0].mxu0
  %v2170 = vpop.f32.mrb[0].mxu0
  %v2171 = vadd.f32 %v2074, %v2170
  %v2172 = vpop.f32.mrb[0].mxu0
  %2173 = vmatprep.mubr.bf16.mxu0 %v873
  %2174 = vmatmul.mubr.bf16.gmra.mrb[0].mxu0 %v872
  %v2175 = vpop.f32.mrb[0].mxu0
  %v2176 = vadd.f32 %v2079, %v2175
  %v2177 = vpop.f32.mrb[0].mxu0
  %v2178 = vpop.f32.mrb[0].mxu0
  %v2179 = vadd.f32 %v2082, %v2178
  %v2180 = vpop.f32.mrb[0].mxu0
  %2181 = vmatprep.mubr.bf16.mxu0 %v889
  %2182 = vmatmul.mubr.bf16.gmra.mrb[0].mxu0 %v888
  %v2183 = vpop.f32.mrb[0].mxu0
  %v2184 = vadd.f32 %v2087, %v2183
  %v2185 = vpop.f32.mrb[0].mxu0
  %v2186 = vpop.f32.mrb[0].mxu0
  %v2187 = vadd.f32 %v2090, %v2186
  %v2188 = vpop.f32.mrb[0].mxu0
  %2189 = vmatprep.mubr.bf16.mxu0 %v905
  %2190 = vmatmul.mubr.bf16.gmra.mrb[0].mxu0 %v904
  %v2191 = vpop.f32.mrb[0].mxu0
  %v2192 = vadd.f32 %v2095, %v2191
  %v2193 = vpop.f32.mrb[0].mxu0
  %v2194 = vpop.f32.mrb[0].mxu0
  %v2195 = vadd.f32 %v2098, %v2194
  %v2196 = vpop.f32.mrb[0].mxu0
  %2197 = vdwg.mxu0
  %2198 = vmatprep.subr.bf16.mxu0 0
  %2199 = vmatpush1.bf16.msra.mxu0 %v1618
  %2200 = vmatprep.subr.bf16.mxu0 0
  %2201 = vmatpush1.bf16.msra.mxu0 %v1619
  %2202 = vmatprep.subr.bf16.mxu0 0
  %2203 = vmatpush1.bf16.msra.mxu0 %v1620
  %2204 = vmatprep.subr.bf16.mxu0 0
  %2205 = vmatpush1.bf16.msra.mxu0 %v1621
  %2206 = vmatprep.subr.bf16.mxu0 0
  %2207 = vmatpush1.bf16.msra.mxu0 %v1622
  %2208 = vmatprep.subr.bf16.mxu0 0
  %2209 = vmatpush1.bf16.msra.mxu0 %v1623
  %2210 = vmatprep.subr.bf16.mxu0 0
  %2211 = vmatpush1.bf16.msra.mxu0 %v1624
  %2212 = vmatprep.subr.bf16.mxu0 0
  %2213 = vmatpush1.bf16.msra.mxu0 %v1625
  %2214 = vmatprep.subr.bf16.mxu0 0
  %2215 = vmatpush1.bf16.msra.mxu0 %v1626
  %2216 = vmatprep.subr.bf16.mxu0 0
  %2217 = vmatpush1.bf16.msra.mxu0 %v1627
  %2218 = vmatprep.subr.bf16.mxu0 0
  %2219 = vmatpush1.bf16.msra.mxu0 %v1628
  %2220 = vmatprep.subr.bf16.mxu0 0
  %2221 = vmatpush1.bf16.msra.mxu0 %v1629
  %2222 = vmatprep.subr.bf16.mxu0 0
  %2223 = vmatpush1.bf16.msra.mxu0 %v1630
  %2224 = vmatprep.subr.bf16.mxu0 0
  %2225 = vmatpush1.bf16.msra.mxu0 %v1631
  %2226 = vmatprep.subr.bf16.mxu0 0
  %2227 = vmatpush1.bf16.msra.mxu0 %v1632
  %2228 = vmatprep.subr.bf16.mxu0 0
  %2229 = vmatpush1.bf16.msra.mxu0 %v1633
  %2230 = vmatprep.mubr.bf16.mxu0 %v795
  %2231 = vmatmul.mubr.bf16.gmra.mrb[0].mxu0 %v794
  %v2232 = vpop.f32.mrb[0].mxu0
  %v2233 = vadd.f32 %v2136, %v2232
  %v2234 = vpop.f32.mrb[0].mxu0
  %v2235 = vpop.f32.mrb[0].mxu0
  %v2236 = vadd.f32 %v2139, %v2235
  %v2237 = vpop.f32.mrb[0].mxu0
  %2238 = vmatprep.mubr.bf16.mxu0 %v811
  %2239 = vmatmul.mubr.bf16.gmra.mrb[0].mxu0 %v810
  %v2240 = vpop.f32.mrb[0].mxu0
  %v2241 = vadd.f32 %v2144, %v2240
  %v2242 = vpop.f32.mrb[0].mxu0
  %v2243 = vpop.f32.mrb[0].mxu0
  %v2244 = vadd.f32 %v2147, %v2243
  %v2245 = vpop.f32.mrb[0].mxu0
  %2246 = vmatprep.mubr.bf16.mxu0 %v827
  %2247 = vmatmul.mubr.bf16.gmra.mrb[0].mxu0 %v826
  %v2248 = vpop.f32.mrb[0].mxu0
  %v2249 = vadd.f32 %v2152, %v2248
  %v2250 = vpop.f32.mrb[0].mxu0
  %v2251 = vpop.f32.mrb[0].mxu0
  %v2252 = vadd.f32 %v2155, %v2251
  %v2253 = vpop.f32.mrb[0].mxu0
  %2254 = vmatprep.mubr.bf16.mxu0 %v843
  %2255 = vmatmul.mubr.bf16.gmra.mrb[0].mxu0 %v842
  %v2256 = vpop.f32.mrb[0].mxu0
  %v2257 = vadd.f32 %v2160, %v2256
  %v2258 = vpop.f32.mrb[0].mxu0
  %v2259 = vpop.f32.mrb[0].mxu0
  %v2260 = vadd.f32 %v2163, %v2259
  %v2261 = vpop.f32.mrb[0].mxu0
  %2262 = vmatprep.mubr.bf16.mxu0 %v859
  %2263 = vmatmul.mubr.bf16.gmra.mrb[0].mxu0 %v858
  %v2264 = vpop.f32.mrb[0].mxu0
  %v2265 = vadd.f32 %v2168, %v2264
  %v2266 = vpop.f32.mrb[0].mxu0
  %v2267 = vpop.f32.mrb[0].mxu0
  %v2268 = vadd.f32 %v2171, %v2267
  %v2269 = vpop.f32.mrb[0].mxu0
  %2270 = vmatprep.mubr.bf16.mxu0 %v875
  %2271 = vmatmul.mubr.bf16.gmra.mrb[0].mxu0 %v874
  %v2272 = vpop.f32.mrb[0].mxu0
  %v2273 = vadd.f32 %v2176, %v2272
  %v2274 = vpop.f32.mrb[0].mxu0
  %v2275 = vpop.f32.mrb[0].mxu0
  %v2276 = vadd.f32 %v2179, %v2275
  %v2277 = vpop.f32.mrb[0].mxu0
  %2278 = vmatprep.mubr.bf16.mxu0 %v891
  %2279 = vmatmul.mubr.bf16.gmra.mrb[0].mxu0 %v890
  %v2280 = vpop.f32.mrb[0].mxu0
  %v2281 = vadd.f32 %v2184, %v2280
  %v2282 = vpop.f32.mrb[0].mxu0
  %v2283 = vpop.f32.mrb[0].mxu0
  %v2284 = vadd.f32 %v2187, %v2283
  %v2285 = vpop.f32.mrb[0].mxu0
  %2286 = vmatprep.mubr.bf16.mxu0 %v907
  %2287 = vmatmul.mubr.bf16.gmra.mrb[0].mxu0 %v906
  %v2288 = vpop.f32.mrb[0].mxu0
  %v2289 = vadd.f32 %v2192, %v2288
  %v2290 = vpop.f32.mrb[0].mxu0
  %v2291 = vpop.f32.mrb[0].mxu0
  %v2292 = vadd.f32 %v2195, %v2291
  %v2293 = vpop.f32.mrb[0].mxu0
  %2294 = vdwg.mxu0
  %2295 = vmatprep.subr.bf16.mxu0 0
  %2296 = vmatpush1.bf16.msra.mxu0 %v1634
  %2297 = vmatprep.subr.bf16.mxu0 0
  %2298 = vmatpush1.bf16.msra.mxu0 %v1635
  %2299 = vmatprep.subr.bf16.mxu0 0
  %2300 = vmatpush1.bf16.msra.mxu0 %v1636
  %2301 = vmatprep.subr.bf16.mxu0 0
  %2302 = vmatpush1.bf16.msra.mxu0 %v1637
  %2303 = vmatprep.subr.bf16.mxu0 0
  %2304 = vmatpush1.bf16.msra.mxu0 %v1638
  %2305 = vmatprep.subr.bf16.mxu0 0
  %2306 = vmatpush1.bf16.msra.mxu0 %v1639
  %2307 = vmatprep.subr.bf16.mxu0 0
  %2308 = vmatpush1.bf16.msra.mxu0 %v1640
  %2309 = vmatprep.subr.bf16.mxu0 0
  %2310 = vmatpush1.bf16.msra.mxu0 %v1641
  %2311 = vmatprep.subr.bf16.mxu0 0
  %2312 = vmatpush1.bf16.msra.mxu0 %v1642
  %2313 = vmatprep.subr.bf16.mxu0 0
  %2314 = vmatpush1.bf16.msra.mxu0 %v1643
  %2315 = vmatprep.subr.bf16.mxu0 0
  %2316 = vmatpush1.bf16.msra.mxu0 %v1644
  %2317 = vmatprep.subr.bf16.mxu0 0
  %2318 = vmatpush1.bf16.msra.mxu0 %v1645
  %2319 = vmatprep.subr.bf16.mxu0 0
  %2320 = vmatpush1.bf16.msra.mxu0 %v1646
  %2321 = vmatprep.subr.bf16.mxu0 0
  %2322 = vmatpush1.bf16.msra.mxu0 %v1647
  %2323 = vmatprep.subr.bf16.mxu0 0
  %2324 = vmatpush1.bf16.msra.mxu0 %v1648
  %2325 = vmatprep.subr.bf16.mxu0 0
  %2326 = vmatpush1.bf16.msra.mxu0 %v1649
  %2327 = vmatprep.mubr.bf16.mxu0 %v797
  %2328 = vmatmul.mubr.bf16.gmra.mrb[0].mxu0 %v796
  %v2329 = vpop.f32.mrb[0].mxu0
  %v2330 = vadd.f32 %v2233, %v2329
  %v2331 = vpop.f32.mrb[0].mxu0
  %v2332 = vpop.f32.mrb[0].mxu0
  %v2333 = vadd.f32 %v2236, %v2332
  %v2334 = vpop.f32.mrb[0].mxu0
  %2335 = vmatprep.mubr.bf16.mxu0 %v813
  %2336 = vmatmul.mubr.bf16.gmra.mrb[0].mxu0 %v812
  %v2337 = vpop.f32.mrb[0].mxu0
  %v2338 = vadd.f32 %v2241, %v2337
  %v2339 = vpop.f32.mrb[0].mxu0
  %v2340 = vpop.f32.mrb[0].mxu0
  %v2341 = vadd.f32 %v2244, %v2340
  %v2342 = vpop.f32.mrb[0].mxu0
  %2343 = vmatprep.mubr.bf16.mxu0 %v829
  %2344 = vmatmul.mubr.bf16.gmra.mrb[0].mxu0 %v828
  %v2345 = vpop.f32.mrb[0].mxu0
  %v2346 = vadd.f32 %v2249, %v2345
  %v2347 = vpop.f32.mrb[0].mxu0
  %v2348 = vpop.f32.mrb[0].mxu0
  %v2349 = vadd.f32 %v2252, %v2348
  %v2350 = vpop.f32.mrb[0].mxu0
  %2351 = vmatprep.mubr.bf16.mxu0 %v845
  %2352 = vmatmul.mubr.bf16.gmra.mrb[0].mxu0 %v844
  %v2353 = vpop.f32.mrb[0].mxu0
  %v2354 = vadd.f32 %v2257, %v2353
  %v2355 = vpop.f32.mrb[0].mxu0
  %v2356 = vpop.f32.mrb[0].mxu0
  %v2357 = vadd.f32 %v2260, %v2356
  %v2358 = vpop.f32.mrb[0].mxu0
  %2359 = vmatprep.mubr.bf16.mxu0 %v861
  %2360 = vmatmul.mubr.bf16.gmra.mrb[0].mxu0 %v860
  %v2361 = vpop.f32.mrb[0].mxu0
  %v2362 = vadd.f32 %v2265, %v2361
  %v2363 = vpop.f32.mrb[0].mxu0
  %v2364 = vpop.f32.mrb[0].mxu0
  %v2365 = vadd.f32 %v2268, %v2364
  %v2366 = vpop.f32.mrb[0].mxu0
  %2367 = vmatprep.mubr.bf16.mxu0 %v877
  %2368 = vmatmul.mubr.bf16.gmra.mrb[0].mxu0 %v876
  %v2369 = vpop.f32.mrb[0].mxu0
  %v2370 = vadd.f32 %v2273, %v2369
  %v2371 = vpop.f32.mrb[0].mxu0
  %v2372 = vpop.f32.mrb[0].mxu0
  %v2373 = vadd.f32 %v2276, %v2372
  %v2374 = vpop.f32.mrb[0].mxu0
  %2375 = vmatprep.mubr.bf16.mxu0 %v893
  %2376 = vmatmul.mubr.bf16.gmra.mrb[0].mxu0 %v892
  %v2377 = vpop.f32.mrb[0].mxu0
  %v2378 = vadd.f32 %v2281, %v2377
  %v2379 = vpop.f32.mrb[0].mxu0
  %v2380 = vpop.f32.mrb[0].mxu0
  %v2381 = vadd.f32 %v2284, %v2380
  %v2382 = vpop.f32.mrb[0].mxu0
  %2383 = vmatprep.mubr.bf16.mxu0 %v909
  %2384 = vmatmul.mubr.bf16.gmra.mrb[0].mxu0 %v908
  %v2385 = vpop.f32.mrb[0].mxu0
  %v2386 = vadd.f32 %v2289, %v2385
  %v2387 = vpop.f32.mrb[0].mxu0
  %v2388 = vpop.f32.mrb[0].mxu0
  %v2389 = vadd.f32 %v2292, %v2388
  %v2390 = vpop.f32.mrb[0].mxu0
  %2391 = vdwg.mxu0
  %2392 = vmatprep.subr.bf16.mxu0 0
  %2393 = vmatpush1.bf16.msra.mxu0 %v1650
  %2394 = vmatprep.subr.bf16.mxu0 0
  %2395 = vmatpush1.bf16.msra.mxu0 %v1651
  %2396 = vmatprep.subr.bf16.mxu0 0
  %2397 = vmatpush1.bf16.msra.mxu0 %v1652
  %2398 = vmatprep.subr.bf16.mxu0 0
  %2399 = vmatpush1.bf16.msra.mxu0 %v1653
  %2400 = vmatprep.subr.bf16.mxu0 0
  %2401 = vmatpush1.bf16.msra.mxu0 %v1654
  %2402 = vmatprep.subr.bf16.mxu0 0
  %2403 = vmatpush1.bf16.msra.mxu0 %v1655
  %2404 = vmatprep.subr.bf16.mxu0 0
  %2405 = vmatpush1.bf16.msra.mxu0 %v1656
  %2406 = vmatprep.subr.bf16.mxu0 0
  %2407 = vmatpush1.bf16.msra.mxu0 %v1657
  %2408 = vmatprep.subr.bf16.mxu0 0
  %2409 = vmatpush1.bf16.msra.mxu0 %v1658
  %2410 = vmatprep.subr.bf16.mxu0 0
  %2411 = vmatpush1.bf16.msra.mxu0 %v1659
  %2412 = vmatprep.subr.bf16.mxu0 0
  %2413 = vmatpush1.bf16.msra.mxu0 %v1660
  %2414 = vmatprep.subr.bf16.mxu0 0
  %2415 = vmatpush1.bf16.msra.mxu0 %v1661
  %2416 = vmatprep.subr.bf16.mxu0 0
  %2417 = vmatpush1.bf16.msra.mxu0 %v1662
  %2418 = vmatprep.subr.bf16.mxu0 0
  %2419 = vmatpush1.bf16.msra.mxu0 %v1663
  %2420 = vmatprep.subr.bf16.mxu0 0
  %2421 = vmatpush1.bf16.msra.mxu0 %v1664
  %2422 = vmatprep.subr.bf16.mxu0 0
  %2423 = vmatpush1.bf16.msra.mxu0 %v1665
  %2424 = vmatprep.mubr.bf16.mxu0 %v799
  %2425 = vmatmul.mubr.bf16.gmra.mrb[0].mxu0 %v798
  %v2426 = vpop.f32.mrb[0].mxu0
  %v2427 = vadd.f32 %v2330, %v2426
  %v2428 = vpop.f32.mrb[0].mxu0
  %v2429 = vpop.f32.mrb[0].mxu0
  %v2430 = vadd.f32 %v2333, %v2429
  %v2431 = vpop.f32.mrb[0].mxu0
  %2432 = vmatprep.mubr.bf16.mxu0 %v815
  %2433 = vmatmul.mubr.bf16.gmra.mrb[0].mxu0 %v814
  %v2434 = vpop.f32.mrb[0].mxu0
  %v2435 = vadd.f32 %v2338, %v2434
  %v2436 = vpop.f32.mrb[0].mxu0
  %v2437 = vpop.f32.mrb[0].mxu0
  %v2438 = vadd.f32 %v2341, %v2437
  %v2439 = vpop.f32.mrb[0].mxu0
  %2440 = vmatprep.mubr.bf16.mxu0 %v831
  %2441 = vmatmul.mubr.bf16.gmra.mrb[0].mxu0 %v830
  %v2442 = vpop.f32.mrb[0].mxu0
  %v2443 = vadd.f32 %v2346, %v2442
  %v2444 = vpop.f32.mrb[0].mxu0
  %v2445 = vpop.f32.mrb[0].mxu0
  %v2446 = vadd.f32 %v2349, %v2445
  %v2447 = vpop.f32.mrb[0].mxu0
  %2448 = vmatprep.mubr.bf16.mxu0 %v847
  %2449 = vmatmul.mubr.bf16.gmra.mrb[0].mxu0 %v846
  %v2450 = vpop.f32.mrb[0].mxu0
  %v2451 = vadd.f32 %v2354, %v2450
  %v2452 = vpop.f32.mrb[0].mxu0
  %v2453 = vpop.f32.mrb[0].mxu0
  %v2454 = vadd.f32 %v2357, %v2453
  %v2455 = vpop.f32.mrb[0].mxu0
  %2456 = vmatprep.mubr.bf16.mxu0 %v863
  %2457 = vmatmul.mubr.bf16.gmra.mrb[0].mxu0 %v862
  %v2458 = vpop.f32.mrb[0].mxu0
  %v2459 = vadd.f32 %v2362, %v2458
  %v2460 = vpop.f32.mrb[0].mxu0
  %v2461 = vpop.f32.mrb[0].mxu0
  %v2462 = vadd.f32 %v2365, %v2461
  %v2463 = vpop.f32.mrb[0].mxu0
  %2464 = vmatprep.mubr.bf16.mxu0 %v879
  %2465 = vmatmul.mubr.bf16.gmra.mrb[0].mxu0 %v878
  %v2466 = vpop.f32.mrb[0].mxu0
  %v2467 = vadd.f32 %v2370, %v2466
  %v2468 = vpop.f32.mrb[0].mxu0
  %v2469 = vpop.f32.mrb[0].mxu0
  %v2470 = vadd.f32 %v2373, %v2469
  %v2471 = vpop.f32.mrb[0].mxu0
  %2472 = vmatprep.mubr.bf16.mxu0 %v895
  %2473 = vmatmul.mubr.bf16.gmra.mrb[0].mxu0 %v894
  %v2474 = vpop.f32.mrb[0].mxu0
  %v2475 = vadd.f32 %v2378, %v2474
  %v2476 = vpop.f32.mrb[0].mxu0
  %v2477 = vpop.f32.mrb[0].mxu0
  %v2478 = vadd.f32 %v2381, %v2477
  %v2479 = vpop.f32.mrb[0].mxu0
  %2480 = vmatprep.mubr.bf16.mxu0 %v911
  %2481 = vmatmul.mubr.bf16.gmra.mrb[0].mxu0 %v910
  %v2482 = vpop.f32.mrb[0].mxu0
  %v2483 = vadd.f32 %v2386, %v2482
  %v2484 = vpop.f32.mrb[0].mxu0
  %v2485 = vpop.f32.mrb[0].mxu0
  %v2486 = vadd.f32 %v2389, %v2485
  %v2487 = vpop.f32.mrb[0].mxu0
  %2488 = vdwg.mxu0
  %2489 = vmatprep.subr.bf16.mxu0 0
  %2490 = vmatpush1.bf16.msra.mxu0 %v1666
  %2491 = vmatprep.subr.bf16.mxu0 0
  %2492 = vmatpush1.bf16.msra.mxu0 %v1667
  %2493 = vmatprep.subr.bf16.mxu0 0
  %2494 = vmatpush1.bf16.msra.mxu0 %v1668
  %2495 = vmatprep.subr.bf16.mxu0 0
  %2496 = vmatpush1.bf16.msra.mxu0 %v1669
  %2497 = vmatprep.subr.bf16.mxu0 0
  %2498 = vmatpush1.bf16.msra.mxu0 %v1670
  %2499 = vmatprep.subr.bf16.mxu0 0
  %2500 = vmatpush1.bf16.msra.mxu0 %v1671
  %2501 = vmatprep.subr.bf16.mxu0 0
  %2502 = vmatpush1.bf16.msra.mxu0 %v1672
  %2503 = vmatprep.subr.bf16.mxu0 0
  %2504 = vmatpush1.bf16.msra.mxu0 %v1673
  %2505 = vmatprep.subr.bf16.mxu0 0
  %2506 = vmatpush1.bf16.msra.mxu0 %v1674
  %2507 = vmatprep.subr.bf16.mxu0 0
  %2508 = vmatpush1.bf16.msra.mxu0 %v1675
  %2509 = vmatprep.subr.bf16.mxu0 0
  %2510 = vmatpush1.bf16.msra.mxu0 %v1676
  %2511 = vmatprep.subr.bf16.mxu0 0
  %2512 = vmatpush1.bf16.msra.mxu0 %v1677
  %2513 = vmatprep.subr.bf16.mxu0 0
  %2514 = vmatpush1.bf16.msra.mxu0 %v1678
  %2515 = vmatprep.subr.bf16.mxu0 0
  %2516 = vmatpush1.bf16.msra.mxu0 %v1679
  %2517 = vmatprep.subr.bf16.mxu0 0
  %2518 = vmatpush1.bf16.msra.mxu0 %v1680
  %2519 = vmatprep.subr.bf16.mxu0 0
  %2520 = vmatpush1.bf16.msra.mxu0 %v1681
  %2521 = vmatprep.mubr.bf16.mxu0 %v801
  %2522 = vmatmul.mubr.bf16.gmra.mrb[0].mxu0 %v800
  %v2523 = vpop.f32.mrb[0].mxu0
  %v2524 = vadd.f32 %v2427, %v2523
  %v2525 = vpop.f32.mrb[0].mxu0
  %v2526 = vpop.f32.mrb[0].mxu0
  %v2527 = vadd.f32 %v2430, %v2526
  %v2528 = vpop.f32.mrb[0].mxu0
  %2529 = vmatprep.mubr.bf16.mxu0 %v817
  %2530 = vmatmul.mubr.bf16.gmra.mrb[0].mxu0 %v816
  %v2531 = vpop.f32.mrb[0].mxu0
  %v2532 = vadd.f32 %v2435, %v2531
  %v2533 = vpop.f32.mrb[0].mxu0
  %v2534 = vpop.f32.mrb[0].mxu0
  %v2535 = vadd.f32 %v2438, %v2534
  %v2536 = vpop.f32.mrb[0].mxu0
  %2537 = vmatprep.mubr.bf16.mxu0 %v833
  %2538 = vmatmul.mubr.bf16.gmra.mrb[0].mxu0 %v832
  %v2539 = vpop.f32.mrb[0].mxu0
  %v2540 = vadd.f32 %v2443, %v2539
  %v2541 = vpop.f32.mrb[0].mxu0
  %v2542 = vpop.f32.mrb[0].mxu0
  %v2543 = vadd.f32 %v2446, %v2542
  %v2544 = vpop.f32.mrb[0].mxu0
  %2545 = vmatprep.mubr.bf16.mxu0 %v849
  %2546 = vmatmul.mubr.bf16.gmra.mrb[0].mxu0 %v848
  %v2547 = vpop.f32.mrb[0].mxu0
  %v2548 = vadd.f32 %v2451, %v2547
  %v2549 = vpop.f32.mrb[0].mxu0
  %v2550 = vpop.f32.mrb[0].mxu0
  %v2551 = vadd.f32 %v2454, %v2550
  %v2552 = vpop.f32.mrb[0].mxu0
  %2553 = vmatprep.mubr.bf16.mxu0 %v865
  %2554 = vmatmul.mubr.bf16.gmra.mrb[0].mxu0 %v864
  %v2555 = vpop.f32.mrb[0].mxu0
  %v2556 = vadd.f32 %v2459, %v2555
  %v2557 = vpop.f32.mrb[0].mxu0
  %v2558 = vpop.f32.mrb[0].mxu0
  %v2559 = vadd.f32 %v2462, %v2558
  %v2560 = vpop.f32.mrb[0].mxu0
  %2561 = vmatprep.mubr.bf16.mxu0 %v881
  %2562 = vmatmul.mubr.bf16.gmra.mrb[0].mxu0 %v880
  %v2563 = vpop.f32.mrb[0].mxu0
  %v2564 = vadd.f32 %v2467, %v2563
  %v2565 = vpop.f32.mrb[0].mxu0
  %v2566 = vpop.f32.mrb[0].mxu0
  %v2567 = vadd.f32 %v2470, %v2566
  %v2568 = vpop.f32.mrb[0].mxu0
  %2569 = vmatprep.mubr.bf16.mxu0 %v897
  %2570 = vmatmul.mubr.bf16.gmra.mrb[0].mxu0 %v896
  %v2571 = vpop.f32.mrb[0].mxu0
  %v2572 = vadd.f32 %v2475, %v2571
  %v2573 = vpop.f32.mrb[0].mxu0
  %v2574 = vpop.f32.mrb[0].mxu0
  %v2575 = vadd.f32 %v2478, %v2574
  %v2576 = vpop.f32.mrb[0].mxu0
  %2577 = vmatprep.mubr.bf16.mxu0 %v913
  %2578 = vmatmul.mubr.bf16.gmra.mrb[0].mxu0 %v912
  %v2579 = vpop.f32.mrb[0].mxu0
  %v2580 = vadd.f32 %v2483, %v2579
  %v2581 = vpop.f32.mrb[0].mxu0
  %v2582 = vpop.f32.mrb[0].mxu0
  %v2583 = vadd.f32 %v2486, %v2582
  %v2584 = vpop.f32.mrb[0].mxu0
  %2585 = vdwg.mxu0
  %v2586 = vadd.f32 %v2524, %v2527
  %v2587 = vadd.f32 %v2586, %v2532
  %v2588 = vadd.f32 %v2587, %v2535
  %v2589 = vadd.f32 %v2588, %v2540
  %v2590 = vadd.f32 %v2589, %v2543
  %v2591 = vadd.f32 %v2590, %v2548
  %v2592 = vadd.f32 %v2591, %v2551
  %v2593 = vadd.f32 %v2592, %v2556
  %v2594 = vadd.f32 %v2593, %v2559
  %v2595 = vadd.f32 %v2594, %v2564
  %v2596 = vadd.f32 %v2595, %v2567
  %v2597 = vadd.f32 %v2596, %v2572
  %v2598 = vadd.f32 %v2597, %v2575
  %v2599 = vadd.f32 %v2598, %v2580
  %v2600 = vadd.f32 %v2599, %v2583
  %v2601 = vrot.slane %v2600, 4
  %v2602 = vadd.f32 %v2600, %v2601
  %v2603 = vrot.slane %v2602, 2
  %v2604 = vadd.f32 %v2602, %v2603
  %v2605 = vrot.slane %v2604, 1
  %v2606 = vadd.f32 %v2604, %v2605
  %v2607 = vrcp.pop 128.0
  %v2608 = vmul.f32 %v2606, %v2607
  %v2609 = vsub.f32 %v2524, %v2608
  %v2610 = vsub.f32 %v2527, %v2608
  %v2611 = vsub.f32 %v2532, %v2608
  %v2612 = vsub.f32 %v2535, %v2608
  %v2613 = vsub.f32 %v2540, %v2608
  %v2614 = vsub.f32 %v2543, %v2608
  %v2615 = vsub.f32 %v2548, %v2608
  %v2616 = vsub.f32 %v2551, %v2608
  %v2617 = vsub.f32 %v2556, %v2608
  %v2618 = vsub.f32 %v2559, %v2608
  %v2619 = vsub.f32 %v2564, %v2608
  %v2620 = vsub.f32 %v2567, %v2608
  %v2621 = vsub.f32 %v2572, %v2608
  %v2622 = vsub.f32 %v2575, %v2608
  %v2623 = vsub.f32 %v2580, %v2608
  %v2624 = vsub.f32 %v2583, %v2608
  %v2625 = vmul.f32 %v2609, %v2609
  %v2626 = vmul.f32 %v2610, %v2610
  %v2627 = vmul.f32 %v2611, %v2611
  %v2628 = vmul.f32 %v2612, %v2612
  %v2629 = vmul.f32 %v2613, %v2613
  %v2630 = vmul.f32 %v2614, %v2614
  %v2631 = vmul.f32 %v2615, %v2615
  %v2632 = vmul.f32 %v2616, %v2616
  %v2633 = vmul.f32 %v2617, %v2617
  %v2634 = vmul.f32 %v2618, %v2618
  %v2635 = vmul.f32 %v2619, %v2619
  %v2636 = vmul.f32 %v2620, %v2620
  %v2637 = vmul.f32 %v2621, %v2621
  %v2638 = vmul.f32 %v2622, %v2622
  %v2639 = vmul.f32 %v2623, %v2623
  %v2640 = vmul.f32 %v2624, %v2624
  %v2641 = vadd.f32 %v2625, %v2626
  %v2642 = vadd.f32 %v2641, %v2627
  %v2643 = vadd.f32 %v2642, %v2628
  %v2644 = vadd.f32 %v2643, %v2629
  %v2645 = vadd.f32 %v2644, %v2630
  %v2646 = vadd.f32 %v2645, %v2631
  %v2647 = vadd.f32 %v2646, %v2632
  %v2648 = vadd.f32 %v2647, %v2633
  %v2649 = vadd.f32 %v2648, %v2634
  %v2650 = vadd.f32 %v2649, %v2635
  %v2651 = vadd.f32 %v2650, %v2636
  %v2652 = vadd.f32 %v2651, %v2637
  %v2653 = vadd.f32 %v2652, %v2638
  %v2654 = vadd.f32 %v2653, %v2639
  %v2655 = vadd.f32 %v2654, %v2640
  %v2656 = vrot.slane %v2655, 4
  %v2657 = vadd.f32 %v2655, %v2656
  %v2658 = vrot.slane %v2657, 2
  %v2659 = vadd.f32 %v2657, %v2658
  %v2660 = vrot.slane %v2659, 1
  %v2661 = vadd.f32 %v2659, %v2660
  %v2662 = vmul.f32 %v2661, %v2607
  %v2663 = vadd.f32 %v2662, 1e-05
  %v2664 = vrsqrt.pop %v2663
  %v2665 = vmul.f32 %v2609, %v2664
  %v2666 = vmul.f32 %v2610, %v2664
  %v2667 = vmul.f32 %v2611, %v2664
  %v2668 = vmul.f32 %v2612, %v2664
  %v2669 = vmul.f32 %v2613, %v2664
  %v2670 = vmul.f32 %v2614, %v2664
  %v2671 = vmul.f32 %v2615, %v2664
  %v2672 = vmul.f32 %v2616, %v2664
  %v2673 = vmul.f32 %v2617, %v2664
  %v2674 = vmul.f32 %v2618, %v2664
  %v2675 = vmul.f32 %v2619, %v2664
  %v2676 = vmul.f32 %v2620, %v2664
  %v2677 = vmul.f32 %v2621, %v2664
  %v2678 = vmul.f32 %v2622, %v2664
  %v2679 = vmul.f32 %v2623, %v2664
  %v2680 = vmul.f32 %v2624, %v2664
  %v2681 = vld [vmem:[%s2] sm:$0x1]
  %v2683 = vlaneseq
  %v2684 = vshrl.u32 %v2683, 7
  %v2685 = vsub.s32 0, %v2684
  %v2686 = vrot.slane %v2681, %v2685
  %v2688 = vmul.f32 %v2665, %v2686
  %v2689 = vmul.f32 %v2666, %v2686
  %v2690 = vmul.f32 %v2667, %v2686
  %v2691 = vmul.f32 %v2668, %v2686
  %v2692 = vmul.f32 %v2669, %v2686
  %v2693 = vmul.f32 %v2670, %v2686
  %v2694 = vmul.f32 %v2671, %v2686
  %v2695 = vmul.f32 %v2672, %v2686
  %v2696 = vmul.f32 %v2673, %v2686
  %v2697 = vmul.f32 %v2674, %v2686
  %v2698 = vmul.f32 %v2675, %v2686
  %v2699 = vmul.f32 %v2676, %v2686
  %v2700 = vmul.f32 %v2677, %v2686
  %v2701 = vmul.f32 %v2678, %v2686
  %v2702 = vmul.f32 %v2679, %v2686
  %v2703 = vmul.f32 %v2680, %v2686
  %v2704 = vld [vmem:[%s3] sm:$0x1]
  %v2706 = vlaneseq
  %v2707 = vshrl.u32 %v2706, 7
  %v2708 = vsub.s32 0, %v2707
  %v2709 = vrot.slane %v2704, %v2708
  %v2711 = vadd.f32 %v2688, %v2709
  %v2712 = vadd.f32 %v2689, %v2709
  %v2713 = vadd.f32 %v2690, %v2709
  %v2714 = vadd.f32 %v2691, %v2709
  %v2715 = vadd.f32 %v2692, %v2709
  %v2716 = vadd.f32 %v2693, %v2709
  %v2717 = vadd.f32 %v2694, %v2709
  %v2718 = vadd.f32 %v2695, %v2709
  %v2719 = vadd.f32 %v2696, %v2709
  %v2720 = vadd.f32 %v2697, %v2709
  %v2721 = vadd.f32 %v2698, %v2709
  %v2722 = vadd.f32 %v2699, %v2709
  %v2723 = vadd.f32 %v2700, %v2709
  %v2724 = vadd.f32 %v2701, %v2709
  %v2725 = vadd.f32 %v2702, %v2709
  %v2726 = vadd.f32 %v2703, %v2709
  %vm2727 = vcmp.ge.f32.partialorder %v2711, 0.0
  %vm2728 = vcmp.ge.f32.partialorder %v2712, 0.0
  %vm2729 = vcmp.ge.f32.partialorder %v2713, 0.0
  %vm2730 = vcmp.ge.f32.partialorder %v2714, 0.0
  %vm2731 = vcmp.ge.f32.partialorder %v2715, 0.0
  %vm2732 = vcmp.ge.f32.partialorder %v2716, 0.0
  %vm2733 = vcmp.ge.f32.partialorder %v2717, 0.0
  %vm2734 = vcmp.ge.f32.partialorder %v2718, 0.0
  %vm2735 = vcmp.ge.f32.partialorder %v2719, 0.0
  %vm2736 = vcmp.ge.f32.partialorder %v2720, 0.0
  %vm2737 = vcmp.ge.f32.partialorder %v2721, 0.0
  %vm2738 = vcmp.ge.f32.partialorder %v2722, 0.0
  %vm2739 = vcmp.ge.f32.partialorder %v2723, 0.0
  %vm2740 = vcmp.ge.f32.partialorder %v2724, 0.0
  %vm2741 = vcmp.ge.f32.partialorder %v2725, 0.0
  %vm2742 = vcmp.ge.f32.partialorder %v2726, 0.0
  %v2743 = vmul.f32 %v2711, 0.2
  %v2744 = vmul.f32 %v2712, 0.2
  %v2745 = vmul.f32 %v2713, 0.2
  %v2746 = vmul.f32 %v2714, 0.2
  %v2747 = vmul.f32 %v2715, 0.2
  %v2748 = vmul.f32 %v2716, 0.2
  %v2749 = vmul.f32 %v2717, 0.2
  %v2750 = vmul.f32 %v2718, 0.2
  %v2751 = vmul.f32 %v2719, 0.2
  %v2752 = vmul.f32 %v2720, 0.2
  %v2753 = vmul.f32 %v2721, 0.2
  %v2754 = vmul.f32 %v2722, 0.2
  %v2755 = vmul.f32 %v2723, 0.2
  %v2756 = vmul.f32 %v2724, 0.2
  %v2757 = vmul.f32 %v2725, 0.2
  %v2758 = vmul.f32 %v2726, 0.2
  %v2759 = vsel %vm2727, %v2711, %v2743
  %v2760 = vsel %vm2728, %v2712, %v2744
  %v2761 = vsel %vm2729, %v2713, %v2745
  %v2762 = vsel %vm2730, %v2714, %v2746
  %v2763 = vsel %vm2731, %v2715, %v2747
  %v2764 = vsel %vm2732, %v2716, %v2748
  %v2765 = vsel %vm2733, %v2717, %v2749
  %v2766 = vsel %vm2734, %v2718, %v2750
  %v2767 = vsel %vm2735, %v2719, %v2751
  %v2768 = vsel %vm2736, %v2720, %v2752
  %v2769 = vsel %vm2737, %v2721, %v2753
  %v2770 = vsel %vm2738, %v2722, %v2754
  %v2771 = vsel %vm2739, %v2723, %v2755
  %v2772 = vsel %vm2740, %v2724, %v2756
  %v2773 = vsel %vm2741, %v2725, %v2757
  %v2774 = vsel %vm2742, %v2726, %v2758
  %v2775 = vpack.c.bf16 %v2760, %v2759
  %v2776 = vpack.c.bf16 %v2762, %v2761
  %v2777 = vpack.c.bf16 %v2764, %v2763
  %v2778 = vpack.c.bf16 %v2766, %v2765
  %v2779 = vpack.c.bf16 %v2768, %v2767
  %v2780 = vpack.c.bf16 %v2770, %v2769
  %v2781 = vpack.c.bf16 %v2772, %v2771
  %v2782 = vpack.c.bf16 %v2774, %v2773
  %v2791 = vunpack.c.l.b16 %v2775
  %v2792 = vunpack.c.h.b16 %v2775
  %v2793 = vunpack.c.l.b16 %v2776
  %v2794 = vunpack.c.h.b16 %v2776
  %v2795 = vunpack.c.l.b16 %v2777
  %v2796 = vunpack.c.h.b16 %v2777
  %v2797 = vunpack.c.l.b16 %v2778
  %v2798 = vunpack.c.h.b16 %v2778
  %v2799 = vunpack.c.l.b16 %v2779
  %v2800 = vunpack.c.h.b16 %v2779
  %v2801 = vunpack.c.l.b16 %v2780
  %v2802 = vunpack.c.h.b16 %v2780
  %v2803 = vunpack.c.l.b16 %v2781
  %v2804 = vunpack.c.h.b16 %v2781
  %v2805 = vunpack.c.l.b16 %v2782
  %v2806 = vunpack.c.h.b16 %v2782
  %v2807 = vpack.c.b16 %v2791, %v2791
  %v2808 = vpack.c.b16 %v2792, %v2792
  %v2809 = vpack.c.b16 %v2793, %v2793
  %v2810 = vpack.c.b16 %v2794, %v2794
  %v2811 = vpack.c.b16 %v2795, %v2795
  %v2812 = vpack.c.b16 %v2796, %v2796
  %v2813 = vpack.c.b16 %v2797, %v2797
  %v2814 = vpack.c.b16 %v2798, %v2798
  %v2815 = vpack.c.b16 %v2799, %v2799
  %v2816 = vpack.c.b16 %v2800, %v2800
  %v2817 = vpack.c.b16 %v2801, %v2801
  %v2818 = vpack.c.b16 %v2802, %v2802
  %v2819 = vpack.c.b16 %v2803, %v2803
  %v2820 = vpack.c.b16 %v2804, %v2804
  %v2821 = vpack.c.b16 %v2805, %v2805
  %v2822 = vpack.c.b16 %v2806, %v2806
  %2839 = vst [vmem:[%s4] sm:$0xf] %v2807
  %2840 = vst [vmem:[%s4 + $0x4] sm:$0xf] %v2808
  %2841 = vst [vmem:[%s4 + $0x8] sm:$0xf] %v2809
  %2842 = vst [vmem:[%s4 + $0xc] sm:$0xf] %v2810
  %2843 = vst [vmem:[%s4 + $0x10] sm:$0xf] %v2811
  %2844 = vst [vmem:[%s4 + $0x14] sm:$0xf] %v2812
  %2845 = vst [vmem:[%s4 + $0x18] sm:$0xf] %v2813
  %2846 = vst [vmem:[%s4 + $0x1c] sm:$0xf] %v2814
  %2847 = vst [vmem:[%s4 + $0x20] sm:$0xf] %v2815
  %2848 = vst [vmem:[%s4 + $0x24] sm:$0xf] %v2816
  %2849 = vst [vmem:[%s4 + $0x28] sm:$0xf] %v2817
  %2850 = vst [vmem:[%s4 + $0x2c] sm:$0xf] %v2818
  %2851 = vst [vmem:[%s4 + $0x30] sm:$0xf] %v2819
  %2852 = vst [vmem:[%s4 + $0x34] sm:$0xf] %v2820
  %2853 = vst [vmem:[%s4 + $0x38] sm:$0xf] %v2821
  %2854 = vst [vmem:[%s4 + $0x3c] sm:$0xf] %v2822
  // Predicated region
  $region18: #{dc_discriminator_forward.5} parent=0 // pred_check
    _
  $region19: #{dc_discriminator_forward.5} parent=0 // pred_check_branch
    %2856 = sbr.rel (0) target = $region21
  $region20: #{dc_discriminator_forward.5} parent=0 // pred_region
    _
  $region21: #{dc_discriminator_forward.5} parent=0 // pred_fallthru
    _
  // Predicated region
  $region22: #{dc_discriminator_forward.5} parent=0 // pred_check
    _
  $region23: #{dc_discriminator_forward.5} parent=0 // pred_check_branch
    %2858 = sbr.rel (0) target = $region25
  $region24: #{dc_discriminator_forward.5} parent=0 // pred_region
    _
  $region25: #{dc_discriminator_forward.5} parent=0 // pred_fallthru
    _

// kernel: dc_discriminator_forward.6
$region0: #{dc_discriminator_forward.6}
  #allocation0 [shape = 'u32[]', space=smem, size = 0x4, offset = 0x4, fixed_abs, tag = 'smem constant byte address 0x4 - core index']
  #allocation1 [shape = 'u32[144,128]{1,0:T(1,128)}', space=vmem, size = 0x12000, scoped, tag = 'internal scratch']
  %s0 = inlined_call_operand.vmem [shape: bf16[32,2048], index: 0, kind: input, shape index: {}]
  %s1 = inlined_call_operand.vmem [shape: bf16[2048,128], index: 1, kind: input, shape index: {}]
  %s2 = inlined_call_operand.vmem [shape: f32[1,128], index: 2, kind: input, shape index: {}]
  %s3 = inlined_call_operand.vmem [shape: f32[1,128], index: 3, kind: input, shape index: {}]
  %s4 = inlined_call_operand.vmem [shape: bf16[32,128], index: 4, kind: output, shape index: {}]
  %s5 = sld [smem:[#allocation0]]
  $region26: #{dc_discriminator_forward.6} parent=0
    _
  %s7 = ssub.s32 1, %s5
  %s8 = scalar_select 0, %s7, %s5
  // Predicated region
  $region2: #{dc_discriminator_forward.6} parent=0 // pred_check
    _
  $region3: #{dc_discriminator_forward.6} parent=0 // pred_check_branch
    %10 = sbr.rel (0) target = $region5
  $region4: #{dc_discriminator_forward.6} parent=0 // pred_region
    _
  $region5: #{dc_discriminator_forward.6} parent=0 // pred_fallthru
    _
  // Predicated region
  $region6: #{dc_discriminator_forward.6} parent=0 // pred_check
    _
  $region7: #{dc_discriminator_forward.6} parent=0 // pred_check_branch
    %12 = sbr.rel (0) target = $region9
  $region8: #{dc_discriminator_forward.6} parent=0 // pred_region
    _
  $region9: #{dc_discriminator_forward.6} parent=0 // pred_fallthru
    _
  // Predicated region
  $region10: #{dc_discriminator_forward.6} parent=0 // pred_check
    _
  $region11: #{dc_discriminator_forward.6} parent=0 // pred_check_branch
    %14 = sbr.rel (0) target = $region13
  $region12: #{dc_discriminator_forward.6} parent=0 // pred_region
    _
  $region13: #{dc_discriminator_forward.6} parent=0 // pred_fallthru
    _
  // Predicated region
  $region14: #{dc_discriminator_forward.6} parent=0 // pred_check
    _
  $region15: #{dc_discriminator_forward.6} parent=0 // pred_check_branch
    %16 = sbr.rel (0) target = $region17
  $region16: #{dc_discriminator_forward.6} parent=0 // pred_region
    _
  $region17: #{dc_discriminator_forward.6} parent=0 // pred_fallthru
    _
  %v18 = vld [vmem:[%s0] sm:$0xff]
  %v19 = vld [vmem:[%s0 + $0x8] sm:$0xff]
  %v20 = vld [vmem:[%s0 + $0x10] sm:$0xff]
  %v21 = vld [vmem:[%s0 + $0x18] sm:$0xff]
  %v22 = vld [vmem:[%s0 + $0x20] sm:$0xff]
  %v23 = vld [vmem:[%s0 + $0x28] sm:$0xff]
  %v24 = vld [vmem:[%s0 + $0x30] sm:$0xff]
  %v25 = vld [vmem:[%s0 + $0x38] sm:$0xff]
  %v26 = vld [vmem:[%s0 + $0x40] sm:$0xff]
  %v27 = vld [vmem:[%s0 + $0x48] sm:$0xff]
  %v28 = vld [vmem:[%s0 + $0x50] sm:$0xff]
  %v29 = vld [vmem:[%s0 + $0x58] sm:$0xff]
  %v30 = vld [vmem:[%s0 + $0x60] sm:$0xff]
  %v31 = vld [vmem:[%s0 + $0x68] sm:$0xff]
  %v32 = vld [vmem:[%s0 + $0x70] sm:$0xff]
  %v33 = vld [vmem:[%s0 + $0x78] sm:$0xff]
  %v34 = vld [vmem:[%s0 + $0x80] sm:$0xff]
  %v35 = vld [vmem:[%s0 + $0x88] sm:$0xff]
  %v36 = vld [vmem:[%s0 + $0x90] sm:$0xff]
  %v37 = vld [vmem:[%s0 + $0x98] sm:$0xff]
  %v38 = vld [vmem:[%s0 + $0xa0] sm:$0xff]
  %v39 = vld [vmem:[%s0 + $0xa8] sm:$0xff]
  %v40 = vld [vmem:[%s0 + $0xb0] sm:$0xff]
  %v41 = vld [vmem:[%s0 + $0xb8] sm:$0xff]
  %v42 = vld [vmem:[%s0 + $0xc0] sm:$0xff]
  %v43 = vld [vmem:[%s0 + $0xc8] sm:$0xff]
  %v44 = vld [vmem:[%s0 + $0xd0] sm:$0xff]
  %v45 = vld [vmem:[%s0 + $0xd8] sm:$0xff]
  %v46 = vld [vmem:[%s0 + $0xe0] sm:$0xff]
  %v47 = vld [vmem:[%s0 + $0xe8] sm:$0xff]
  %v48 = vld [vmem:[%s0 + $0xf0] sm:$0xff]
  %v49 = vld [vmem:[%s0 + $0xf8] sm:$0xff]
  %v50 = vld [vmem:[%s1] sm:$0xf]
  %v51 = vld [vmem:[%s1 + $0x4] sm:$0xf]
  %v52 = vld [vmem:[%s1 + $0x8] sm:$0xf]
  %v53 = vld [vmem:[%s1 + $0xc] sm:$0xf]
  %v54 = vld [vmem:[%s1 + $0x10] sm:$0xf]
  %v55 = vld [vmem:[%s1 + $0x14] sm:$0xf]
  %v56 = vld [vmem:[%s1 + $0x18] sm:$0xf]
  %v57 = vld [vmem:[%s1 + $0x1c] sm:$0xf]
  %v58 = vld [vmem:[%s1 + $0x20] sm:$0xf]
  %v59 = vld [vmem:[%s1 + $0x24] sm:$0xf]
  %v60 = vld [vmem:[%s1 + $0x28] sm:$0xf]
  %v61 = vld [vmem:[%s1 + $0x2c] sm:$0xf]
  %v62 = vld [vmem:[%s1 + $0x30] sm:$0xf]
  %v63 = vld [vmem:[%s1 + $0x34] sm:$0xf]
  %v64 = vld [vmem:[%s1 + $0x38] sm:$0xf]
  %v65 = vld [vmem:[%s1 + $0x3c] sm:$0xf]
  %v66 = vld [vmem:[%s1 + $0x40] sm:$0xf]
  %v67 = vld [vmem:[%s1 + $0x44] sm:$0xf]
  %v68 = vld [vmem:[%s1 + $0x48] sm:$0xf]
  %v69 = vld [vmem:[%s1 + $0x4c] sm:$0xf]
  %v70 = vld [vmem:[%s1 + $0x50] sm:$0xf]
  %v71 = vld [vmem:[%s1 + $0x54] sm:$0xf]
  %v72 = vld [vmem:[%s1 + $0x58] sm:$0xf]
  %v73 = vld [vmem:[%s1 + $0x5c] sm:$0xf]
  %v74 = vld [vmem:[%s1 + $0x60] sm:$0xf]
  %v75 = vld [vmem:[%s1 + $0x64] sm:$0xf]
  %v76 = vld [vmem:[%s1 + $0x68] sm:$0xf]
  %v77 = vld [vmem:[%s1 + $0x6c] sm:$0xf]
  %v78 = vld [vmem:[%s1 + $0x70] sm:$0xf]
  %v79 = vld [vmem:[%s1 + $0x74] sm:$0xf]
  %v80 = vld [vmem:[%s1 + $0x78] sm:$0xf]
  %v81 = vld [vmem:[%s1 + $0x7c] sm:$0xf]
  %v82 = vld [vmem:[%s1 + $0x80] sm:$0xf]
  %v83 = vld [vmem:[%s1 + $0x84] sm:$0xf]
  %v84 = vld [vmem:[%s1 + $0x88] sm:$0xf]
  %v85 = vld [vmem:[%s1 + $0x8c] sm:$0xf]
  %v86 = vld [vmem:[%s1 + $0x90] sm:$0xf]
  %v87 = vld [vmem:[%s1 + $0x94] sm:$0xf]
  %v88 = vld [vmem:[%s1 + $0x98] sm:$0xf]
  %v89 = vld [vmem:[%s1 + $0x9c] sm:$0xf]
  %v90 = vld [vmem:[%s1 + $0xa0] sm:$0xf]
  %v91 = vld [vmem:[%s1 + $0xa4] sm:$0xf]
  %v92 = vld [vmem:[%s1 + $0xa8] sm:$0xf]
  %v93 = vld [vmem:[%s1 + $0xac] sm:$0xf]
  %v94 = vld [vmem:[%s1 + $0xb0] sm:$0xf]
  %v95 = vld [vmem:[%s1 + $0xb4] sm:$0xf]
  %v96 = vld [vmem:[%s1 + $0xb8] sm:$0xf]
  %v97 = vld [vmem:[%s1 + $0xbc] sm:$0xf]
  %v98 = vld [vmem:[%s1 + $0xc0] sm:$0xf]
  %v99 = vld [vmem:[%s1 + $0xc4] sm:$0xf]
  %v100 = vld [vmem:[%s1 + $0xc8] sm:$0xf]
  %v101 = vld [vmem:[%s1 + $0xcc] sm:$0xf]
  %v102 = vld [vmem:[%s1 + $0xd0] sm:$0xf]
  %v103 = vld [vmem:[%s1 + $0xd4] sm:$0xf]
  %v104 = vld [vmem:[%s1 + $0xd8] sm:$0xf]
  %v105 = vld [vmem:[%s1 + $0xdc] sm:$0xf]
  %v106 = vld [vmem:[%s1 + $0xe0] sm:$0xf]
  %v107 = vld [vmem:[%s1 + $0xe4] sm:$0xf]
  %v108 = vld [vmem:[%s1 + $0xe8] sm:$0xf]
  %v109 = vld [vmem:[%s1 + $0xec] sm:$0xf]
  %v110 = vld [vmem:[%s1 + $0xf0] sm:$0xf]
  %v111 = vld [vmem:[%s1 + $0xf4] sm:$0xf]
  %v112 = vld [vmem:[%s1 + $0xf8] sm:$0xf]
  %v113 = vld [vmem:[%s1 + $0xfc] sm:$0xf]
  %v114 = vld [vmem:[%s1 + $0x100] sm:$0xf]
  %v115 = vld [vmem:[%s1 + $0x104] sm:$0xf]
  %v116 = vld [vmem:[%s1 + $0x108] sm:$0xf]
  %v117 = vld [vmem:[%s1 + $0x10c] sm:$0xf]
  %v118 = vld [vmem:[%s1 + $0x110] sm:$0xf]
  %v119 = vld [vmem:[%s1 + $0x114] sm:$0xf]
  %v120 = vld [vmem:[%s1 + $0x118] sm:$0xf]
  %v121 = vld [vmem:[%s1 + $0x11c] sm:$0xf]
  %v122 = vld [vmem:[%s1 + $0x120] sm:$0xf]
  %v123 = vld [vmem:[%s1 + $0x124] sm:$0xf]
  %v124 = vld [vmem:[%s1 + $0x128] sm:$0xf]
  %v125 = vld [vmem:[%s1 + $0x12c] sm:$0xf]
  %v126 = vld [vmem:[%s1 + $0x130] sm:$0xf]
  %v127 = vld [vmem:[%s1 + $0x134] sm:$0xf]
  %v128 = vld [vmem:[%s1 + $0x138] sm:$0xf]
  %v129 = vld [vmem:[%s1 + $0x13c] sm:$0xf]
  %v130 = vld [vmem:[%s1 + $0x140] sm:$0xf]
  %v131 = vld [vmem:[%s1 + $0x144] sm:$0xf]
  %v132 = vld [vmem:[%s1 + $0x148] sm:$0xf]
  %v133 = vld [vmem:[%s1 + $0x14c] sm:$0xf]
  %v134 = vld [vmem:[%s1 + $0x150] sm:$0xf]
  %v135 = vld [vmem:[%s1 + $0x154] sm:$0xf]
  %v136 = vld [vmem:[%s1 + $0x158] sm:$0xf]
  %v137 = vld [vmem:[%s1 + $0x15c] sm:$0xf]
  %v138 = vld [vmem:[%s1 + $0x160] sm:$0xf]
  %v139 = vld [vmem:[%s1 + $0x164] sm:$0xf]
  %v140 = vld [vmem:[%s1 + $0x168] sm:$0xf]
  %v141 = vld [vmem:[%s1 + $0x16c] sm:$0xf]
  %v142 = vld [vmem:[%s1 + $0x170] sm:$0xf]
  %v143 = vld [vmem:[%s1 + $0x174] sm:$0xf]
  %v144 = vld [vmem:[%s1 + $0x178] sm:$0xf]
  %v145 = vld [vmem:[%s1 + $0x17c] sm:$0xf]
  %v146 = vld [vmem:[%s1 + $0x180] sm:$0xf]
  %v147 = vld [vmem:[%s1 + $0x184] sm:$0xf]
  %v148 = vld [vmem:[%s1 + $0x188] sm:$0xf]
  %v149 = vld [vmem:[%s1 + $0x18c] sm:$0xf]
  %v150 = vld [vmem:[%s1 + $0x190] sm:$0xf]
  %v151 = vld [vmem:[%s1 + $0x194] sm:$0xf]
  %v152 = vld [vmem:[%s1 + $0x198] sm:$0xf]
  %v153 = vld [vmem:[%s1 + $0x19c] sm:$0xf]
  %v154 = vld [vmem:[%s1 + $0x1a0] sm:$0xf]
  %v155 = vld [vmem:[%s1 + $0x1a4] sm:$0xf]
  %v156 = vld [vmem:[%s1 + $0x1a8] sm:$0xf]
  %v157 = vld [vmem:[%s1 + $0x1ac] sm:$0xf]
  %v158 = vld [vmem:[%s1 + $0x1b0] sm:$0xf]
  %v159 = vld [vmem:[%s1 + $0x1b4] sm:$0xf]
  %v160 = vld [vmem:[%s1 + $0x1b8] sm:$0xf]
  %v161 = vld [vmem:[%s1 + $0x1bc] sm:$0xf]
  %v162 = vld [vmem:[%s1 + $0x1c0] sm:$0xf]
  %v163 = vld [vmem:[%s1 + $0x1c4] sm:$0xf]
  %v164 = vld [vmem:[%s1 + $0x1c8] sm:$0xf]
  %v165 = vld [vmem:[%s1 + $0x1cc] sm:$0xf]
  %v166 = vld [vmem:[%s1 + $0x1d0] sm:$0xf]
  %v167 = vld [vmem:[%s1 + $0x1d4] sm:$0xf]
  %v168 = vld [vmem:[%s1 + $0x1d8] sm:$0xf]
  %v169 = vld [vmem:[%s1 + $0x1dc] sm:$0xf]
  %v170 = vld [vmem:[%s1 + $0x1e0] sm:$0xf]
  %v171 = vld [vmem:[%s1 + $0x1e4] sm:$0xf]
  %v172 = vld [vmem:[%s1 + $0x1e8] sm:$0xf]
  %v173 = vld [vmem:[%s1 + $0x1ec] sm:$0xf]
  %v174 = vld [vmem:[%s1 + $0x1f0] sm:$0xf]
  %v175 = vld [vmem:[%s1 + $0x1f4] sm:$0xf]
  %v176 = vld [vmem:[%s1 + $0x1f8] sm:$0xf]
  %v177 = vld [vmem:[%s1 + $0x1fc] sm:$0xf]
  %v178 = vld [vmem:[%s1 + $0x200] sm:$0xf]
  %v179 = vld [vmem:[%s1 + $0x204] sm:$0xf]
  %v180 = vld [vmem:[%s1 + $0x208] sm:$0xf]
  %v181 = vld [vmem:[%s1 + $0x20c] sm:$0xf]
  %v182 = vld [vmem:[%s1 + $0x210] sm:$0xf]
  %v183 = vld [vmem:[%s1 + $0x214] sm:$0xf]
  %v184 = vld [vmem:[%s1 + $0x218] sm:$0xf]
  %v185 = vld [vmem:[%s1 + $0x21c] sm:$0xf]
  %v186 = vld [vmem:[%s1 + $0x220] sm:$0xf]
  %v187 = vld [vmem:[%s1 + $0x224] sm:$0xf]
  %v188 = vld [vmem:[%s1 + $0x228] sm:$0xf]
  %v189 = vld [vmem:[%s1 + $0x22c] sm:$0xf]
  %v190 = vld [vmem:[%s1 + $0x230] sm:$0xf]
  %v191 = vld [vmem:[%s1 + $0x234] sm:$0xf]
  %v192 = vld [vmem:[%s1 + $0x238] sm:$0xf]
  %v193 = vld [vmem:[%s1 + $0x23c] sm:$0xf]
  %v194 = vld [vmem:[%s1 + $0x240] sm:$0xf]
  %v195 = vld [vmem:[%s1 + $0x244] sm:$0xf]
  %v196 = vld [vmem:[%s1 + $0x248] sm:$0xf]
  %v197 = vld [vmem:[%s1 + $0x24c] sm:$0xf]
  %v198 = vld [vmem:[%s1 + $0x250] sm:$0xf]
  %v199 = vld [vmem:[%s1 + $0x254] sm:$0xf]
  %v200 = vld [vmem:[%s1 + $0x258] sm:$0xf]
  %v201 = vld [vmem:[%s1 + $0x25c] sm:$0xf]
  %v202 = vld [vmem:[%s1 + $0x260] sm:$0xf]
  %v203 = vld [vmem:[%s1 + $0x264] sm:$0xf]
  %v204 = vld [vmem:[%s1 + $0x268] sm:$0xf]
  %v205 = vld [vmem:[%s1 + $0x26c] sm:$0xf]
  %v206 = vld [vmem:[%s1 + $0x270] sm:$0xf]
  %v207 = vld [vmem:[%s1 + $0x274] sm:$0xf]
  %v208 = vld [vmem:[%s1 + $0x278] sm:$0xf]
  %v209 = vld [vmem:[%s1 + $0x27c] sm:$0xf]
  %v210 = vld [vmem:[%s1 + $0x280] sm:$0xf]
  %v211 = vld [vmem:[%s1 + $0x284] sm:$0xf]
  %v212 = vld [vmem:[%s1 + $0x288] sm:$0xf]
  %v213 = vld [vmem:[%s1 + $0x28c] sm:$0xf]
  %v214 = vld [vmem:[%s1 + $0x290] sm:$0xf]
  %v215 = vld [vmem:[%s1 + $0x294] sm:$0xf]
  %v216 = vld [vmem:[%s1 + $0x298] sm:$0xf]
  %v217 = vld [vmem:[%s1 + $0x29c] sm:$0xf]
  %v218 = vld [vmem:[%s1 + $0x2a0] sm:$0xf]
  %v219 = vld [vmem:[%s1 + $0x2a4] sm:$0xf]
  %v220 = vld [vmem:[%s1 + $0x2a8] sm:$0xf]
  %v221 = vld [vmem:[%s1 + $0x2ac] sm:$0xf]
  %v222 = vld [vmem:[%s1 + $0x2b0] sm:$0xf]
  %v223 = vld [vmem:[%s1 + $0x2b4] sm:$0xf]
  %v224 = vld [vmem:[%s1 + $0x2b8] sm:$0xf]
  %v225 = vld [vmem:[%s1 + $0x2bc] sm:$0xf]
  %v226 = vld [vmem:[%s1 + $0x2c0] sm:$0xf]
  %v227 = vld [vmem:[%s1 + $0x2c4] sm:$0xf]
  %v228 = vld [vmem:[%s1 + $0x2c8] sm:$0xf]
  %v229 = vld [vmem:[%s1 + $0x2cc] sm:$0xf]
  %v230 = vld [vmem:[%s1 + $0x2d0] sm:$0xf]
  %v231 = vld [vmem:[%s1 + $0x2d4] sm:$0xf]
  %v232 = vld [vmem:[%s1 + $0x2d8] sm:$0xf]
  %v233 = vld [vmem:[%s1 + $0x2dc] sm:$0xf]
  %v234 = vld [vmem:[%s1 + $0x2e0] sm:$0xf]
  %v235 = vld [vmem:[%s1 + $0x2e4] sm:$0xf]
  %v236 = vld [vmem:[%s1 + $0x2e8] sm:$0xf]
  %v237 = vld [vmem:[%s1 + $0x2ec] sm:$0xf]
  %v238 = vld [vmem:[%s1 + $0x2f0] sm:$0xf]
  %v239 = vld [vmem:[%s1 + $0x2f4] sm:$0xf]
  %v240 = vld [vmem:[%s1 + $0x2f8] sm:$0xf]
  %v241 = vld [vmem:[%s1 + $0x2fc] sm:$0xf]
  %v242 = vld [vmem:[%s1 + $0x300] sm:$0xf]
  %v243 = vld [vmem:[%s1 + $0x304] sm:$0xf]
  %v244 = vld [vmem:[%s1 + $0x308] sm:$0xf]
  %v245 = vld [vmem:[%s1 + $0x30c] sm:$0xf]
  %v246 = vld [vmem:[%s1 + $0x310] sm:$0xf]
  %v247 = vld [vmem:[%s1 + $0x314] sm:$0xf]
  %v248 = vld [vmem:[%s1 + $0x318] sm:$0xf]
  %v249 = vld [vmem:[%s1 + $0x31c] sm:$0xf]
  %v250 = vld [vmem:[%s1 + $0x320] sm:$0xf]
  %v251 = vld [vmem:[%s1 + $0x324] sm:$0xf]
  %v252 = vld [vmem:[%s1 + $0x328] sm:$0xf]
  %v253 = vld [vmem:[%s1 + $0x32c] sm:$0xf]
  %v254 = vld [vmem:[%s1 + $0x330] sm:$0xf]
  %v255 = vld [vmem:[%s1 + $0x334] sm:$0xf]
  %v256 = vld [vmem:[%s1 + $0x338] sm:$0xf]
  %v257 = vld [vmem:[%s1 + $0x33c] sm:$0xf]
  %v258 = vld [vmem:[%s1 + $0x340] sm:$0xf]
  %v259 = vld [vmem:[%s1 + $0x344] sm:$0xf]
  %v260 = vld [vmem:[%s1 + $0x348] sm:$0xf]
  %v261 = vld [vmem:[%s1 + $0x34c] sm:$0xf]
  %v262 = vld [vmem:[%s1 + $0x350] sm:$0xf]
  %v263 = vld [vmem:[%s1 + $0x354] sm:$0xf]
  %v264 = vld [vmem:[%s1 + $0x358] sm:$0xf]
  %v265 = vld [vmem:[%s1 + $0x35c] sm:$0xf]
  %v266 = vld [vmem:[%s1 + $0x360] sm:$0xf]
  %v267 = vld [vmem:[%s1 + $0x364] sm:$0xf]
  %v268 = vld [vmem:[%s1 + $0x368] sm:$0xf]
  %v269 = vld [vmem:[%s1 + $0x36c] sm:$0xf]
  %v270 = vld [vmem:[%s1 + $0x370] sm:$0xf]
  %v271 = vld [vmem:[%s1 + $0x374] sm:$0xf]
  %v272 = vld [vmem:[%s1 + $0x378] sm:$0xf]
  %v273 = vld [vmem:[%s1 + $0x37c] sm:$0xf]
  %v274 = vld [vmem:[%s1 + $0x380] sm:$0xf]
  %v275 = vld [vmem:[%s1 + $0x384] sm:$0xf]
  %v276 = vld [vmem:[%s1 + $0x388] sm:$0xf]
  %v277 = vld [vmem:[%s1 + $0x38c] sm:$0xf]
  %v278 = vld [vmem:[%s1 + $0x390] sm:$0xf]
  %v279 = vld [vmem:[%s1 + $0x394] sm:$0xf]
  %v280 = vld [vmem:[%s1 + $0x398] sm:$0xf]
  %v281 = vld [vmem:[%s1 + $0x39c] sm:$0xf]
  %v282 = vld [vmem:[%s1 + $0x3a0] sm:$0xf]
  %v283 = vld [vmem:[%s1 + $0x3a4] sm:$0xf]
  %v284 = vld [vmem:[%s1 + $0x3a8] sm:$0xf]
  %v285 = vld [vmem:[%s1 + $0x3ac] sm:$0xf]
  %v286 = vld [vmem:[%s1 + $0x3b0] sm:$0xf]
  %v287 = vld [vmem:[%s1 + $0x3b4] sm:$0xf]
  %v288 = vld [vmem:[%s1 + $0x3b8] sm:$0xf]
  %v289 = vld [vmem:[%s1 + $0x3bc] sm:$0xf]
  %v290 = vld [vmem:[%s1 + $0x3c0] sm:$0xf]
  %v291 = vld [vmem:[%s1 + $0x3c4] sm:$0xf]
  %v292 = vld [vmem:[%s1 + $0x3c8] sm:$0xf]
  %v293 = vld [vmem:[%s1 + $0x3cc] sm:$0xf]
  %v294 = vld [vmem:[%s1 + $0x3d0] sm:$0xf]
  %v295 = vld [vmem:[%s1 + $0x3d4] sm:$0xf]
  %v296 = vld [vmem:[%s1 + $0x3d8] sm:$0xf]
  %v297 = vld [vmem:[%s1 + $0x3dc] sm:$0xf]
  %v298 = vld [vmem:[%s1 + $0x3e0] sm:$0xf]
  %v299 = vld [vmem:[%s1 + $0x3e4] sm:$0xf]
  %v300 = vld [vmem:[%s1 + $0x3e8] sm:$0xf]
  %v301 = vld [vmem:[%s1 + $0x3ec] sm:$0xf]
  %v302 = vld [vmem:[%s1 + $0x3f0] sm:$0xf]
  %v303 = vld [vmem:[%s1 + $0x3f4] sm:$0xf]
  %v304 = vld [vmem:[%s1 + $0x3f8] sm:$0xf]
  %v305 = vld [vmem:[%s1 + $0x3fc] sm:$0xf]
  %v338 = vunpack.c.l.b16 %v18
  %v339 = vunpack.c.h.b16 %v18
  %v340 = vunpack.c.l.b16 %v19
  %v341 = vunpack.c.h.b16 %v19
  %v342 = vunpack.c.l.b16 %v20
  %v343 = vunpack.c.h.b16 %v20
  %v344 = vunpack.c.l.b16 %v21
  %v345 = vunpack.c.h.b16 %v21
  %v346 = vunpack.c.l.b16 %v22
  %v347 = vunpack.c.h.b16 %v22
  %v348 = vunpack.c.l.b16 %v23
  %v349 = vunpack.c.h.b16 %v23
  %v350 = vunpack.c.l.b16 %v24
  %v351 = vunpack.c.h.b16 %v24
  %v352 = vunpack.c.l.b16 %v25
  %v353 = vunpack.c.h.b16 %v25
  %v354 = vunpack.c.l.b16 %v26
  %v355 = vunpack.c.h.b16 %v26
  %v356 = vunpack.c.l.b16 %v27
  %v357 = vunpack.c.h.b16 %v27
  %v358 = vunpack.c.l.b16 %v28
  %v359 = vunpack.c.h.b16 %v28
  %v360 = vunpack.c.l.b16 %v29
  %v361 = vunpack.c.h.b16 %v29
  %v362 = vunpack.c.l.b16 %v30
  %v363 = vunpack.c.h.b16 %v30
  %v364 = vunpack.c.l.b16 %v31
  %v365 = vunpack.c.h.b16 %v31
  %v366 = vunpack.c.l.b16 %v32
  %v367 = vunpack.c.h.b16 %v32
  %v368 = vunpack.c.l.b16 %v33
  %v369 = vunpack.c.h.b16 %v33
  %v370 = vunpack.c.l.b16 %v34
  %v371 = vunpack.c.h.b16 %v34
  %v372 = vunpack.c.l.b16 %v35
  %v373 = vunpack.c.h.b16 %v35
  %v374 = vunpack.c.l.b16 %v36
  %v375 = vunpack.c.h.b16 %v36
  %v376 = vunpack.c.l.b16 %v37
  %v377 = vunpack.c.h.b16 %v37
  %v378 = vunpack.c.l.b16 %v38
  %v379 = vunpack.c.h.b16 %v38
  %v380 = vunpack.c.l.b16 %v39
  %v381 = vunpack.c.h.b16 %v39
  %v382 = vunpack.c.l.b16 %v40
  %v383 = vunpack.c.h.b16 %v40
  %v384 = vunpack.c.l.b16 %v41
  %v385 = vunpack.c.h.b16 %v41
  %v386 = vunpack.c.l.b16 %v42
  %v387 = vunpack.c.h.b16 %v42
  %v388 = vunpack.c.l.b16 %v43
  %v389 = vunpack.c.h.b16 %v43
  %v390 = vunpack.c.l.b16 %v44
  %v391 = vunpack.c.h.b16 %v44
  %v392 = vunpack.c.l.b16 %v45
  %v393 = vunpack.c.h.b16 %v45
  %v394 = vunpack.c.l.b16 %v46
  %v395 = vunpack.c.h.b16 %v46
  %v396 = vunpack.c.l.b16 %v47
  %v397 = vunpack.c.h.b16 %v47
  %v398 = vunpack.c.l.b16 %v48
  %v399 = vunpack.c.h.b16 %v48
  %v400 = vunpack.c.l.b16 %v49
  %v401 = vunpack.c.h.b16 %v49
  %v402 = vpack.c.b16 %v354, %v338
  %v403 = vpack.c.b16 %v355, %v339
  %v404 = vpack.c.b16 %v356, %v340
  %v405 = vpack.c.b16 %v357, %v341
  %v406 = vpack.c.b16 %v358, %v342
  %v407 = vpack.c.b16 %v359, %v343
  %v408 = vpack.c.b16 %v360, %v344
  %v409 = vpack.c.b16 %v361, %v345
  %v410 = vpack.c.b16 %v362, %v346
  %v411 = vpack.c.b16 %v363, %v347
  %v412 = vpack.c.b16 %v364, %v348
  %v413 = vpack.c.b16 %v365, %v349
  %v414 = vpack.c.b16 %v366, %v350
  %v415 = vpack.c.b16 %v367, %v351
  %v416 = vpack.c.b16 %v368, %v352
  %v417 = vpack.c.b16 %v369, %v353
  %v418 = vpack.c.b16 %v386, %v370
  %v419 = vpack.c.b16 %v387, %v371
  %v420 = vpack.c.b16 %v388, %v372
  %v421 = vpack.c.b16 %v389, %v373
  %v422 = vpack.c.b16 %v390, %v374
  %v423 = vpack.c.b16 %v391, %v375
  %v424 = vpack.c.b16 %v392, %v376
  %v425 = vpack.c.b16 %v393, %v377
  %v426 = vpack.c.b16 %v394, %v378
  %v427 = vpack.c.b16 %v395, %v379
  %v428 = vpack.c.b16 %v396, %v380
  %v429 = vpack.c.b16 %v397, %v381
  %v430 = vpack.c.b16 %v398, %v382
  %v431 = vpack.c.b16 %v399, %v383
  %v432 = vpack.c.b16 %v400, %v384
  %v433 = vpack.c.b16 %v401, %v385
  %v722 = vunpack.c.l.b16 %v50
  %v723 = vunpack.c.l.b16 %v51
  %v724 = vunpack.c.l.b16 %v52
  %v725 = vunpack.c.l.b16 %v53
  %v726 = vunpack.c.l.b16 %v54
  %v727 = vunpack.c.l.b16 %v55
  %v728 = vunpack.c.l.b16 %v56
  %v729 = vunpack.c.l.b16 %v57
  %v730 = vunpack.c.l.b16 %v58
  %v731 = vunpack.c.l.b16 %v59
  %v732 = vunpack.c.l.b16 %v60
  %v733 = vunpack.c.l.b16 %v61
  %v734 = vunpack.c.l.b16 %v62
  %v735 = vunpack.c.l.b16 %v63
  %v736 = vunpack.c.l.b16 %v64
  %v737 = vunpack.c.l.b16 %v65
  %v738 = vunpack.c.l.b16 %v66
  %v739 = vunpack.c.l.b16 %v67
  %v740 = vunpack.c.l.b16 %v68
  %v741 = vunpack.c.l.b16 %v69
  %v742 = vunpack.c.l.b16 %v70
  %v743 = vunpack.c.l.b16 %v71
  %v744 = vunpack.c.l.b16 %v72
  %v745 = vunpack.c.l.b16 %v73
  %v746 = vunpack.c.l.b16 %v74
  %v747 = vunpack.c.l.b16 %v75
  %v748 = vunpack.c.l.b16 %v76
  %v749 = vunpack.c.l.b16 %v77
  %v750 = vunpack.c.l.b16 %v78
  %v751 = vunpack.c.l.b16 %v79
  %v752 = vunpack.c.l.b16 %v80
  %v753 = vunpack.c.l.b16 %v81
  %v754 = vunpack.c.l.b16 %v82
  %v755 = vunpack.c.l.b16 %v83
  %v756 = vunpack.c.l.b16 %v84
  %v757 = vunpack.c.l.b16 %v85
  %v758 = vunpack.c.l.b16 %v86
  %v759 = vunpack.c.l.b16 %v87
  %v760 = vunpack.c.l.b16 %v88
  %v761 = vunpack.c.l.b16 %v89
  %v762 = vunpack.c.l.b16 %v90
  %v763 = vunpack.c.l.b16 %v91
  %v764 = vunpack.c.l.b16 %v92
  %v765 = vunpack.c.l.b16 %v93
  %v766 = vunpack.c.l.b16 %v94
  %v767 = vunpack.c.l.b16 %v95
  %v768 = vunpack.c.l.b16 %v96
  %v769 = vunpack.c.l.b16 %v97
  %v770 = vunpack.c.l.b16 %v98
  %v771 = vunpack.c.l.b16 %v99
  %v772 = vunpack.c.l.b16 %v100
  %v773 = vunpack.c.l.b16 %v101
  %v774 = vunpack.c.l.b16 %v102
  %v775 = vunpack.c.l.b16 %v103
  %v776 = vunpack.c.l.b16 %v104
  %v777 = vunpack.c.l.b16 %v105
  %v778 = vunpack.c.l.b16 %v106
  %v779 = vunpack.c.l.b16 %v107
  %v780 = vunpack.c.l.b16 %v108
  %v781 = vunpack.c.l.b16 %v109
  %v782 = vunpack.c.l.b16 %v110
  %v783 = vunpack.c.l.b16 %v111
  %v784 = vunpack.c.l.b16 %v112
  %v785 = vunpack.c.l.b16 %v113
  %v786 = vunpack.c.l.b16 %v114
  %v787 = vunpack.c.l.b16 %v115
  %v788 = vunpack.c.l.b16 %v116
  %v789 = vunpack.c.l.b16 %v117
  %v790 = vunpack.c.l.b16 %v118
  %v791 = vunpack.c.l.b16 %v119
  %v792 = vunpack.c.l.b16 %v120
  %v793 = vunpack.c.l.b16 %v121
  %v794 = vunpack.c.l.b16 %v122
  %v795 = vunpack.c.l.b16 %v123
  %v796 = vunpack.c.l.b16 %v124
  %v797 = vunpack.c.l.b16 %v125
  %v798 = vunpack.c.l.b16 %v126
  %v799 = vunpack.c.l.b16 %v127
  %v800 = vunpack.c.l.b16 %v128
  %v801 = vunpack.c.l.b16 %v129
  %v802 = vunpack.c.l.b16 %v130
  %v803 = vunpack.c.l.b16 %v131
  %v804 = vunpack.c.l.b16 %v132
  %v805 = vunpack.c.l.b16 %v133
  %v806 = vunpack.c.l.b16 %v134
  %v807 = vunpack.c.l.b16 %v135
  %v808 = vunpack.c.l.b16 %v136
  %v809 = vunpack.c.l.b16 %v137
  %v810 = vunpack.c.l.b16 %v138
  %v811 = vunpack.c.l.b16 %v139
  %v812 = vunpack.c.l.b16 %v140
  %v813 = vunpack.c.l.b16 %v141
  %v814 = vunpack.c.l.b16 %v142
  %v815 = vunpack.c.l.b16 %v143
  %v816 = vunpack.c.l.b16 %v144
  %v817 = vunpack.c.l.b16 %v145
  %v818 = vunpack.c.l.b16 %v146
  %v819 = vunpack.c.l.b16 %v147
  %v820 = vunpack.c.l.b16 %v148
  %v821 = vunpack.c.l.b16 %v149
  %v822 = vunpack.c.l.b16 %v150
  %v823 = vunpack.c.l.b16 %v151
  %v824 = vunpack.c.l.b16 %v152
  %v825 = vunpack.c.l.b16 %v153
  %v826 = vunpack.c.l.b16 %v154
  %v827 = vunpack.c.l.b16 %v155
  %v828 = vunpack.c.l.b16 %v156
  %v829 = vunpack.c.l.b16 %v157
  %v830 = vunpack.c.l.b16 %v158
  %v831 = vunpack.c.l.b16 %v159
  %v832 = vunpack.c.l.b16 %v160
  %v833 = vunpack.c.l.b16 %v161
  %v834 = vunpack.c.l.b16 %v162
  %v835 = vunpack.c.l.b16 %v163
  %v836 = vunpack.c.l.b16 %v164
  %v837 = vunpack.c.l.b16 %v165
  %v838 = vunpack.c.l.b16 %v166
  %v839 = vunpack.c.l.b16 %v167
  %v840 = vunpack.c.l.b16 %v168
  %v841 = vunpack.c.l.b16 %v169
  %v842 = vunpack.c.l.b16 %v170
  %v843 = vunpack.c.l.b16 %v171
  %v844 = vunpack.c.l.b16 %v172
  %v845 = vunpack.c.l.b16 %v173
  %v846 = vunpack.c.l.b16 %v174
  %v847 = vunpack.c.l.b16 %v175
  %v848 = vunpack.c.l.b16 %v176
  %v849 = vunpack.c.l.b16 %v177
  %v850 = vunpack.c.l.b16 %v178
  %v851 = vunpack.c.l.b16 %v179
  %v852 = vunpack.c.l.b16 %v180
  %v853 = vunpack.c.l.b16 %v181
  %v854 = vunpack.c.l.b16 %v182
  %v855 = vunpack.c.l.b16 %v183
  %v856 = vunpack.c.l.b16 %v184
  %v857 = vunpack.c.l.b16 %v185
  %v858 = vunpack.c.l.b16 %v186
  %v859 = vunpack.c.l.b16 %v187
  %v860 = vunpack.c.l.b16 %v188
  %v861 = vunpack.c.l.b16 %v189
  %v862 = vunpack.c.l.b16 %v190
  %v863 = vunpack.c.l.b16 %v191
  %v864 = vunpack.c.l.b16 %v192
  %v865 = vunpack.c.l.b16 %v193
  %v866 = vunpack.c.l.b16 %v194
  %v867 = vunpack.c.l.b16 %v195
  %v868 = vunpack.c.l.b16 %v196
  %v869 = vunpack.c.l.b16 %v197
  %v870 = vunpack.c.l.b16 %v198
  %v871 = vunpack.c.l.b16 %v199
  %v872 = vunpack.c.l.b16 %v200
  %v873 = vunpack.c.l.b16 %v201
  %v874 = vunpack.c.l.b16 %v202
  %v875 = vunpack.c.l.b16 %v203
  %v876 = vunpack.c.l.b16 %v204
  %v877 = vunpack.c.l.b16 %v205
  %v878 = vunpack.c.l.b16 %v206
  %v879 = vunpack.c.l.b16 %v207
  %v880 = vunpack.c.l.b16 %v208
  %v881 = vunpack.c.l.b16 %v209
  %v882 = vunpack.c.l.b16 %v210
  %v883 = vunpack.c.l.b16 %v211
  %v884 = vunpack.c.l.b16 %v212
  %v885 = vunpack.c.l.b16 %v213
  %v886 = vunpack.c.l.b16 %v214
  %v887 = vunpack.c.l.b16 %v215
  %v888 = vunpack.c.l.b16 %v216
  %v889 = vunpack.c.l.b16 %v217
  %v890 = vunpack.c.l.b16 %v218
  %v891 = vunpack.c.l.b16 %v219
  %v892 = vunpack.c.l.b16 %v220
  %v893 = vunpack.c.l.b16 %v221
  %v894 = vunpack.c.l.b16 %v222
  %v895 = vunpack.c.l.b16 %v223
  %v896 = vunpack.c.l.b16 %v224
  %v897 = vunpack.c.l.b16 %v225
  %v898 = vunpack.c.l.b16 %v226
  %v899 = vunpack.c.l.b16 %v227
  %v900 = vunpack.c.l.b16 %v228
  %v901 = vunpack.c.l.b16 %v229
  %v902 = vunpack.c.l.b16 %v230
  %v903 = vunpack.c.l.b16 %v231
  %v904 = vunpack.c.l.b16 %v232
  %v905 = vunpack.c.l.b16 %v233
  %v906 = vunpack.c.l.b16 %v234
  %v907 = vunpack.c.l.b16 %v235
  %v908 = vunpack.c.l.b16 %v236
  %v909 = vunpack.c.l.b16 %v237
  %v910 = vunpack.c.l.b16 %v238
  %v911 = vunpack.c.l.b16 %v239
  %v912 = vunpack.c.l.b16 %v240
  %v913 = vunpack.c.l.b16 %v241
  %v914 = vunpack.c.l.b16 %v242
  %v915 = vunpack.c.l.b16 %v243
  %v916 = vunpack.c.l.b16 %v244
  %v917 = vunpack.c.l.b16 %v245
  %v918 = vunpack.c.l.b16 %v246
  %v919 = vunpack.c.l.b16 %v247
  %v920 = vunpack.c.l.b16 %v248
  %v921 = vunpack.c.l.b16 %v249
  %v922 = vunpack.c.l.b16 %v250
  %v923 = vunpack.c.l.b16 %v251
  %v924 = vunpack.c.l.b16 %v252
  %v925 = vunpack.c.l.b16 %v253
  %v926 = vunpack.c.l.b16 %v254
  %v927 = vunpack.c.l.b16 %v255
  %v928 = vunpack.c.l.b16 %v256
  %v929 = vunpack.c.l.b16 %v257
  %v930 = vunpack.c.l.b16 %v258
  %v931 = vunpack.c.l.b16 %v259
  %v932 = vunpack.c.l.b16 %v260
  %v933 = vunpack.c.l.b16 %v261
  %v934 = vunpack.c.l.b16 %v262
  %v935 = vunpack.c.l.b16 %v263
  %v936 = vunpack.c.l.b16 %v264
  %v937 = vunpack.c.l.b16 %v265
  %v938 = vunpack.c.l.b16 %v266
  %v939 = vunpack.c.l.b16 %v267
  %v940 = vunpack.c.l.b16 %v268
  %v941 = vunpack.c.l.b16 %v269
  %v942 = vunpack.c.l.b16 %v270
  %v943 = vunpack.c.l.b16 %v271
  %v944 = vunpack.c.l.b16 %v272
  %v945 = vunpack.c.l.b16 %v273
  %v946 = vunpack.c.l.b16 %v274
  %v947 = vunpack.c.l.b16 %v275
  %v948 = vunpack.c.l.b16 %v276
  %v949 = vunpack.c.l.b16 %v277
  %v950 = vunpack.c.l.b16 %v278
  %v951 = vunpack.c.l.b16 %v279
  %v952 = vunpack.c.l.b16 %v280
  %v953 = vunpack.c.l.b16 %v281
  %v954 = vunpack.c.l.b16 %v282
  %v955 = vunpack.c.l.b16 %v283
  %v956 = vunpack.c.l.b16 %v284
  %v957 = vunpack.c.l.b16 %v285
  %v958 = vunpack.c.l.b16 %v286
  %v959 = vunpack.c.l.b16 %v287
  %v960 = vunpack.c.l.b16 %v288
  %v961 = vunpack.c.l.b16 %v289
  %v962 = vunpack.c.l.b16 %v290
  %v963 = vunpack.c.l.b16 %v291
  %v964 = vunpack.c.l.b16 %v292
  %v965 = vunpack.c.l.b16 %v293
  %v966 = vunpack.c.l.b16 %v294
  %v967 = vunpack.c.l.b16 %v295
  %v968 = vunpack.c.l.b16 %v296
  %v969 = vunpack.c.l.b16 %v297
  %v970 = vunpack.c.l.b16 %v298
  %v971 = vunpack.c.l.b16 %v299
  %v972 = vunpack.c.l.b16 %v300
  %v973 = vunpack.c.l.b16 %v301
  %v974 = vunpack.c.l.b16 %v302
  %v975 = vunpack.c.l.b16 %v303
  %v976 = vunpack.c.l.b16 %v304
  %v977 = vunpack.c.l.b16 %v305
  %v978 = vpack.c.b16 %v723, %v722
  %v979 = vpack.c.b16 %v725, %v724
  %v980 = vpack.c.b16 %v727, %v726
  %v981 = vpack.c.b16 %v729, %v728
  %v982 = vpack.c.b16 %v731, %v730
  %v983 = vpack.c.b16 %v733, %v732
  %v984 = vpack.c.b16 %v735, %v734
  %v985 = vpack.c.b16 %v737, %v736
  %v986 = vpack.c.b16 %v739, %v738
  %v987 = vpack.c.b16 %v741, %v740
  %v988 = vpack.c.b16 %v743, %v742
  %v989 = vpack.c.b16 %v745, %v744
  %v990 = vpack.c.b16 %v747, %v746
  %v991 = vpack.c.b16 %v749, %v748
  %v992 = vpack.c.b16 %v751, %v750
  %v993 = vpack.c.b16 %v753, %v752
  %v994 = vpack.c.b16 %v755, %v754
  %v995 = vpack.c.b16 %v757, %v756
  %v996 = vpack.c.b16 %v759, %v758
  %v997 = vpack.c.b16 %v761, %v760
  %v998 = vpack.c.b16 %v763, %v762
  %v999 = vpack.c.b16 %v765, %v764
  %v1000 = vpack.c.b16 %v767, %v766
  %v1001 = vpack.c.b16 %v769, %v768
  %v1002 = vpack.c.b16 %v771, %v770
  %v1003 = vpack.c.b16 %v773, %v772
  %v1004 = vpack.c.b16 %v775, %v774
  %v1005 = vpack.c.b16 %v777, %v776
  %v1006 = vpack.c.b16 %v779, %v778
  %v1007 = vpack.c.b16 %v781, %v780
  %v1008 = vpack.c.b16 %v783, %v782
  %v1009 = vpack.c.b16 %v785, %v784
  %v1010 = vpack.c.b16 %v787, %v786
  %v1011 = vpack.c.b16 %v789, %v788
  %v1012 = vpack.c.b16 %v791, %v790
  %v1013 = vpack.c.b16 %v793, %v792
  %v1014 = vpack.c.b16 %v795, %v794
  %v1015 = vpack.c.b16 %v797, %v796
  %v1016 = vpack.c.b16 %v799, %v798
  %v1017 = vpack.c.b16 %v801, %v800
  %v1018 = vpack.c.b16 %v803, %v802
  %v1019 = vpack.c.b16 %v805, %v804
  %v1020 = vpack.c.b16 %v807, %v806
  %v1021 = vpack.c.b16 %v809, %v808
  %v1022 = vpack.c.b16 %v811, %v810
  %v1023 = vpack.c.b16 %v813, %v812
  %v1024 = vpack.c.b16 %v815, %v814
  %v1025 = vpack.c.b16 %v817, %v816
  %v1026 = vpack.c.b16 %v819, %v818
  %v1027 = vpack.c.b16 %v821, %v820
  %v1028 = vpack.c.b16 %v823, %v822
  %v1029 = vpack.c.b16 %v825, %v824
  %v1030 = vpack.c.b16 %v827, %v826
  %v1031 = vpack.c.b16 %v829, %v828
  %v1032 = vpack.c.b16 %v831, %v830
  %v1033 = vpack.c.b16 %v833, %v832
  %v1034 = vpack.c.b16 %v835, %v834
  %v1035 = vpack.c.b16 %v837, %v836
  %v1036 = vpack.c.b16 %v839, %v838
  %v1037 = vpack.c.b16 %v841, %v840
  %v1038 = vpack.c.b16 %v843, %v842
  %v1039 = vpack.c.b16 %v845, %v844
  %v1040 = vpack.c.b16 %v847, %v846
  %v1041 = vpack.c.b16 %v849, %v848
  %v1042 = vpack.c.b16 %v851, %v850
  %v1043 = vpack.c.b16 %v853, %v852
  %v1044 = vpack.c.b16 %v855, %v854
  %v1045 = vpack.c.b16 %v857, %v856
  %v1046 = vpack.c.b16 %v859, %v858
  %v1047 = vpack.c.b16 %v861, %v860
  %v1048 = vpack.c.b16 %v863, %v862
  %v1049 = vpack.c.b16 %v865, %v864
  %v1050 = vpack.c.b16 %v867, %v866
  %v1051 = vpack.c.b16 %v869, %v868
  %v1052 = vpack.c.b16 %v871, %v870
  %v1053 = vpack.c.b16 %v873, %v872
  %v1054 = vpack.c.b16 %v875, %v874
  %v1055 = vpack.c.b16 %v877, %v876
  %v1056 = vpack.c.b16 %v879, %v878
  %v1057 = vpack.c.b16 %v881, %v880
  %v1058 = vpack.c.b16 %v883, %v882
  %v1059 = vpack.c.b16 %v885, %v884
  %v1060 = vpack.c.b16 %v887, %v886
  %v1061 = vpack.c.b16 %v889, %v888
  %v1062 = vpack.c.b16 %v891, %v890
  %v1063 = vpack.c.b16 %v893, %v892
  %v1064 = vpack.c.b16 %v895, %v894
  %v1065 = vpack.c.b16 %v897, %v896
  %v1066 = vpack.c.b16 %v899, %v898
  %v1067 = vpack.c.b16 %v901, %v900
  %v1068 = vpack.c.b16 %v903, %v902
  %v1069 = vpack.c.b16 %v905, %v904
  %v1070 = vpack.c.b16 %v907, %v906
  %v1071 = vpack.c.b16 %v909, %v908
  %v1072 = vpack.c.b16 %v911, %v910
  %v1073 = vpack.c.b16 %v913, %v912
  %v1074 = vpack.c.b16 %v915, %v914
  %v1075 = vpack.c.b16 %v917, %v916
  %v1076 = vpack.c.b16 %v919, %v918
  %v1077 = vpack.c.b16 %v921, %v920
  %v1078 = vpack.c.b16 %v923, %v922
  %v1079 = vpack.c.b16 %v925, %v924
  %v1080 = vpack.c.b16 %v927, %v926
  %v1081 = vpack.c.b16 %v929, %v928
  %v1082 = vpack.c.b16 %v931, %v930
  %v1083 = vpack.c.b16 %v933, %v932
  %v1084 = vpack.c.b16 %v935, %v934
  %v1085 = vpack.c.b16 %v937, %v936
  %v1086 = vpack.c.b16 %v939, %v938
  %v1087 = vpack.c.b16 %v941, %v940
  %v1088 = vpack.c.b16 %v943, %v942
  %v1089 = vpack.c.b16 %v945, %v944
  %v1090 = vpack.c.b16 %v947, %v946
  %v1091 = vpack.c.b16 %v949, %v948
  %v1092 = vpack.c.b16 %v951, %v950
  %v1093 = vpack.c.b16 %v953, %v952
  %v1094 = vpack.c.b16 %v955, %v954
  %v1095 = vpack.c.b16 %v957, %v956
  %v1096 = vpack.c.b16 %v959, %v958
  %v1097 = vpack.c.b16 %v961, %v960
  %v1098 = vpack.c.b16 %v963, %v962
  %v1099 = vpack.c.b16 %v965, %v964
  %v1100 = vpack.c.b16 %v967, %v966
  %v1101 = vpack.c.b16 %v969, %v968
  %v1102 = vpack.c.b16 %v971, %v970
  %v1103 = vpack.c.b16 %v973, %v972
  %v1104 = vpack.c.b16 %v975, %v974
  %v1105 = vpack.c.b16 %v977, %v976
  %1234 = vmatprep.subr.bf16.mxu0 0
  %1235 = vmatpush1.bf16.msra.mxu0 %v978
  %1236 = vmatprep.subr.bf16.mxu0 0
  %1237 = vmatpush1.bf16.msra.mxu0 %v979
  %1238 = vmatprep.subr.bf16.mxu0 0
  %1239 = vmatpush1.bf16.msra.mxu0 %v980
  %1240 = vmatprep.subr.bf16.mxu0 0
  %1241 = vmatpush1.bf16.msra.mxu0 %v981
  %1242 = vmatprep.subr.bf16.mxu0 0
  %1243 = vmatpush1.bf16.msra.mxu0 %v982
  %1244 = vmatprep.subr.bf16.mxu0 0
  %1245 = vmatpush1.bf16.msra.mxu0 %v983
  %1246 = vmatprep.subr.bf16.mxu0 0
  %1247 = vmatpush1.bf16.msra.mxu0 %v984
  %1248 = vmatprep.subr.bf16.mxu0 0
  %1249 = vmatpush1.bf16.msra.mxu0 %v985
  %1250 = vmatprep.subr.bf16.mxu0 0
  %1251 = vmatpush1.bf16.msra.mxu0 %v986
  %1252 = vmatprep.subr.bf16.mxu0 0
  %1253 = vmatpush1.bf16.msra.mxu0 %v987
  %1254 = vmatprep.subr.bf16.mxu0 0
  %1255 = vmatpush1.bf16.msra.mxu0 %v988
  %1256 = vmatprep.subr.bf16.mxu0 0
  %1257 = vmatpush1.bf16.msra.mxu0 %v989
  %1258 = vmatprep.subr.bf16.mxu0 0
  %1259 = vmatpush1.bf16.msra.mxu0 %v990
  %1260 = vmatprep.subr.bf16.mxu0 0
  %1261 = vmatpush1.bf16.msra.mxu0 %v991
  %1262 = vmatprep.subr.bf16.mxu0 0
  %1263 = vmatpush1.bf16.msra.mxu0 %v992
  %1264 = vmatprep.subr.bf16.mxu0 0
  %1265 = vmatpush1.bf16.msra.mxu0 %v993
  %1266 = vmatprep.mubr.bf16.mxu0 %v403
  %1267 = vmatmul.mubr.bf16.gmra.mrb[0].mxu0 %v402
  %v1268 = vpop.f32.mrb[0].mxu0
  %v1269 = vadd.f32 0.0, %v1268
  %v1270 = vpop.f32.mrb[0].mxu0
  %v1271 = vpop.f32.mrb[0].mxu0
  %v1272 = vadd.f32 0.0, %v1271
  %v1273 = vpop.f32.mrb[0].mxu0
  %1274 = vmatprep.mubr.bf16.mxu0 %v419
  %1275 = vmatmul.mubr.bf16.gmra.mrb[0].mxu0 %v418
  %v1276 = vpop.f32.mrb[0].mxu0
  %v1277 = vadd.f32 0.0, %v1276
  %v1278 = vpop.f32.mrb[0].mxu0
  %v1279 = vpop.f32.mrb[0].mxu0
  %v1280 = vadd.f32 0.0, %v1279
  %v1281 = vpop.f32.mrb[0].mxu0
  %1282 = vdwg.mxu0
  %1283 = vmatprep.subr.bf16.mxu0 0
  %1284 = vmatpush1.bf16.msra.mxu0 %v994
  %1285 = vmatprep.subr.bf16.mxu0 0
  %1286 = vmatpush1.bf16.msra.mxu0 %v995
  %1287 = vmatprep.subr.bf16.mxu0 0
  %1288 = vmatpush1.bf16.msra.mxu0 %v996
  %1289 = vmatprep.subr.bf16.mxu0 0
  %1290 = vmatpush1.bf16.msra.mxu0 %v997
  %1291 = vmatprep.subr.bf16.mxu0 0
  %1292 = vmatpush1.bf16.msra.mxu0 %v998
  %1293 = vmatprep.subr.bf16.mxu0 0
  %1294 = vmatpush1.bf16.msra.mxu0 %v999
  %1295 = vmatprep.subr.bf16.mxu0 0
  %1296 = vmatpush1.bf16.msra.mxu0 %v1000
  %1297 = vmatprep.subr.bf16.mxu0 0
  %1298 = vmatpush1.bf16.msra.mxu0 %v1001
  %1299 = vmatprep.subr.bf16.mxu0 0
  %1300 = vmatpush1.bf16.msra.mxu0 %v1002
  %1301 = vmatprep.subr.bf16.mxu0 0
  %1302 = vmatpush1.bf16.msra.mxu0 %v1003
  %1303 = vmatprep.subr.bf16.mxu0 0
  %1304 = vmatpush1.bf16.msra.mxu0 %v1004
  %1305 = vmatprep.subr.bf16.mxu0 0
  %1306 = vmatpush1.bf16.msra.mxu0 %v1005
  %1307 = vmatprep.subr.bf16.mxu0 0
  %1308 = vmatpush1.bf16.msra.mxu0 %v1006
  %1309 = vmatprep.subr.bf16.mxu0 0
  %1310 = vmatpush1.bf16.msra.mxu0 %v1007
  %1311 = vmatprep.subr.bf16.mxu0 0
  %1312 = vmatpush1.bf16.msra.mxu0 %v1008
  %1313 = vmatprep.subr.bf16.mxu0 0
  %1314 = vmatpush1.bf16.msra.mxu0 %v1009
  %1315 = vmatprep.mubr.bf16.mxu0 %v405
  %1316 = vmatmul.mubr.bf16.gmra.mrb[0].mxu0 %v404
  %v1317 = vpop.f32.mrb[0].mxu0
  %v1318 = vadd.f32 %v1269, %v1317
  %v1319 = vpop.f32.mrb[0].mxu0
  %v1320 = vpop.f32.mrb[0].mxu0
  %v1321 = vadd.f32 %v1272, %v1320
  %v1322 = vpop.f32.mrb[0].mxu0
  %1323 = vmatprep.mubr.bf16.mxu0 %v421
  %1324 = vmatmul.mubr.bf16.gmra.mrb[0].mxu0 %v420
  %v1325 = vpop.f32.mrb[0].mxu0
  %v1326 = vadd.f32 %v1277, %v1325
  %v1327 = vpop.f32.mrb[0].mxu0
  %v1328 = vpop.f32.mrb[0].mxu0
  %v1329 = vadd.f32 %v1280, %v1328
  %v1330 = vpop.f32.mrb[0].mxu0
  %1331 = vdwg.mxu0
  %1332 = vmatprep.subr.bf16.mxu0 0
  %1333 = vmatpush1.bf16.msra.mxu0 %v1010
  %1334 = vmatprep.subr.bf16.mxu0 0
  %1335 = vmatpush1.bf16.msra.mxu0 %v1011
  %1336 = vmatprep.subr.bf16.mxu0 0
  %1337 = vmatpush1.bf16.msra.mxu0 %v1012
  %1338 = vmatprep.subr.bf16.mxu0 0
  %1339 = vmatpush1.bf16.msra.mxu0 %v1013
  %1340 = vmatprep.subr.bf16.mxu0 0
  %1341 = vmatpush1.bf16.msra.mxu0 %v1014
  %1342 = vmatprep.subr.bf16.mxu0 0
  %1343 = vmatpush1.bf16.msra.mxu0 %v1015
  %1344 = vmatprep.subr.bf16.mxu0 0
  %1345 = vmatpush1.bf16.msra.mxu0 %v1016
  %1346 = vmatprep.subr.bf16.mxu0 0
  %1347 = vmatpush1.bf16.msra.mxu0 %v1017
  %1348 = vmatprep.subr.bf16.mxu0 0
  %1349 = vmatpush1.bf16.msra.mxu0 %v1018
  %1350 = vmatprep.subr.bf16.mxu0 0
  %1351 = vmatpush1.bf16.msra.mxu0 %v1019
  %1352 = vmatprep.subr.bf16.mxu0 0
  %1353 = vmatpush1.bf16.msra.mxu0 %v1020
  %1354 = vmatprep.subr.bf16.mxu0 0
  %1355 = vmatpush1.bf16.msra.mxu0 %v1021
  %1356 = vmatprep.subr.bf16.mxu0 0
  %1357 = vmatpush1.bf16.msra.mxu0 %v1022
  %1358 = vmatprep.subr.bf16.mxu0 0
  %1359 = vmatpush1.bf16.msra.mxu0 %v1023
  %1360 = vmatprep.subr.bf16.mxu0 0
  %1361 = vmatpush1.bf16.msra.mxu0 %v1024
  %1362 = vmatprep.subr.bf16.mxu0 0
  %1363 = vmatpush1.bf16.msra.mxu0 %v1025
  %1364 = vmatprep.mubr.bf16.mxu0 %v407
  %1365 = vmatmul.mubr.bf16.gmra.mrb[0].mxu0 %v406
  %v1366 = vpop.f32.mrb[0].mxu0
  %v1367 = vadd.f32 %v1318, %v1366
  %v1368 = vpop.f32.mrb[0].mxu0
  %v1369 = vpop.f32.mrb[0].mxu0
  %v1370 = vadd.f32 %v1321, %v1369
  %v1371 = vpop.f32.mrb[0].mxu0
  %1372 = vmatprep.mubr.bf16.mxu0 %v423
  %1373 = vmatmul.mubr.bf16.gmra.mrb[0].mxu0 %v422
  %v1374 = vpop.f32.mrb[0].mxu0
  %v1375 = vadd.f32 %v1326, %v1374
  %v1376 = vpop.f32.mrb[0].mxu0
  %v1377 = vpop.f32.mrb[0].mxu0
  %v1378 = vadd.f32 %v1329, %v1377
  %v1379 = vpop.f32.mrb[0].mxu0
  %1380 = vdwg.mxu0
  %1381 = vmatprep.subr.bf16.mxu0 0
  %1382 = vmatpush1.bf16.msra.mxu0 %v1026
  %1383 = vmatprep.subr.bf16.mxu0 0
  %1384 = vmatpush1.bf16.msra.mxu0 %v1027
  %1385 = vmatprep.subr.bf16.mxu0 0
  %1386 = vmatpush1.bf16.msra.mxu0 %v1028
  %1387 = vmatprep.subr.bf16.mxu0 0
  %1388 = vmatpush1.bf16.msra.mxu0 %v1029
  %1389 = vmatprep.subr.bf16.mxu0 0
  %1390 = vmatpush1.bf16.msra.mxu0 %v1030
  %1391 = vmatprep.subr.bf16.mxu0 0
  %1392 = vmatpush1.bf16.msra.mxu0 %v1031
  %1393 = vmatprep.subr.bf16.mxu0 0
  %1394 = vmatpush1.bf16.msra.mxu0 %v1032
  %1395 = vmatprep.subr.bf16.mxu0 0
  %1396 = vmatpush1.bf16.msra.mxu0 %v1033
  %1397 = vmatprep.subr.bf16.mxu0 0
  %1398 = vmatpush1.bf16.msra.mxu0 %v1034
  %1399 = vmatprep.subr.bf16.mxu0 0
  %1400 = vmatpush1.bf16.msra.mxu0 %v1035
  %1401 = vmatprep.subr.bf16.mxu0 0
  %1402 = vmatpush1.bf16.msra.mxu0 %v1036
  %1403 = vmatprep.subr.bf16.mxu0 0
  %1404 = vmatpush1.bf16.msra.mxu0 %v1037
  %1405 = vmatprep.subr.bf16.mxu0 0
  %1406 = vmatpush1.bf16.msra.mxu0 %v1038
  %1407 = vmatprep.subr.bf16.mxu0 0
  %1408 = vmatpush1.bf16.msra.mxu0 %v1039
  %1409 = vmatprep.subr.bf16.mxu0 0
  %1410 = vmatpush1.bf16.msra.mxu0 %v1040
  %1411 = vmatprep.subr.bf16.mxu0 0
  %1412 = vmatpush1.bf16.msra.mxu0 %v1041
  %1413 = vmatprep.mubr.bf16.mxu0 %v409
  %1414 = vmatmul.mubr.bf16.gmra.mrb[0].mxu0 %v408
  %v1415 = vpop.f32.mrb[0].mxu0
  %v1416 = vadd.f32 %v1367, %v1415
  %v1417 = vpop.f32.mrb[0].mxu0
  %v1418 = vpop.f32.mrb[0].mxu0
  %v1419 = vadd.f32 %v1370, %v1418
  %v1420 = vpop.f32.mrb[0].mxu0
  %1421 = vmatprep.mubr.bf16.mxu0 %v425
  %1422 = vmatmul.mubr.bf16.gmra.mrb[0].mxu0 %v424
  %v1423 = vpop.f32.mrb[0].mxu0
  %v1424 = vadd.f32 %v1375, %v1423
  %v1425 = vpop.f32.mrb[0].mxu0
  %v1426 = vpop.f32.mrb[0].mxu0
  %v1427 = vadd.f32 %v1378, %v1426
  %v1428 = vpop.f32.mrb[0].mxu0
  %1429 = vdwg.mxu0
  %1430 = vmatprep.subr.bf16.mxu0 0
  %1431 = vmatpush1.bf16.msra.mxu0 %v1042
  %1432 = vmatprep.subr.bf16.mxu0 0
  %1433 = vmatpush1.bf16.msra.mxu0 %v1043
  %1434 = vmatprep.subr.bf16.mxu0 0
  %1435 = vmatpush1.bf16.msra.mxu0 %v1044
  %1436 = vmatprep.subr.bf16.mxu0 0
  %1437 = vmatpush1.bf16.msra.mxu0 %v1045
  %1438 = vmatprep.subr.bf16.mxu0 0
  %1439 = vmatpush1.bf16.msra.mxu0 %v1046
  %1440 = vmatprep.subr.bf16.mxu0 0
  %1441 = vmatpush1.bf16.msra.mxu0 %v1047
  %1442 = vmatprep.subr.bf16.mxu0 0
  %1443 = vmatpush1.bf16.msra.mxu0 %v1048
  %1444 = vmatprep.subr.bf16.mxu0 0
  %1445 = vmatpush1.bf16.msra.mxu0 %v1049
  %1446 = vmatprep.subr.bf16.mxu0 0
  %1447 = vmatpush1.bf16.msra.mxu0 %v1050
  %1448 = vmatprep.subr.bf16.mxu0 0
  %1449 = vmatpush1.bf16.msra.mxu0 %v1051
  %1450 = vmatprep.subr.bf16.mxu0 0
  %1451 = vmatpush1.bf16.msra.mxu0 %v1052
  %1452 = vmatprep.subr.bf16.mxu0 0
  %1453 = vmatpush1.bf16.msra.mxu0 %v1053
  %1454 = vmatprep.subr.bf16.mxu0 0
  %1455 = vmatpush1.bf16.msra.mxu0 %v1054
  %1456 = vmatprep.subr.bf16.mxu0 0
  %1457 = vmatpush1.bf16.msra.mxu0 %v1055
  %1458 = vmatprep.subr.bf16.mxu0 0
  %1459 = vmatpush1.bf16.msra.mxu0 %v1056
  %1460 = vmatprep.subr.bf16.mxu0 0
  %1461 = vmatpush1.bf16.msra.mxu0 %v1057
  %1462 = vmatprep.mubr.bf16.mxu0 %v411
  %1463 = vmatmul.mubr.bf16.gmra.mrb[0].mxu0 %v410
  %v1464 = vpop.f32.mrb[0].mxu0
  %v1465 = vadd.f32 %v1416, %v1464
  %v1466 = vpop.f32.mrb[0].mxu0
  %v1467 = vpop.f32.mrb[0].mxu0
  %v1468 = vadd.f32 %v1419, %v1467
  %v1469 = vpop.f32.mrb[0].mxu0
  %1470 = vmatprep.mubr.bf16.mxu0 %v427
  %1471 = vmatmul.mubr.bf16.gmra.mrb[0].mxu0 %v426
  %v1472 = vpop.f32.mrb[0].mxu0
  %v1473 = vadd.f32 %v1424, %v1472
  %v1474 = vpop.f32.mrb[0].mxu0
  %v1475 = vpop.f32.mrb[0].mxu0
  %v1476 = vadd.f32 %v1427, %v1475
  %v1477 = vpop.f32.mrb[0].mxu0
  %1478 = vdwg.mxu0
  %1479 = vmatprep.subr.bf16.mxu0 0
  %1480 = vmatpush1.bf16.msra.mxu0 %v1058
  %1481 = vmatprep.subr.bf16.mxu0 0
  %1482 = vmatpush1.bf16.msra.mxu0 %v1059
  %1483 = vmatprep.subr.bf16.mxu0 0
  %1484 = vmatpush1.bf16.msra.mxu0 %v1060
  %1485 = vmatprep.subr.bf16.mxu0 0
  %1486 = vmatpush1.bf16.msra.mxu0 %v1061
  %1487 = vmatprep.subr.bf16.mxu0 0
  %1488 = vmatpush1.bf16.msra.mxu0 %v1062
  %1489 = vmatprep.subr.bf16.mxu0 0
  %1490 = vmatpush1.bf16.msra.mxu0 %v1063
  %1491 = vmatprep.subr.bf16.mxu0 0
  %1492 = vmatpush1.bf16.msra.mxu0 %v1064
  %1493 = vmatprep.subr.bf16.mxu0 0
  %1494 = vmatpush1.bf16.msra.mxu0 %v1065
  %1495 = vmatprep.subr.bf16.mxu0 0
  %1496 = vmatpush1.bf16.msra.mxu0 %v1066
  %1497 = vmatprep.subr.bf16.mxu0 0
  %1498 = vmatpush1.bf16.msra.mxu0 %v1067
  %1499 = vmatprep.subr.bf16.mxu0 0
  %1500 = vmatpush1.bf16.msra.mxu0 %v1068
  %1501 = vmatprep.subr.bf16.mxu0 0
  %1502 = vmatpush1.bf16.msra.mxu0 %v1069
  %1503 = vmatprep.subr.bf16.mxu0 0
  %1504 = vmatpush1.bf16.msra.mxu0 %v1070
  %1505 = vmatprep.subr.bf16.mxu0 0
  %1506 = vmatpush1.bf16.msra.mxu0 %v1071
  %1507 = vmatprep.subr.bf16.mxu0 0
  %1508 = vmatpush1.bf16.msra.mxu0 %v1072
  %1509 = vmatprep.subr.bf16.mxu0 0
  %1510 = vmatpush1.bf16.msra.mxu0 %v1073
  %1511 = vmatprep.mubr.bf16.mxu0 %v413
  %1512 = vmatmul.mubr.bf16.gmra.mrb[0].mxu0 %v412
  %v1513 = vpop.f32.mrb[0].mxu0
  %v1514 = vadd.f32 %v1465, %v1513
  %v1515 = vpop.f32.mrb[0].mxu0
  %v1516 = vpop.f32.mrb[0].mxu0
  %v1517 = vadd.f32 %v1468, %v1516
  %v1518 = vpop.f32.mrb[0].mxu0
  %1519 = vmatprep.mubr.bf16.mxu0 %v429
  %1520 = vmatmul.mubr.bf16.gmra.mrb[0].mxu0 %v428
  %v1521 = vpop.f32.mrb[0].mxu0
  %v1522 = vadd.f32 %v1473, %v1521
  %v1523 = vpop.f32.mrb[0].mxu0
  %v1524 = vpop.f32.mrb[0].mxu0
  %v1525 = vadd.f32 %v1476, %v1524
  %v1526 = vpop.f32.mrb[0].mxu0
  %1527 = vdwg.mxu0
  %1528 = vmatprep.subr.bf16.mxu0 0
  %1529 = vmatpush1.bf16.msra.mxu0 %v1074
  %1530 = vmatprep.subr.bf16.mxu0 0
  %1531 = vmatpush1.bf16.msra.mxu0 %v1075
  %1532 = vmatprep.subr.bf16.mxu0 0
  %1533 = vmatpush1.bf16.msra.mxu0 %v1076
  %1534 = vmatprep.subr.bf16.mxu0 0
  %1535 = vmatpush1.bf16.msra.mxu0 %v1077
  %1536 = vmatprep.subr.bf16.mxu0 0
  %1537 = vmatpush1.bf16.msra.mxu0 %v1078
  %1538 = vmatprep.subr.bf16.mxu0 0
  %1539 = vmatpush1.bf16.msra.mxu0 %v1079
  %1540 = vmatprep.subr.bf16.mxu0 0
  %1541 = vmatpush1.bf16.msra.mxu0 %v1080
  %1542 = vmatprep.subr.bf16.mxu0 0
  %1543 = vmatpush1.bf16.msra.mxu0 %v1081
  %1544 = vmatprep.subr.bf16.mxu0 0
  %1545 = vmatpush1.bf16.msra.mxu0 %v1082
  %1546 = vmatprep.subr.bf16.mxu0 0
  %1547 = vmatpush1.bf16.msra.mxu0 %v1083
  %1548 = vmatprep.subr.bf16.mxu0 0
  %1549 = vmatpush1.bf16.msra.mxu0 %v1084
  %1550 = vmatprep.subr.bf16.mxu0 0
  %1551 = vmatpush1.bf16.msra.mxu0 %v1085
  %1552 = vmatprep.subr.bf16.mxu0 0
  %1553 = vmatpush1.bf16.msra.mxu0 %v1086
  %1554 = vmatprep.subr.bf16.mxu0 0
  %1555 = vmatpush1.bf16.msra.mxu0 %v1087
  %1556 = vmatprep.subr.bf16.mxu0 0
  %1557 = vmatpush1.bf16.msra.mxu0 %v1088
  %1558 = vmatprep.subr.bf16.mxu0 0
  %1559 = vmatpush1.bf16.msra.mxu0 %v1089
  %1560 = vmatprep.mubr.bf16.mxu0 %v415
  %1561 = vmatmul.mubr.bf16.gmra.mrb[0].mxu0 %v414
  %v1562 = vpop.f32.mrb[0].mxu0
  %v1563 = vadd.f32 %v1514, %v1562
  %v1564 = vpop.f32.mrb[0].mxu0
  %v1565 = vpop.f32.mrb[0].mxu0
  %v1566 = vadd.f32 %v1517, %v1565
  %v1567 = vpop.f32.mrb[0].mxu0
  %1568 = vmatprep.mubr.bf16.mxu0 %v431
  %1569 = vmatmul.mubr.bf16.gmra.mrb[0].mxu0 %v430
  %v1570 = vpop.f32.mrb[0].mxu0
  %v1571 = vadd.f32 %v1522, %v1570
  %v1572 = vpop.f32.mrb[0].mxu0
  %v1573 = vpop.f32.mrb[0].mxu0
  %v1574 = vadd.f32 %v1525, %v1573
  %v1575 = vpop.f32.mrb[0].mxu0
  %1576 = vdwg.mxu0
  %1577 = vmatprep.subr.bf16.mxu0 0
  %1578 = vmatpush1.bf16.msra.mxu0 %v1090
  %1579 = vmatprep.subr.bf16.mxu0 0
  %1580 = vmatpush1.bf16.msra.mxu0 %v1091
  %1581 = vmatprep.subr.bf16.mxu0 0
  %1582 = vmatpush1.bf16.msra.mxu0 %v1092
  %1583 = vmatprep.subr.bf16.mxu0 0
  %1584 = vmatpush1.bf16.msra.mxu0 %v1093
  %1585 = vmatprep.subr.bf16.mxu0 0
  %1586 = vmatpush1.bf16.msra.mxu0 %v1094
  %1587 = vmatprep.subr.bf16.mxu0 0
  %1588 = vmatpush1.bf16.msra.mxu0 %v1095
  %1589 = vmatprep.subr.bf16.mxu0 0
  %1590 = vmatpush1.bf16.msra.mxu0 %v1096
  %1591 = vmatprep.subr.bf16.mxu0 0
  %1592 = vmatpush1.bf16.msra.mxu0 %v1097
  %1593 = vmatprep.subr.bf16.mxu0 0
  %1594 = vmatpush1.bf16.msra.mxu0 %v1098
  %1595 = vmatprep.subr.bf16.mxu0 0
  %1596 = vmatpush1.bf16.msra.mxu0 %v1099
  %1597 = vmatprep.subr.bf16.mxu0 0
  %1598 = vmatpush1.bf16.msra.mxu0 %v1100
  %1599 = vmatprep.subr.bf16.mxu0 0
  %1600 = vmatpush1.bf16.msra.mxu0 %v1101
  %1601 = vmatprep.subr.bf16.mxu0 0
  %1602 = vmatpush1.bf16.msra.mxu0 %v1102
  %1603 = vmatprep.subr.bf16.mxu0 0
  %1604 = vmatpush1.bf16.msra.mxu0 %v1103
  %1605 = vmatprep.subr.bf16.mxu0 0
  %1606 = vmatpush1.bf16.msra.mxu0 %v1104
  %1607 = vmatprep.subr.bf16.mxu0 0
  %1608 = vmatpush1.bf16.msra.mxu0 %v1105
  %1609 = vmatprep.mubr.bf16.mxu0 %v417
  %1610 = vmatmul.mubr.bf16.gmra.mrb[0].mxu0 %v416
  %v1611 = vpop.f32.mrb[0].mxu0
  %v1612 = vadd.f32 %v1563, %v1611
  %v1613 = vpop.f32.mrb[0].mxu0
  %v1614 = vpop.f32.mrb[0].mxu0
  %v1615 = vadd.f32 %v1566, %v1614
  %v1616 = vpop.f32.mrb[0].mxu0
  %1617 = vmatprep.mubr.bf16.mxu0 %v433
  %1618 = vmatmul.mubr.bf16.gmra.mrb[0].mxu0 %v432
  %v1619 = vpop.f32.mrb[0].mxu0
  %v1620 = vadd.f32 %v1571, %v1619
  %v1621 = vpop.f32.mrb[0].mxu0
  %v1622 = vpop.f32.mrb[0].mxu0
  %v1623 = vadd.f32 %v1574, %v1622
  %v1624 = vpop.f32.mrb[0].mxu0
  %1625 = vdwg.mxu0
  %v1626 = vadd.f32 %v1612, %v1615
  %v1627 = vadd.f32 %v1626, %v1620
  %v1628 = vadd.f32 %v1627, %v1623
  %v1629 = vrot.slane %v1628, 4
  %v1630 = vadd.f32 %v1628, %v1629
  %v1631 = vrot.slane %v1630, 2
  %v1632 = vadd.f32 %v1630, %v1631
  %v1633 = vrot.slane %v1632, 1
  %v1634 = vadd.f32 %v1632, %v1633
  %v1635 = vrcp.pop 32.0
  %v1636 = vmul.f32 %v1634, %v1635
  %v1637 = vsub.f32 %v1612, %v1636
  %v1638 = vsub.f32 %v1615, %v1636
  %v1639 = vsub.f32 %v1620, %v1636
  %v1640 = vsub.f32 %v1623, %v1636
  %v1641 = vmul.f32 %v1637, %v1637
  %v1642 = vmul.f32 %v1638, %v1638
  %v1643 = vmul.f32 %v1639, %v1639
  %v1644 = vmul.f32 %v1640, %v1640
  %v1645 = vadd.f32 %v1641, %v1642
  %v1646 = vadd.f32 %v1645, %v1643
  %v1647 = vadd.f32 %v1646, %v1644
  %v1648 = vrot.slane %v1647, 4
  %v1649 = vadd.f32 %v1647, %v1648
  %v1650 = vrot.slane %v1649, 2
  %v1651 = vadd.f32 %v1649, %v1650
  %v1652 = vrot.slane %v1651, 1
  %v1653 = vadd.f32 %v1651, %v1652
  %v1654 = vmul.f32 %v1653, %v1635
  %v1655 = vadd.f32 %v1654, 1e-05
  %v1656 = vrsqrt.pop %v1655
  %v1657 = vmul.f32 %v1637, %v1656
  %v1658 = vmul.f32 %v1638, %v1656
  %v1659 = vmul.f32 %v1639, %v1656
  %v1660 = vmul.f32 %v1640, %v1656
  %v1661 = vld [vmem:[%s2] sm:$0x1]
  %v1663 = vlaneseq
  %v1664 = vshrl.u32 %v1663, 7
  %v1665 = vsub.s32 0, %v1664
  %v1666 = vrot.slane %v1661, %v1665
  %v1668 = vmul.f32 %v1657, %v1666
  %v1669 = vmul.f32 %v1658, %v1666
  %v1670 = vmul.f32 %v1659, %v1666
  %v1671 = vmul.f32 %v1660, %v1666
  %v1672 = vld [vmem:[%s3] sm:$0x1]
  %v1674 = vlaneseq
  %v1675 = vshrl.u32 %v1674, 7
  %v1676 = vsub.s32 0, %v1675
  %v1677 = vrot.slane %v1672, %v1676
  %v1679 = vadd.f32 %v1668, %v1677
  %v1680 = vadd.f32 %v1669, %v1677
  %v1681 = vadd.f32 %v1670, %v1677
  %v1682 = vadd.f32 %v1671, %v1677
  %vm1683 = vcmp.ge.f32.partialorder %v1679, 0.0
  %vm1684 = vcmp.ge.f32.partialorder %v1680, 0.0
  %vm1685 = vcmp.ge.f32.partialorder %v1681, 0.0
  %vm1686 = vcmp.ge.f32.partialorder %v1682, 0.0
  %v1687 = vmul.f32 %v1679, 0.2
  %v1688 = vmul.f32 %v1680, 0.2
  %v1689 = vmul.f32 %v1681, 0.2
  %v1690 = vmul.f32 %v1682, 0.2
  %v1691 = vsel %vm1683, %v1679, %v1687
  %v1692 = vsel %vm1684, %v1680, %v1688
  %v1693 = vsel %vm1685, %v1681, %v1689
  %v1694 = vsel %vm1686, %v1682, %v1690
  %v1695 = vpack.c.bf16 %v1692, %v1691
  %v1696 = vpack.c.bf16 %v1694, %v1693
  %v1699 = vunpack.c.l.b16 %v1695
  %v1700 = vunpack.c.h.b16 %v1695
  %v1701 = vunpack.c.l.b16 %v1696
  %v1702 = vunpack.c.h.b16 %v1696
  %v1703 = vpack.c.b16 %v1699, %v1699
  %v1704 = vpack.c.b16 %v1700, %v1700
  %v1705 = vpack.c.b16 %v1701, %v1701
  %v1706 = vpack.c.b16 %v1702, %v1702
  %1711 = vst [vmem:[%s4] sm:$0xf] %v1703
  %1712 = vst [vmem:[%s4 + $0x4] sm:$0xf] %v1704
  %1713 = vst [vmem:[%s4 + $0x8] sm:$0xf] %v1705
  %1714 = vst [vmem:[%s4 + $0xc] sm:$0xf] %v1706
  // Predicated region
  $region18: #{dc_discriminator_forward.6} parent=0 // pred_check
    _
  $region19: #{dc_discriminator_forward.6} parent=0 // pred_check_branch
    %1716 = sbr.rel (0) target = $region21
  $region20: #{dc_discriminator_forward.6} parent=0 // pred_region
    _
  $region21: #{dc_discriminator_forward.6} parent=0 // pred_fallthru
    _
  // Predicated region
  $region22: #{dc_discriminator_forward.6} parent=0 // pred_check
    _
  $region23: #{dc_discriminator_forward.6} parent=0 // pred_check_branch
    %1718 = sbr.rel (0) target = $region25
  $region24: #{dc_discriminator_forward.6} parent=0 // pred_region
    _
  $region25: #{dc_discriminator_forward.6} parent=0 // pred_fallthru
    _

// kernel: dc_discriminator_forward.7
$region0: #{dc_discriminator_forward.7}
  #allocation0 [shape = 'u32[]', space=smem, size = 0x4, offset = 0x4, fixed_abs, tag = 'smem constant byte address 0x4 - core index']
  #allocation1 [shape = 'u32[144,128]{1,0:T(1,128)}', space=vmem, size = 0x12000, scoped, tag = 'internal scratch']
  %s0 = inlined_call_operand.vmem [shape: bf16[2,2048], index: 0, kind: input, shape index: {}]
  %s1 = inlined_call_operand.vmem [shape: bf16[2048,128], index: 1, kind: input, shape index: {}]
  %s2 = inlined_call_operand.vmem [shape: f32[1,128], index: 2, kind: input, shape index: {}]
  %s3 = inlined_call_operand.vmem [shape: f32[1,128], index: 3, kind: input, shape index: {}]
  %s4 = inlined_call_operand.vmem [shape: f32[2,128], index: 4, kind: output, shape index: {}]
  %s5 = sld [smem:[#allocation0]]
  $region26: #{dc_discriminator_forward.7} parent=0
    _
  %s7 = ssub.s32 1, %s5
  %s8 = scalar_select 0, %s7, %s5
  // Predicated region
  $region2: #{dc_discriminator_forward.7} parent=0 // pred_check
    _
  $region3: #{dc_discriminator_forward.7} parent=0 // pred_check_branch
    %10 = sbr.rel (0) target = $region5
  $region4: #{dc_discriminator_forward.7} parent=0 // pred_region
    _
  $region5: #{dc_discriminator_forward.7} parent=0 // pred_fallthru
    _
  // Predicated region
  $region6: #{dc_discriminator_forward.7} parent=0 // pred_check
    _
  $region7: #{dc_discriminator_forward.7} parent=0 // pred_check_branch
    %12 = sbr.rel (0) target = $region9
  $region8: #{dc_discriminator_forward.7} parent=0 // pred_region
    _
  $region9: #{dc_discriminator_forward.7} parent=0 // pred_fallthru
    _
  // Predicated region
  $region10: #{dc_discriminator_forward.7} parent=0 // pred_check
    _
  $region11: #{dc_discriminator_forward.7} parent=0 // pred_check_branch
    %14 = sbr.rel (0) target = $region13
  $region12: #{dc_discriminator_forward.7} parent=0 // pred_region
    _
  $region13: #{dc_discriminator_forward.7} parent=0 // pred_fallthru
    _
  // Predicated region
  $region14: #{dc_discriminator_forward.7} parent=0 // pred_check
    _
  $region15: #{dc_discriminator_forward.7} parent=0 // pred_check_branch
    %16 = sbr.rel (0) target = $region17
  $region16: #{dc_discriminator_forward.7} parent=0 // pred_region
    _
  $region17: #{dc_discriminator_forward.7} parent=0 // pred_fallthru
    _
  %v18 = vld [vmem:[%s0] sm:$0xff]
  %v19 = vld [vmem:[%s0 + $0x8] sm:$0xff]
  %v20 = vld [vmem:[%s1] sm:$0xf]
  %v21 = vld [vmem:[%s1 + $0x4] sm:$0xf]
  %v22 = vld [vmem:[%s1 + $0x8] sm:$0xf]
  %v23 = vld [vmem:[%s1 + $0xc] sm:$0xf]
  %v24 = vld [vmem:[%s1 + $0x10] sm:$0xf]
  %v25 = vld [vmem:[%s1 + $0x14] sm:$0xf]
  %v26 = vld [vmem:[%s1 + $0x18] sm:$0xf]
  %v27 = vld [vmem:[%s1 + $0x1c] sm:$0xf]
  %v28 = vld [vmem:[%s1 + $0x20] sm:$0xf]
  %v29 = vld [vmem:[%s1 + $0x24] sm:$0xf]
  %v30 = vld [vmem:[%s1 + $0x28] sm:$0xf]
  %v31 = vld [vmem:[%s1 + $0x2c] sm:$0xf]
  %v32 = vld [vmem:[%s1 + $0x30] sm:$0xf]
  %v33 = vld [vmem:[%s1 + $0x34] sm:$0xf]
  %v34 = vld [vmem:[%s1 + $0x38] sm:$0xf]
  %v35 = vld [vmem:[%s1 + $0x3c] sm:$0xf]
  %v36 = vld [vmem:[%s1 + $0x40] sm:$0xf]
  %v37 = vld [vmem:[%s1 + $0x44] sm:$0xf]
  %v38 = vld [vmem:[%s1 + $0x48] sm:$0xf]
  %v39 = vld [vmem:[%s1 + $0x4c] sm:$0xf]
  %v40 = vld [vmem:[%s1 + $0x50] sm:$0xf]
  %v41 = vld [vmem:[%s1 + $0x54] sm:$0xf]
  %v42 = vld [vmem:[%s1 + $0x58] sm:$0xf]
  %v43 = vld [vmem:[%s1 + $0x5c] sm:$0xf]
  %v44 = vld [vmem:[%s1 + $0x60] sm:$0xf]
  %v45 = vld [vmem:[%s1 + $0x64] sm:$0xf]
  %v46 = vld [vmem:[%s1 + $0x68] sm:$0xf]
  %v47 = vld [vmem:[%s1 + $0x6c] sm:$0xf]
  %v48 = vld [vmem:[%s1 + $0x70] sm:$0xf]
  %v49 = vld [vmem:[%s1 + $0x74] sm:$0xf]
  %v50 = vld [vmem:[%s1 + $0x78] sm:$0xf]
  %v51 = vld [vmem:[%s1 + $0x7c] sm:$0xf]
  %v52 = vld [vmem:[%s1 + $0x80] sm:$0xf]
  %v53 = vld [vmem:[%s1 + $0x84] sm:$0xf]
  %v54 = vld [vmem:[%s1 + $0x88] sm:$0xf]
  %v55 = vld [vmem:[%s1 + $0x8c] sm:$0xf]
  %v56 = vld [vmem:[%s1 + $0x90] sm:$0xf]
  %v57 = vld [vmem:[%s1 + $0x94] sm:$0xf]
  %v58 = vld [vmem:[%s1 + $0x98] sm:$0xf]
  %v59 = vld [vmem:[%s1 + $0x9c] sm:$0xf]
  %v60 = vld [vmem:[%s1 + $0xa0] sm:$0xf]
  %v61 = vld [vmem:[%s1 + $0xa4] sm:$0xf]
  %v62 = vld [vmem:[%s1 + $0xa8] sm:$0xf]
  %v63 = vld [vmem:[%s1 + $0xac] sm:$0xf]
  %v64 = vld [vmem:[%s1 + $0xb0] sm:$0xf]
  %v65 = vld [vmem:[%s1 + $0xb4] sm:$0xf]
  %v66 = vld [vmem:[%s1 + $0xb8] sm:$0xf]
  %v67 = vld [vmem:[%s1 + $0xbc] sm:$0xf]
  %v68 = vld [vmem:[%s1 + $0xc0] sm:$0xf]
  %v69 = vld [vmem:[%s1 + $0xc4] sm:$0xf]
  %v70 = vld [vmem:[%s1 + $0xc8] sm:$0xf]
  %v71 = vld [vmem:[%s1 + $0xcc] sm:$0xf]
  %v72 = vld [vmem:[%s1 + $0xd0] sm:$0xf]
  %v73 = vld [vmem:[%s1 + $0xd4] sm:$0xf]
  %v74 = vld [vmem:[%s1 + $0xd8] sm:$0xf]
  %v75 = vld [vmem:[%s1 + $0xdc] sm:$0xf]
  %v76 = vld [vmem:[%s1 + $0xe0] sm:$0xf]
  %v77 = vld [vmem:[%s1 + $0xe4] sm:$0xf]
  %v78 = vld [vmem:[%s1 + $0xe8] sm:$0xf]
  %v79 = vld [vmem:[%s1 + $0xec] sm:$0xf]
  %v80 = vld [vmem:[%s1 + $0xf0] sm:$0xf]
  %v81 = vld [vmem:[%s1 + $0xf4] sm:$0xf]
  %v82 = vld [vmem:[%s1 + $0xf8] sm:$0xf]
  %v83 = vld [vmem:[%s1 + $0xfc] sm:$0xf]
  %v84 = vld [vmem:[%s1 + $0x100] sm:$0xf]
  %v85 = vld [vmem:[%s1 + $0x104] sm:$0xf]
  %v86 = vld [vmem:[%s1 + $0x108] sm:$0xf]
  %v87 = vld [vmem:[%s1 + $0x10c] sm:$0xf]
  %v88 = vld [vmem:[%s1 + $0x110] sm:$0xf]
  %v89 = vld [vmem:[%s1 + $0x114] sm:$0xf]
  %v90 = vld [vmem:[%s1 + $0x118] sm:$0xf]
  %v91 = vld [vmem:[%s1 + $0x11c] sm:$0xf]
  %v92 = vld [vmem:[%s1 + $0x120] sm:$0xf]
  %v93 = vld [vmem:[%s1 + $0x124] sm:$0xf]
  %v94 = vld [vmem:[%s1 + $0x128] sm:$0xf]
  %v95 = vld [vmem:[%s1 + $0x12c] sm:$0xf]
  %v96 = vld [vmem:[%s1 + $0x130] sm:$0xf]
  %v97 = vld [vmem:[%s1 + $0x134] sm:$0xf]
  %v98 = vld [vmem:[%s1 + $0x138] sm:$0xf]
  %v99 = vld [vmem:[%s1 + $0x13c] sm:$0xf]
  %v100 = vld [vmem:[%s1 + $0x140] sm:$0xf]
  %v101 = vld [vmem:[%s1 + $0x144] sm:$0xf]
  %v102 = vld [vmem:[%s1 + $0x148] sm:$0xf]
  %v103 = vld [vmem:[%s1 + $0x14c] sm:$0xf]
  %v104 = vld [vmem:[%s1 + $0x150] sm:$0xf]
  %v105 = vld [vmem:[%s1 + $0x154] sm:$0xf]
  %v106 = vld [vmem:[%s1 + $0x158] sm:$0xf]
  %v107 = vld [vmem:[%s1 + $0x15c] sm:$0xf]
  %v108 = vld [vmem:[%s1 + $0x160] sm:$0xf]
  %v109 = vld [vmem:[%s1 + $0x164] sm:$0xf]
  %v110 = vld [vmem:[%s1 + $0x168] sm:$0xf]
  %v111 = vld [vmem:[%s1 + $0x16c] sm:$0xf]
  %v112 = vld [vmem:[%s1 + $0x170] sm:$0xf]
  %v113 = vld [vmem:[%s1 + $0x174] sm:$0xf]
  %v114 = vld [vmem:[%s1 + $0x178] sm:$0xf]
  %v115 = vld [vmem:[%s1 + $0x17c] sm:$0xf]
  %v116 = vld [vmem:[%s1 + $0x180] sm:$0xf]
  %v117 = vld [vmem:[%s1 + $0x184] sm:$0xf]
  %v118 = vld [vmem:[%s1 + $0x188] sm:$0xf]
  %v119 = vld [vmem:[%s1 + $0x18c] sm:$0xf]
  %v120 = vld [vmem:[%s1 + $0x190] sm:$0xf]
  %v121 = vld [vmem:[%s1 + $0x194] sm:$0xf]
  %v122 = vld [vmem:[%s1 + $0x198] sm:$0xf]
  %v123 = vld [vmem:[%s1 + $0x19c] sm:$0xf]
  %v124 = vld [vmem:[%s1 + $0x1a0] sm:$0xf]
  %v125 = vld [vmem:[%s1 + $0x1a4] sm:$0xf]
  %v126 = vld [vmem:[%s1 + $0x1a8] sm:$0xf]
  %v127 = vld [vmem:[%s1 + $0x1ac] sm:$0xf]
  %v128 = vld [vmem:[%s1 + $0x1b0] sm:$0xf]
  %v129 = vld [vmem:[%s1 + $0x1b4] sm:$0xf]
  %v130 = vld [vmem:[%s1 + $0x1b8] sm:$0xf]
  %v131 = vld [vmem:[%s1 + $0x1bc] sm:$0xf]
  %v132 = vld [vmem:[%s1 + $0x1c0] sm:$0xf]
  %v133 = vld [vmem:[%s1 + $0x1c4] sm:$0xf]
  %v134 = vld [vmem:[%s1 + $0x1c8] sm:$0xf]
  %v135 = vld [vmem:[%s1 + $0x1cc] sm:$0xf]
  %v136 = vld [vmem:[%s1 + $0x1d0] sm:$0xf]
  %v137 = vld [vmem:[%s1 + $0x1d4] sm:$0xf]
  %v138 = vld [vmem:[%s1 + $0x1d8] sm:$0xf]
  %v139 = vld [vmem:[%s1 + $0x1dc] sm:$0xf]
  %v140 = vld [vmem:[%s1 + $0x1e0] sm:$0xf]
  %v141 = vld [vmem:[%s1 + $0x1e4] sm:$0xf]
  %v142 = vld [vmem:[%s1 + $0x1e8] sm:$0xf]
  %v143 = vld [vmem:[%s1 + $0x1ec] sm:$0xf]
  %v144 = vld [vmem:[%s1 + $0x1f0] sm:$0xf]
  %v145 = vld [vmem:[%s1 + $0x1f4] sm:$0xf]
  %v146 = vld [vmem:[%s1 + $0x1f8] sm:$0xf]
  %v147 = vld [vmem:[%s1 + $0x1fc] sm:$0xf]
  %v148 = vld [vmem:[%s1 + $0x200] sm:$0xf]
  %v149 = vld [vmem:[%s1 + $0x204] sm:$0xf]
  %v150 = vld [vmem:[%s1 + $0x208] sm:$0xf]
  %v151 = vld [vmem:[%s1 + $0x20c] sm:$0xf]
  %v152 = vld [vmem:[%s1 + $0x210] sm:$0xf]
  %v153 = vld [vmem:[%s1 + $0x214] sm:$0xf]
  %v154 = vld [vmem:[%s1 + $0x218] sm:$0xf]
  %v155 = vld [vmem:[%s1 + $0x21c] sm:$0xf]
  %v156 = vld [vmem:[%s1 + $0x220] sm:$0xf]
  %v157 = vld [vmem:[%s1 + $0x224] sm:$0xf]
  %v158 = vld [vmem:[%s1 + $0x228] sm:$0xf]
  %v159 = vld [vmem:[%s1 + $0x22c] sm:$0xf]
  %v160 = vld [vmem:[%s1 + $0x230] sm:$0xf]
  %v161 = vld [vmem:[%s1 + $0x234] sm:$0xf]
  %v162 = vld [vmem:[%s1 + $0x238] sm:$0xf]
  %v163 = vld [vmem:[%s1 + $0x23c] sm:$0xf]
  %v164 = vld [vmem:[%s1 + $0x240] sm:$0xf]
  %v165 = vld [vmem:[%s1 + $0x244] sm:$0xf]
  %v166 = vld [vmem:[%s1 + $0x248] sm:$0xf]
  %v167 = vld [vmem:[%s1 + $0x24c] sm:$0xf]
  %v168 = vld [vmem:[%s1 + $0x250] sm:$0xf]
  %v169 = vld [vmem:[%s1 + $0x254] sm:$0xf]
  %v170 = vld [vmem:[%s1 + $0x258] sm:$0xf]
  %v171 = vld [vmem:[%s1 + $0x25c] sm:$0xf]
  %v172 = vld [vmem:[%s1 + $0x260] sm:$0xf]
  %v173 = vld [vmem:[%s1 + $0x264] sm:$0xf]
  %v174 = vld [vmem:[%s1 + $0x268] sm:$0xf]
  %v175 = vld [vmem:[%s1 + $0x26c] sm:$0xf]
  %v176 = vld [vmem:[%s1 + $0x270] sm:$0xf]
  %v177 = vld [vmem:[%s1 + $0x274] sm:$0xf]
  %v178 = vld [vmem:[%s1 + $0x278] sm:$0xf]
  %v179 = vld [vmem:[%s1 + $0x27c] sm:$0xf]
  %v180 = vld [vmem:[%s1 + $0x280] sm:$0xf]
  %v181 = vld [vmem:[%s1 + $0x284] sm:$0xf]
  %v182 = vld [vmem:[%s1 + $0x288] sm:$0xf]
  %v183 = vld [vmem:[%s1 + $0x28c] sm:$0xf]
  %v184 = vld [vmem:[%s1 + $0x290] sm:$0xf]
  %v185 = vld [vmem:[%s1 + $0x294] sm:$0xf]
  %v186 = vld [vmem:[%s1 + $0x298] sm:$0xf]
  %v187 = vld [vmem:[%s1 + $0x29c] sm:$0xf]
  %v188 = vld [vmem:[%s1 + $0x2a0] sm:$0xf]
  %v189 = vld [vmem:[%s1 + $0x2a4] sm:$0xf]
  %v190 = vld [vmem:[%s1 + $0x2a8] sm:$0xf]
  %v191 = vld [vmem:[%s1 + $0x2ac] sm:$0xf]
  %v192 = vld [vmem:[%s1 + $0x2b0] sm:$0xf]
  %v193 = vld [vmem:[%s1 + $0x2b4] sm:$0xf]
  %v194 = vld [vmem:[%s1 + $0x2b8] sm:$0xf]
  %v195 = vld [vmem:[%s1 + $0x2bc] sm:$0xf]
  %v196 = vld [vmem:[%s1 + $0x2c0] sm:$0xf]
  %v197 = vld [vmem:[%s1 + $0x2c4] sm:$0xf]
  %v198 = vld [vmem:[%s1 + $0x2c8] sm:$0xf]
  %v199 = vld [vmem:[%s1 + $0x2cc] sm:$0xf]
  %v200 = vld [vmem:[%s1 + $0x2d0] sm:$0xf]
  %v201 = vld [vmem:[%s1 + $0x2d4] sm:$0xf]
  %v202 = vld [vmem:[%s1 + $0x2d8] sm:$0xf]
  %v203 = vld [vmem:[%s1 + $0x2dc] sm:$0xf]
  %v204 = vld [vmem:[%s1 + $0x2e0] sm:$0xf]
  %v205 = vld [vmem:[%s1 + $0x2e4] sm:$0xf]
  %v206 = vld [vmem:[%s1 + $0x2e8] sm:$0xf]
  %v207 = vld [vmem:[%s1 + $0x2ec] sm:$0xf]
  %v208 = vld [vmem:[%s1 + $0x2f0] sm:$0xf]
  %v209 = vld [vmem:[%s1 + $0x2f4] sm:$0xf]
  %v210 = vld [vmem:[%s1 + $0x2f8] sm:$0xf]
  %v211 = vld [vmem:[%s1 + $0x2fc] sm:$0xf]
  %v212 = vld [vmem:[%s1 + $0x300] sm:$0xf]
  %v213 = vld [vmem:[%s1 + $0x304] sm:$0xf]
  %v214 = vld [vmem:[%s1 + $0x308] sm:$0xf]
  %v215 = vld [vmem:[%s1 + $0x30c] sm:$0xf]
  %v216 = vld [vmem:[%s1 + $0x310] sm:$0xf]
  %v217 = vld [vmem:[%s1 + $0x314] sm:$0xf]
  %v218 = vld [vmem:[%s1 + $0x318] sm:$0xf]
  %v219 = vld [vmem:[%s1 + $0x31c] sm:$0xf]
  %v220 = vld [vmem:[%s1 + $0x320] sm:$0xf]
  %v221 = vld [vmem:[%s1 + $0x324] sm:$0xf]
  %v222 = vld [vmem:[%s1 + $0x328] sm:$0xf]
  %v223 = vld [vmem:[%s1 + $0x32c] sm:$0xf]
  %v224 = vld [vmem:[%s1 + $0x330] sm:$0xf]
  %v225 = vld [vmem:[%s1 + $0x334] sm:$0xf]
  %v226 = vld [vmem:[%s1 + $0x338] sm:$0xf]
  %v227 = vld [vmem:[%s1 + $0x33c] sm:$0xf]
  %v228 = vld [vmem:[%s1 + $0x340] sm:$0xf]
  %v229 = vld [vmem:[%s1 + $0x344] sm:$0xf]
  %v230 = vld [vmem:[%s1 + $0x348] sm:$0xf]
  %v231 = vld [vmem:[%s1 + $0x34c] sm:$0xf]
  %v232 = vld [vmem:[%s1 + $0x350] sm:$0xf]
  %v233 = vld [vmem:[%s1 + $0x354] sm:$0xf]
  %v234 = vld [vmem:[%s1 + $0x358] sm:$0xf]
  %v235 = vld [vmem:[%s1 + $0x35c] sm:$0xf]
  %v236 = vld [vmem:[%s1 + $0x360] sm:$0xf]
  %v237 = vld [vmem:[%s1 + $0x364] sm:$0xf]
  %v238 = vld [vmem:[%s1 + $0x368] sm:$0xf]
  %v239 = vld [vmem:[%s1 + $0x36c] sm:$0xf]
  %v240 = vld [vmem:[%s1 + $0x370] sm:$0xf]
  %v241 = vld [vmem:[%s1 + $0x374] sm:$0xf]
  %v242 = vld [vmem:[%s1 + $0x378] sm:$0xf]
  %v243 = vld [vmem:[%s1 + $0x37c] sm:$0xf]
  %v244 = vld [vmem:[%s1 + $0x380] sm:$0xf]
  %v245 = vld [vmem:[%s1 + $0x384] sm:$0xf]
  %v246 = vld [vmem:[%s1 + $0x388] sm:$0xf]
  %v247 = vld [vmem:[%s1 + $0x38c] sm:$0xf]
  %v248 = vld [vmem:[%s1 + $0x390] sm:$0xf]
  %v249 = vld [vmem:[%s1 + $0x394] sm:$0xf]
  %v250 = vld [vmem:[%s1 + $0x398] sm:$0xf]
  %v251 = vld [vmem:[%s1 + $0x39c] sm:$0xf]
  %v252 = vld [vmem:[%s1 + $0x3a0] sm:$0xf]
  %v253 = vld [vmem:[%s1 + $0x3a4] sm:$0xf]
  %v254 = vld [vmem:[%s1 + $0x3a8] sm:$0xf]
  %v255 = vld [vmem:[%s1 + $0x3ac] sm:$0xf]
  %v256 = vld [vmem:[%s1 + $0x3b0] sm:$0xf]
  %v257 = vld [vmem:[%s1 + $0x3b4] sm:$0xf]
  %v258 = vld [vmem:[%s1 + $0x3b8] sm:$0xf]
  %v259 = vld [vmem:[%s1 + $0x3bc] sm:$0xf]
  %v260 = vld [vmem:[%s1 + $0x3c0] sm:$0xf]
  %v261 = vld [vmem:[%s1 + $0x3c4] sm:$0xf]
  %v262 = vld [vmem:[%s1 + $0x3c8] sm:$0xf]
  %v263 = vld [vmem:[%s1 + $0x3cc] sm:$0xf]
  %v264 = vld [vmem:[%s1 + $0x3d0] sm:$0xf]
  %v265 = vld [vmem:[%s1 + $0x3d4] sm:$0xf]
  %v266 = vld [vmem:[%s1 + $0x3d8] sm:$0xf]
  %v267 = vld [vmem:[%s1 + $0x3dc] sm:$0xf]
  %v268 = vld [vmem:[%s1 + $0x3e0] sm:$0xf]
  %v269 = vld [vmem:[%s1 + $0x3e4] sm:$0xf]
  %v270 = vld [vmem:[%s1 + $0x3e8] sm:$0xf]
  %v271 = vld [vmem:[%s1 + $0x3ec] sm:$0xf]
  %v272 = vld [vmem:[%s1 + $0x3f0] sm:$0xf]
  %v273 = vld [vmem:[%s1 + $0x3f4] sm:$0xf]
  %v274 = vld [vmem:[%s1 + $0x3f8] sm:$0xf]
  %v275 = vld [vmem:[%s1 + $0x3fc] sm:$0xf]
  %v278 = vcombine.high %v18, %v18
  %v280 = vunpack.c.l.s4 1966171168
  %v281 = vunpack.c.0.s8 %v280
  %v282 = vlaneseq
  %v283 = vshrl.u32 %v282, 7
  %v284 = vsub.s32 %v281, %v283
  %v285 = vrot.slane %v18, %v284
  %v287 = vunpack.c.l.s4 1966171168
  %v288 = vunpack.c.0.s8 %v287
  %v289 = vlaneseq
  %v290 = vshrl.u32 %v289, 7
  %v291 = vsub.s32 %v288, %v290
  %v292 = vrot.slane %v278, %v291
  %v293 = vcombine.high %v285, %v285
  %v294 = vcombine.high %v292, %v292
  %v296 = vunpack.c.l.s4 1966171168
  %v297 = vunpack.c.0.s8 %v296
  %v298 = vlaneseq
  %v299 = vshrl.u32 %v298, 7
  %v300 = vsub.s32 %v297, %v299
  %v301 = vrot.slane %v285, %v300
  %v303 = vunpack.c.l.s4 1966171168
  %v304 = vunpack.c.0.s8 %v303
  %v305 = vlaneseq
  %v306 = vshrl.u32 %v305, 7
  %v307 = vsub.s32 %v304, %v306
  %v308 = vrot.slane %v292, %v307
  %v310 = vunpack.c.l.s4 1966171168
  %v311 = vunpack.c.0.s8 %v310
  %v312 = vlaneseq
  %v313 = vshrl.u32 %v312, 7
  %v314 = vsub.s32 %v311, %v313
  %v315 = vrot.slane %v293, %v314
  %v317 = vunpack.c.l.s4 1966171168
  %v318 = vunpack.c.0.s8 %v317
  %v319 = vlaneseq
  %v320 = vshrl.u32 %v319, 7
  %v321 = vsub.s32 %v318, %v320
  %v322 = vrot.slane %v294, %v321
  %v323 = vcombine.high %v301, %v301
  %v324 = vcombine.high %v308, %v308
  %v325 = vcombine.high %v315, %v315
  %v326 = vcombine.high %v322, %v322
  %v327 = vcombine.high %v19, %v19
  %v329 = vunpack.c.l.s4 1966171168
  %v330 = vunpack.c.0.s8 %v329
  %v331 = vlaneseq
  %v332 = vshrl.u32 %v331, 7
  %v333 = vsub.s32 %v330, %v332
  %v334 = vrot.slane %v19, %v333
  %v336 = vunpack.c.l.s4 1966171168
  %v337 = vunpack.c.0.s8 %v336
  %v338 = vlaneseq
  %v339 = vshrl.u32 %v338, 7
  %v340 = vsub.s32 %v337, %v339
  %v341 = vrot.slane %v327, %v340
  %v342 = vcombine.high %v334, %v334
  %v343 = vcombine.high %v341, %v341
  %v345 = vunpack.c.l.s4 1966171168
  %v346 = vunpack.c.0.s8 %v345
  %v347 = vlaneseq
  %v348 = vshrl.u32 %v347, 7
  %v349 = vsub.s32 %v346, %v348
  %v350 = vrot.slane %v334, %v349
  %v352 = vunpack.c.l.s4 1966171168
  %v353 = vunpack.c.0.s8 %v352
  %v354 = vlaneseq
  %v355 = vshrl.u32 %v354, 7
  %v356 = vsub.s32 %v353, %v355
  %v357 = vrot.slane %v341, %v356
  %v359 = vunpack.c.l.s4 1966171168
  %v360 = vunpack.c.0.s8 %v359
  %v361 = vlaneseq
  %v362 = vshrl.u32 %v361, 7
  %v363 = vsub.s32 %v360, %v362
  %v364 = vrot.slane %v342, %v363
  %v366 = vunpack.c.l.s4 1966171168
  %v367 = vunpack.c.0.s8 %v366
  %v368 = vlaneseq
  %v369 = vshrl.u32 %v368, 7
  %v370 = vsub.s32 %v367, %v369
  %v371 = vrot.slane %v343, %v370
  %v372 = vcombine.high %v350, %v350
  %v373 = vcombine.high %v357, %v357
  %v374 = vcombine.high %v364, %v364
  %v375 = vcombine.high %v371, %v371
  %v648 = vunpack.c.l.b16 %v20
  %v649 = vunpack.c.l.b16 %v21
  %v650 = vunpack.c.l.b16 %v22
  %v651 = vunpack.c.l.b16 %v23
  %v652 = vunpack.c.l.b16 %v24
  %v653 = vunpack.c.l.b16 %v25
  %v654 = vunpack.c.l.b16 %v26
  %v655 = vunpack.c.l.b16 %v27
  %v656 = vunpack.c.l.b16 %v28
  %v657 = vunpack.c.l.b16 %v29
  %v658 = vunpack.c.l.b16 %v30
  %v659 = vunpack.c.l.b16 %v31
  %v660 = vunpack.c.l.b16 %v32
  %v661 = vunpack.c.l.b16 %v33
  %v662 = vunpack.c.l.b16 %v34
  %v663 = vunpack.c.l.b16 %v35
  %v664 = vunpack.c.l.b16 %v36
  %v665 = vunpack.c.l.b16 %v37
  %v666 = vunpack.c.l.b16 %v38
  %v667 = vunpack.c.l.b16 %v39
  %v668 = vunpack.c.l.b16 %v40
  %v669 = vunpack.c.l.b16 %v41
  %v670 = vunpack.c.l.b16 %v42
  %v671 = vunpack.c.l.b16 %v43
  %v672 = vunpack.c.l.b16 %v44
  %v673 = vunpack.c.l.b16 %v45
  %v674 = vunpack.c.l.b16 %v46
  %v675 = vunpack.c.l.b16 %v47
  %v676 = vunpack.c.l.b16 %v48
  %v677 = vunpack.c.l.b16 %v49
  %v678 = vunpack.c.l.b16 %v50
  %v679 = vunpack.c.l.b16 %v51
  %v680 = vunpack.c.l.b16 %v52
  %v681 = vunpack.c.l.b16 %v53
  %v682 = vunpack.c.l.b16 %v54
  %v683 = vunpack.c.l.b16 %v55
  %v684 = vunpack.c.l.b16 %v56
  %v685 = vunpack.c.l.b16 %v57
  %v686 = vunpack.c.l.b16 %v58
  %v687 = vunpack.c.l.b16 %v59
  %v688 = vunpack.c.l.b16 %v60
  %v689 = vunpack.c.l.b16 %v61
  %v690 = vunpack.c.l.b16 %v62
  %v691 = vunpack.c.l.b16 %v63
  %v692 = vunpack.c.l.b16 %v64
  %v693 = vunpack.c.l.b16 %v65
  %v694 = vunpack.c.l.b16 %v66
  %v695 = vunpack.c.l.b16 %v67
  %v696 = vunpack.c.l.b16 %v68
  %v697 = vunpack.c.l.b16 %v69
  %v698 = vunpack.c.l.b16 %v70
  %v699 = vunpack.c.l.b16 %v71
  %v700 = vunpack.c.l.b16 %v72
  %v701 = vunpack.c.l.b16 %v73
  %v702 = vunpack.c.l.b16 %v74
  %v703 = vunpack.c.l.b16 %v75
  %v704 = vunpack.c.l.b16 %v76
  %v705 = vunpack.c.l.b16 %v77
  %v706 = vunpack.c.l.b16 %v78
  %v707 = vunpack.c.l.b16 %v79
  %v708 = vunpack.c.l.b16 %v80
  %v709 = vunpack.c.l.b16 %v81
  %v710 = vunpack.c.l.b16 %v82
  %v711 = vunpack.c.l.b16 %v83
  %v712 = vunpack.c.l.b16 %v84
  %v713 = vunpack.c.l.b16 %v85
  %v714 = vunpack.c.l.b16 %v86
  %v715 = vunpack.c.l.b16 %v87
  %v716 = vunpack.c.l.b16 %v88
  %v717 = vunpack.c.l.b16 %v89
  %v718 = vunpack.c.l.b16 %v90
  %v719 = vunpack.c.l.b16 %v91
  %v720 = vunpack.c.l.b16 %v92
  %v721 = vunpack.c.l.b16 %v93
  %v722 = vunpack.c.l.b16 %v94
  %v723 = vunpack.c.l.b16 %v95
  %v724 = vunpack.c.l.b16 %v96
  %v725 = vunpack.c.l.b16 %v97
  %v726 = vunpack.c.l.b16 %v98
  %v727 = vunpack.c.l.b16 %v99
  %v728 = vunpack.c.l.b16 %v100
  %v729 = vunpack.c.l.b16 %v101
  %v730 = vunpack.c.l.b16 %v102
  %v731 = vunpack.c.l.b16 %v103
  %v732 = vunpack.c.l.b16 %v104
  %v733 = vunpack.c.l.b16 %v105
  %v734 = vunpack.c.l.b16 %v106
  %v735 = vunpack.c.l.b16 %v107
  %v736 = vunpack.c.l.b16 %v108
  %v737 = vunpack.c.l.b16 %v109
  %v738 = vunpack.c.l.b16 %v110
  %v739 = vunpack.c.l.b16 %v111
  %v740 = vunpack.c.l.b16 %v112
  %v741 = vunpack.c.l.b16 %v113
  %v742 = vunpack.c.l.b16 %v114
  %v743 = vunpack.c.l.b16 %v115
  %v744 = vunpack.c.l.b16 %v116
  %v745 = vunpack.c.l.b16 %v117
  %v746 = vunpack.c.l.b16 %v118
  %v747 = vunpack.c.l.b16 %v119
  %v748 = vunpack.c.l.b16 %v120
  %v749 = vunpack.c.l.b16 %v121
  %v750 = vunpack.c.l.b16 %v122
  %v751 = vunpack.c.l.b16 %v123
  %v752 = vunpack.c.l.b16 %v124
  %v753 = vunpack.c.l.b16 %v125
  %v754 = vunpack.c.l.b16 %v126
  %v755 = vunpack.c.l.b16 %v127
  %v756 = vunpack.c.l.b16 %v128
  %v757 = vunpack.c.l.b16 %v129
  %v758 = vunpack.c.l.b16 %v130
  %v759 = vunpack.c.l.b16 %v131
  %v760 = vunpack.c.l.b16 %v132
  %v761 = vunpack.c.l.b16 %v133
  %v762 = vunpack.c.l.b16 %v134
  %v763 = vunpack.c.l.b16 %v135
  %v764 = vunpack.c.l.b16 %v136
  %v765 = vunpack.c.l.b16 %v137
  %v766 = vunpack.c.l.b16 %v138
  %v767 = vunpack.c.l.b16 %v139
  %v768 = vunpack.c.l.b16 %v140
  %v769 = vunpack.c.l.b16 %v141
  %v770 = vunpack.c.l.b16 %v142
  %v771 = vunpack.c.l.b16 %v143
  %v772 = vunpack.c.l.b16 %v144
  %v773 = vunpack.c.l.b16 %v145
  %v774 = vunpack.c.l.b16 %v146
  %v775 = vunpack.c.l.b16 %v147
  %v776 = vunpack.c.l.b16 %v148
  %v777 = vunpack.c.l.b16 %v149
  %v778 = vunpack.c.l.b16 %v150
  %v779 = vunpack.c.l.b16 %v151
  %v780 = vunpack.c.l.b16 %v152
  %v781 = vunpack.c.l.b16 %v153
  %v782 = vunpack.c.l.b16 %v154
  %v783 = vunpack.c.l.b16 %v155
  %v784 = vunpack.c.l.b16 %v156
  %v785 = vunpack.c.l.b16 %v157
  %v786 = vunpack.c.l.b16 %v158
  %v787 = vunpack.c.l.b16 %v159
  %v788 = vunpack.c.l.b16 %v160
  %v789 = vunpack.c.l.b16 %v161
  %v790 = vunpack.c.l.b16 %v162
  %v791 = vunpack.c.l.b16 %v163
  %v792 = vunpack.c.l.b16 %v164
  %v793 = vunpack.c.l.b16 %v165
  %v794 = vunpack.c.l.b16 %v166
  %v795 = vunpack.c.l.b16 %v167
  %v796 = vunpack.c.l.b16 %v168
  %v797 = vunpack.c.l.b16 %v169
  %v798 = vunpack.c.l.b16 %v170
  %v799 = vunpack.c.l.b16 %v171
  %v800 = vunpack.c.l.b16 %v172
  %v801 = vunpack.c.l.b16 %v173
  %v802 = vunpack.c.l.b16 %v174
  %v803 = vunpack.c.l.b16 %v175
  %v804 = vunpack.c.l.b16 %v176
  %v805 = vunpack.c.l.b16 %v177
  %v806 = vunpack.c.l.b16 %v178
  %v807 = vunpack.c.l.b16 %v179
  %v808 = vunpack.c.l.b16 %v180
  %v809 = vunpack.c.l.b16 %v181
  %v810 = vunpack.c.l.b16 %v182
  %v811 = vunpack.c.l.b16 %v183
  %v812 = vunpack.c.l.b16 %v184
  %v813 = vunpack.c.l.b16 %v185
  %v814 = vunpack.c.l.b16 %v186
  %v815 = vunpack.c.l.b16 %v187
  %v816 = vunpack.c.l.b16 %v188
  %v817 = vunpack.c.l.b16 %v189
  %v818 = vunpack.c.l.b16 %v190
  %v819 = vunpack.c.l.b16 %v191
  %v820 = vunpack.c.l.b16 %v192
  %v821 = vunpack.c.l.b16 %v193
  %v822 = vunpack.c.l.b16 %v194
  %v823 = vunpack.c.l.b16 %v195
  %v824 = vunpack.c.l.b16 %v196
  %v825 = vunpack.c.l.b16 %v197
  %v826 = vunpack.c.l.b16 %v198
  %v827 = vunpack.c.l.b16 %v199
  %v828 = vunpack.c.l.b16 %v200
  %v829 = vunpack.c.l.b16 %v201
  %v830 = vunpack.c.l.b16 %v202
  %v831 = vunpack.c.l.b16 %v203
  %v832 = vunpack.c.l.b16 %v204
  %v833 = vunpack.c.l.b16 %v205
  %v834 = vunpack.c.l.b16 %v206
  %v835 = vunpack.c.l.b16 %v207
  %v836 = vunpack.c.l.b16 %v208
  %v837 = vunpack.c.l.b16 %v209
  %v838 = vunpack.c.l.b16 %v210
  %v839 = vunpack.c.l.b16 %v211
  %v840 = vunpack.c.l.b16 %v212
  %v841 = vunpack.c.l.b16 %v213
  %v842 = vunpack.c.l.b16 %v214
  %v843 = vunpack.c.l.b16 %v215
  %v844 = vunpack.c.l.b16 %v216
  %v845 = vunpack.c.l.b16 %v217
  %v846 = vunpack.c.l.b16 %v218
  %v847 = vunpack.c.l.b16 %v219
  %v848 = vunpack.c.l.b16 %v220
  %v849 = vunpack.c.l.b16 %v221
  %v850 = vunpack.c.l.b16 %v222
  %v851 = vunpack.c.l.b16 %v223
  %v852 = vunpack.c.l.b16 %v224
  %v853 = vunpack.c.l.b16 %v225
  %v854 = vunpack.c.l.b16 %v226
  %v855 = vunpack.c.l.b16 %v227
  %v856 = vunpack.c.l.b16 %v228
  %v857 = vunpack.c.l.b16 %v229
  %v858 = vunpack.c.l.b16 %v230
  %v859 = vunpack.c.l.b16 %v231
  %v860 = vunpack.c.l.b16 %v232
  %v861 = vunpack.c.l.b16 %v233
  %v862 = vunpack.c.l.b16 %v234
  %v863 = vunpack.c.l.b16 %v235
  %v864 = vunpack.c.l.b16 %v236
  %v865 = vunpack.c.l.b16 %v237
  %v866 = vunpack.c.l.b16 %v238
  %v867 = vunpack.c.l.b16 %v239
  %v868 = vunpack.c.l.b16 %v240
  %v869 = vunpack.c.l.b16 %v241
  %v870 = vunpack.c.l.b16 %v242
  %v871 = vunpack.c.l.b16 %v243
  %v872 = vunpack.c.l.b16 %v244
  %v873 = vunpack.c.l.b16 %v245
  %v874 = vunpack.c.l.b16 %v246
  %v875 = vunpack.c.l.b16 %v247
  %v876 = vunpack.c.l.b16 %v248
  %v877 = vunpack.c.l.b16 %v249
  %v878 = vunpack.c.l.b16 %v250
  %v879 = vunpack.c.l.b16 %v251
  %v880 = vunpack.c.l.b16 %v252
  %v881 = vunpack.c.l.b16 %v253
  %v882 = vunpack.c.l.b16 %v254
  %v883 = vunpack.c.l.b16 %v255
  %v884 = vunpack.c.l.b16 %v256
  %v885 = vunpack.c.l.b16 %v257
  %v886 = vunpack.c.l.b16 %v258
  %v887 = vunpack.c.l.b16 %v259
  %v888 = vunpack.c.l.b16 %v260
  %v889 = vunpack.c.l.b16 %v261
  %v890 = vunpack.c.l.b16 %v262
  %v891 = vunpack.c.l.b16 %v263
  %v892 = vunpack.c.l.b16 %v264
  %v893 = vunpack.c.l.b16 %v265
  %v894 = vunpack.c.l.b16 %v266
  %v895 = vunpack.c.l.b16 %v267
  %v896 = vunpack.c.l.b16 %v268
  %v897 = vunpack.c.l.b16 %v269
  %v898 = vunpack.c.l.b16 %v270
  %v899 = vunpack.c.l.b16 %v271
  %v900 = vunpack.c.l.b16 %v272
  %v901 = vunpack.c.l.b16 %v273
  %v902 = vunpack.c.l.b16 %v274
  %v903 = vunpack.c.l.b16 %v275
  %v904 = vpack.c.b16 %v649, %v648
  %v905 = vpack.c.b16 %v651, %v650
  %v906 = vpack.c.b16 %v653, %v652
  %v907 = vpack.c.b16 %v655, %v654
  %v908 = vpack.c.b16 %v657, %v656
  %v909 = vpack.c.b16 %v659, %v658
  %v910 = vpack.c.b16 %v661, %v660
  %v911 = vpack.c.b16 %v663, %v662
  %v912 = vpack.c.b16 %v665, %v664
  %v913 = vpack.c.b16 %v667, %v666
  %v914 = vpack.c.b16 %v669, %v668
  %v915 = vpack.c.b16 %v671, %v670
  %v916 = vpack.c.b16 %v673, %v672
  %v917 = vpack.c.b16 %v675, %v674
  %v918 = vpack.c.b16 %v677, %v676
  %v919 = vpack.c.b16 %v679, %v678
  %v920 = vpack.c.b16 %v681, %v680
  %v921 = vpack.c.b16 %v683, %v682
  %v922 = vpack.c.b16 %v685, %v684
  %v923 = vpack.c.b16 %v687, %v686
  %v924 = vpack.c.b16 %v689, %v688
  %v925 = vpack.c.b16 %v691, %v690
  %v926 = vpack.c.b16 %v693, %v692
  %v927 = vpack.c.b16 %v695, %v694
  %v928 = vpack.c.b16 %v697, %v696
  %v929 = vpack.c.b16 %v699, %v698
  %v930 = vpack.c.b16 %v701, %v700
  %v931 = vpack.c.b16 %v703, %v702
  %v932 = vpack.c.b16 %v705, %v704
  %v933 = vpack.c.b16 %v707, %v706
  %v934 = vpack.c.b16 %v709, %v708
  %v935 = vpack.c.b16 %v711, %v710
  %v936 = vpack.c.b16 %v713, %v712
  %v937 = vpack.c.b16 %v715, %v714
  %v938 = vpack.c.b16 %v717, %v716
  %v939 = vpack.c.b16 %v719, %v718
  %v940 = vpack.c.b16 %v721, %v720
  %v941 = vpack.c.b16 %v723, %v722
  %v942 = vpack.c.b16 %v725, %v724
  %v943 = vpack.c.b16 %v727, %v726
  %v944 = vpack.c.b16 %v729, %v728
  %v945 = vpack.c.b16 %v731, %v730
  %v946 = vpack.c.b16 %v733, %v732
  %v947 = vpack.c.b16 %v735, %v734
  %v948 = vpack.c.b16 %v737, %v736
  %v949 = vpack.c.b16 %v739, %v738
  %v950 = vpack.c.b16 %v741, %v740
  %v951 = vpack.c.b16 %v743, %v742
  %v952 = vpack.c.b16 %v745, %v744
  %v953 = vpack.c.b16 %v747, %v746
  %v954 = vpack.c.b16 %v749, %v748
  %v955 = vpack.c.b16 %v751, %v750
  %v956 = vpack.c.b16 %v753, %v752
  %v957 = vpack.c.b16 %v755, %v754
  %v958 = vpack.c.b16 %v757, %v756
  %v959 = vpack.c.b16 %v759, %v758
  %v960 = vpack.c.b16 %v761, %v760
  %v961 = vpack.c.b16 %v763, %v762
  %v962 = vpack.c.b16 %v765, %v764
  %v963 = vpack.c.b16 %v767, %v766
  %v964 = vpack.c.b16 %v769, %v768
  %v965 = vpack.c.b16 %v771, %v770
  %v966 = vpack.c.b16 %v773, %v772
  %v967 = vpack.c.b16 %v775, %v774
  %v968 = vpack.c.b16 %v777, %v776
  %v969 = vpack.c.b16 %v779, %v778
  %v970 = vpack.c.b16 %v781, %v780
  %v971 = vpack.c.b16 %v783, %v782
  %v972 = vpack.c.b16 %v785, %v784
  %v973 = vpack.c.b16 %v787, %v786
  %v974 = vpack.c.b16 %v789, %v788
  %v975 = vpack.c.b16 %v791, %v790
  %v976 = vpack.c.b16 %v793, %v792
  %v977 = vpack.c.b16 %v795, %v794
  %v978 = vpack.c.b16 %v797, %v796
  %v979 = vpack.c.b16 %v799, %v798
  %v980 = vpack.c.b16 %v801, %v800
  %v981 = vpack.c.b16 %v803, %v802
  %v982 = vpack.c.b16 %v805, %v804
  %v983 = vpack.c.b16 %v807, %v806
  %v984 = vpack.c.b16 %v809, %v808
  %v985 = vpack.c.b16 %v811, %v810
  %v986 = vpack.c.b16 %v813, %v812
  %v987 = vpack.c.b16 %v815, %v814
  %v988 = vpack.c.b16 %v817, %v816
  %v989 = vpack.c.b16 %v819, %v818
  %v990 = vpack.c.b16 %v821, %v820
  %v991 = vpack.c.b16 %v823, %v822
  %v992 = vpack.c.b16 %v825, %v824
  %v993 = vpack.c.b16 %v827, %v826
  %v994 = vpack.c.b16 %v829, %v828
  %v995 = vpack.c.b16 %v831, %v830
  %v996 = vpack.c.b16 %v833, %v832
  %v997 = vpack.c.b16 %v835, %v834
  %v998 = vpack.c.b16 %v837, %v836
  %v999 = vpack.c.b16 %v839, %v838
  %v1000 = vpack.c.b16 %v841, %v840
  %v1001 = vpack.c.b16 %v843, %v842
  %v1002 = vpack.c.b16 %v845, %v844
  %v1003 = vpack.c.b16 %v847, %v846
  %v1004 = vpack.c.b16 %v849, %v848
  %v1005 = vpack.c.b16 %v851, %v850
  %v1006 = vpack.c.b16 %v853, %v852
  %v1007 = vpack.c.b16 %v855, %v854
  %v1008 = vpack.c.b16 %v857, %v856
  %v1009 = vpack.c.b16 %v859, %v858
  %v1010 = vpack.c.b16 %v861, %v860
  %v1011 = vpack.c.b16 %v863, %v862
  %v1012 = vpack.c.b16 %v865, %v864
  %v1013 = vpack.c.b16 %v867, %v866
  %v1014 = vpack.c.b16 %v869, %v868
  %v1015 = vpack.c.b16 %v871, %v870
  %v1016 = vpack.c.b16 %v873, %v872
  %v1017 = vpack.c.b16 %v875, %v874
  %v1018 = vpack.c.b16 %v877, %v876
  %v1019 = vpack.c.b16 %v879, %v878
  %v1020 = vpack.c.b16 %v881, %v880
  %v1021 = vpack.c.b16 %v883, %v882
  %v1022 = vpack.c.b16 %v885, %v884
  %v1023 = vpack.c.b16 %v887, %v886
  %v1024 = vpack.c.b16 %v889, %v888
  %v1025 = vpack.c.b16 %v891, %v890
  %v1026 = vpack.c.b16 %v893, %v892
  %v1027 = vpack.c.b16 %v895, %v894
  %v1028 = vpack.c.b16 %v897, %v896
  %v1029 = vpack.c.b16 %v899, %v898
  %v1030 = vpack.c.b16 %v901, %v900
  %v1031 = vpack.c.b16 %v903, %v902
  %1160 = vmatprep.subr.bf16.mxu0 0
  %1161 = vmatpush1.bf16.msra.mxu0 %v904
  %1162 = vmatprep.subr.bf16.mxu0 0
  %1163 = vmatpush1.bf16.msra.mxu0 %v905
  %1164 = vmatprep.subr.bf16.mxu0 0
  %1165 = vmatpush1.bf16.msra.mxu0 %v906
  %1166 = vmatprep.subr.bf16.mxu0 0
  %1167 = vmatpush1.bf16.msra.mxu0 %v907
  %1168 = vmatprep.subr.bf16.mxu0 0
  %1169 = vmatpush1.bf16.msra.mxu0 %v908
  %1170 = vmatprep.subr.bf16.mxu0 0
  %1171 = vmatpush1.bf16.msra.mxu0 %v909
  %1172 = vmatprep.subr.bf16.mxu0 0
  %1173 = vmatpush1.bf16.msra.mxu0 %v910
  %1174 = vmatprep.subr.bf16.mxu0 0
  %1175 = vmatpush1.bf16.msra.mxu0 %v911
  %1176 = vmatprep.subr.bf16.mxu0 0
  %1177 = vmatpush1.bf16.msra.mxu0 %v912
  %1178 = vmatprep.subr.bf16.mxu0 0
  %1179 = vmatpush1.bf16.msra.mxu0 %v913
  %1180 = vmatprep.subr.bf16.mxu0 0
  %1181 = vmatpush1.bf16.msra.mxu0 %v914
  %1182 = vmatprep.subr.bf16.mxu0 0
  %1183 = vmatpush1.bf16.msra.mxu0 %v915
  %1184 = vmatprep.subr.bf16.mxu0 0
  %1185 = vmatpush1.bf16.msra.mxu0 %v916
  %1186 = vmatprep.subr.bf16.mxu0 0
  %1187 = vmatpush1.bf16.msra.mxu0 %v917
  %1188 = vmatprep.subr.bf16.mxu0 0
  %1189 = vmatpush1.bf16.msra.mxu0 %v918
  %1190 = vmatprep.subr.bf16.mxu0 0
  %1191 = vmatpush1.bf16.msra.mxu0 %v919
  %1192 = vmatprep.mubr.bf16.mxu0 %v315
  %1193 = vmatmul.mubr.bf16.gmra.mrb[0].mxu0 %v301
  %v1194 = vpop.f32.mrb[0].mxu0
  %v1195 = vadd.f32 0.0, %v1194
  %v1196 = vpop.f32.mrb[0].mxu0
  %v1197 = vpop.f32.mrb[0].mxu0
  %v1198 = vpop.f32.mrb[0].mxu0
  %1199 = vdwg.mxu0
  %1200 = vmatprep.subr.bf16.mxu0 0
  %1201 = vmatpush1.bf16.msra.mxu0 %v920
  %1202 = vmatprep.subr.bf16.mxu0 0
  %1203 = vmatpush1.bf16.msra.mxu0 %v921
  %1204 = vmatprep.subr.bf16.mxu0 0
  %1205 = vmatpush1.bf16.msra.mxu0 %v922
  %1206 = vmatprep.subr.bf16.mxu0 0
  %1207 = vmatpush1.bf16.msra.mxu0 %v923
  %1208 = vmatprep.subr.bf16.mxu0 0
  %1209 = vmatpush1.bf16.msra.mxu0 %v924
  %1210 = vmatprep.subr.bf16.mxu0 0
  %1211 = vmatpush1.bf16.msra.mxu0 %v925
  %1212 = vmatprep.subr.bf16.mxu0 0
  %1213 = vmatpush1.bf16.msra.mxu0 %v926
  %1214 = vmatprep.subr.bf16.mxu0 0
  %1215 = vmatpush1.bf16.msra.mxu0 %v927
  %1216 = vmatprep.subr.bf16.mxu0 0
  %1217 = vmatpush1.bf16.msra.mxu0 %v928
  %1218 = vmatprep.subr.bf16.mxu0 0
  %1219 = vmatpush1.bf16.msra.mxu0 %v929
  %1220 = vmatprep.subr.bf16.mxu0 0
  %1221 = vmatpush1.bf16.msra.mxu0 %v930
  %1222 = vmatprep.subr.bf16.mxu0 0
  %1223 = vmatpush1.bf16.msra.mxu0 %v931
  %1224 = vmatprep.subr.bf16.mxu0 0
  %1225 = vmatpush1.bf16.msra.mxu0 %v932
  %1226 = vmatprep.subr.bf16.mxu0 0
  %1227 = vmatpush1.bf16.msra.mxu0 %v933
  %1228 = vmatprep.subr.bf16.mxu0 0
  %1229 = vmatpush1.bf16.msra.mxu0 %v934
  %1230 = vmatprep.subr.bf16.mxu0 0
  %1231 = vmatpush1.bf16.msra.mxu0 %v935
  %1232 = vmatprep.mubr.bf16.mxu0 %v325
  %1233 = vmatmul.mubr.bf16.gmra.mrb[0].mxu0 %v323
  %v1234 = vpop.f32.mrb[0].mxu0
  %v1235 = vadd.f32 %v1195, %v1234
  %v1236 = vpop.f32.mrb[0].mxu0
  %v1237 = vpop.f32.mrb[0].mxu0
  %v1238 = vpop.f32.mrb[0].mxu0
  %1239 = vdwg.mxu0
  %1240 = vmatprep.subr.bf16.mxu0 0
  %1241 = vmatpush1.bf16.msra.mxu0 %v936
  %1242 = vmatprep.subr.bf16.mxu0 0
  %1243 = vmatpush1.bf16.msra.mxu0 %v937
  %1244 = vmatprep.subr.bf16.mxu0 0
  %1245 = vmatpush1.bf16.msra.mxu0 %v938
  %1246 = vmatprep.subr.bf16.mxu0 0
  %1247 = vmatpush1.bf16.msra.mxu0 %v939
  %1248 = vmatprep.subr.bf16.mxu0 0
  %1249 = vmatpush1.bf16.msra.mxu0 %v940
  %1250 = vmatprep.subr.bf16.mxu0 0
  %1251 = vmatpush1.bf16.msra.mxu0 %v941
  %1252 = vmatprep.subr.bf16.mxu0 0
  %1253 = vmatpush1.bf16.msra.mxu0 %v942
  %1254 = vmatprep.subr.bf16.mxu0 0
  %1255 = vmatpush1.bf16.msra.mxu0 %v943
  %1256 = vmatprep.subr.bf16.mxu0 0
  %1257 = vmatpush1.bf16.msra.mxu0 %v944
  %1258 = vmatprep.subr.bf16.mxu0 0
  %1259 = vmatpush1.bf16.msra.mxu0 %v945
  %1260 = vmatprep.subr.bf16.mxu0 0
  %1261 = vmatpush1.bf16.msra.mxu0 %v946
  %1262 = vmatprep.subr.bf16.mxu0 0
  %1263 = vmatpush1.bf16.msra.mxu0 %v947
  %1264 = vmatprep.subr.bf16.mxu0 0
  %1265 = vmatpush1.bf16.msra.mxu0 %v948
  %1266 = vmatprep.subr.bf16.mxu0 0
  %1267 = vmatpush1.bf16.msra.mxu0 %v949
  %1268 = vmatprep.subr.bf16.mxu0 0
  %1269 = vmatpush1.bf16.msra.mxu0 %v950
  %1270 = vmatprep.subr.bf16.mxu0 0
  %1271 = vmatpush1.bf16.msra.mxu0 %v951
  %1272 = vmatprep.mubr.bf16.mxu0 %v322
  %1273 = vmatmul.mubr.bf16.gmra.mrb[0].mxu0 %v308
  %v1274 = vpop.f32.mrb[0].mxu0
  %v1275 = vadd.f32 %v1235, %v1274
  %v1276 = vpop.f32.mrb[0].mxu0
  %v1277 = vpop.f32.mrb[0].mxu0
  %v1278 = vpop.f32.mrb[0].mxu0
  %1279 = vdwg.mxu0
  %1280 = vmatprep.subr.bf16.mxu0 0
  %1281 = vmatpush1.bf16.msra.mxu0 %v952
  %1282 = vmatprep.subr.bf16.mxu0 0
  %1283 = vmatpush1.bf16.msra.mxu0 %v953
  %1284 = vmatprep.subr.bf16.mxu0 0
  %1285 = vmatpush1.bf16.msra.mxu0 %v954
  %1286 = vmatprep.subr.bf16.mxu0 0
  %1287 = vmatpush1.bf16.msra.mxu0 %v955
  %1288 = vmatprep.subr.bf16.mxu0 0
  %1289 = vmatpush1.bf16.msra.mxu0 %v956
  %1290 = vmatprep.subr.bf16.mxu0 0
  %1291 = vmatpush1.bf16.msra.mxu0 %v957
  %1292 = vmatprep.subr.bf16.mxu0 0
  %1293 = vmatpush1.bf16.msra.mxu0 %v958
  %1294 = vmatprep.subr.bf16.mxu0 0
  %1295 = vmatpush1.bf16.msra.mxu0 %v959
  %1296 = vmatprep.subr.bf16.mxu0 0
  %1297 = vmatpush1.bf16.msra.mxu0 %v960
  %1298 = vmatprep.subr.bf16.mxu0 0
  %1299 = vmatpush1.bf16.msra.mxu0 %v961
  %1300 = vmatprep.subr.bf16.mxu0 0
  %1301 = vmatpush1.bf16.msra.mxu0 %v962
  %1302 = vmatprep.subr.bf16.mxu0 0
  %1303 = vmatpush1.bf16.msra.mxu0 %v963
  %1304 = vmatprep.subr.bf16.mxu0 0
  %1305 = vmatpush1.bf16.msra.mxu0 %v964
  %1306 = vmatprep.subr.bf16.mxu0 0
  %1307 = vmatpush1.bf16.msra.mxu0 %v965
  %1308 = vmatprep.subr.bf16.mxu0 0
  %1309 = vmatpush1.bf16.msra.mxu0 %v966
  %1310 = vmatprep.subr.bf16.mxu0 0
  %1311 = vmatpush1.bf16.msra.mxu0 %v967
  %1312 = vmatprep.mubr.bf16.mxu0 %v326
  %1313 = vmatmul.mubr.bf16.gmra.mrb[0].mxu0 %v324
  %v1314 = vpop.f32.mrb[0].mxu0
  %v1315 = vadd.f32 %v1275, %v1314
  %v1316 = vpop.f32.mrb[0].mxu0
  %v1317 = vpop.f32.mrb[0].mxu0
  %v1318 = vpop.f32.mrb[0].mxu0
  %1319 = vdwg.mxu0
  %1320 = vmatprep.subr.bf16.mxu0 0
  %1321 = vmatpush1.bf16.msra.mxu0 %v968
  %1322 = vmatprep.subr.bf16.mxu0 0
  %1323 = vmatpush1.bf16.msra.mxu0 %v969
  %1324 = vmatprep.subr.bf16.mxu0 0
  %1325 = vmatpush1.bf16.msra.mxu0 %v970
  %1326 = vmatprep.subr.bf16.mxu0 0
  %1327 = vmatpush1.bf16.msra.mxu0 %v971
  %1328 = vmatprep.subr.bf16.mxu0 0
  %1329 = vmatpush1.bf16.msra.mxu0 %v972
  %1330 = vmatprep.subr.bf16.mxu0 0
  %1331 = vmatpush1.bf16.msra.mxu0 %v973
  %1332 = vmatprep.subr.bf16.mxu0 0
  %1333 = vmatpush1.bf16.msra.mxu0 %v974
  %1334 = vmatprep.subr.bf16.mxu0 0
  %1335 = vmatpush1.bf16.msra.mxu0 %v975
  %1336 = vmatprep.subr.bf16.mxu0 0
  %1337 = vmatpush1.bf16.msra.mxu0 %v976
  %1338 = vmatprep.subr.bf16.mxu0 0
  %1339 = vmatpush1.bf16.msra.mxu0 %v977
  %1340 = vmatprep.subr.bf16.mxu0 0
  %1341 = vmatpush1.bf16.msra.mxu0 %v978
  %1342 = vmatprep.subr.bf16.mxu0 0
  %1343 = vmatpush1.bf16.msra.mxu0 %v979
  %1344 = vmatprep.subr.bf16.mxu0 0
  %1345 = vmatpush1.bf16.msra.mxu0 %v980
  %1346 = vmatprep.subr.bf16.mxu0 0
  %1347 = vmatpush1.bf16.msra.mxu0 %v981
  %1348 = vmatprep.subr.bf16.mxu0 0
  %1349 = vmatpush1.bf16.msra.mxu0 %v982
  %1350 = vmatprep.subr.bf16.mxu0 0
  %1351 = vmatpush1.bf16.msra.mxu0 %v983
  %1352 = vmatprep.mubr.bf16.mxu0 %v364
  %1353 = vmatmul.mubr.bf16.gmra.mrb[0].mxu0 %v350
  %v1354 = vpop.f32.mrb[0].mxu0
  %v1355 = vadd.f32 %v1315, %v1354
  %v1356 = vpop.f32.mrb[0].mxu0
  %v1357 = vpop.f32.mrb[0].mxu0
  %v1358 = vpop.f32.mrb[0].mxu0
  %1359 = vdwg.mxu0
  %1360 = vmatprep.subr.bf16.mxu0 0
  %1361 = vmatpush1.bf16.msra.mxu0 %v984
  %1362 = vmatprep.subr.bf16.mxu0 0
  %1363 = vmatpush1.bf16.msra.mxu0 %v985
  %1364 = vmatprep.subr.bf16.mxu0 0
  %1365 = vmatpush1.bf16.msra.mxu0 %v986
  %1366 = vmatprep.subr.bf16.mxu0 0
  %1367 = vmatpush1.bf16.msra.mxu0 %v987
  %1368 = vmatprep.subr.bf16.mxu0 0
  %1369 = vmatpush1.bf16.msra.mxu0 %v988
  %1370 = vmatprep.subr.bf16.mxu0 0
  %1371 = vmatpush1.bf16.msra.mxu0 %v989
  %1372 = vmatprep.subr.bf16.mxu0 0
  %1373 = vmatpush1.bf16.msra.mxu0 %v990
  %1374 = vmatprep.subr.bf16.mxu0 0
  %1375 = vmatpush1.bf16.msra.mxu0 %v991
  %1376 = vmatprep.subr.bf16.mxu0 0
  %1377 = vmatpush1.bf16.msra.mxu0 %v992
  %1378 = vmatprep.subr.bf16.mxu0 0
  %1379 = vmatpush1.bf16.msra.mxu0 %v993
  %1380 = vmatprep.subr.bf16.mxu0 0
  %1381 = vmatpush1.bf16.msra.mxu0 %v994
  %1382 = vmatprep.subr.bf16.mxu0 0
  %1383 = vmatpush1.bf16.msra.mxu0 %v995
  %1384 = vmatprep.subr.bf16.mxu0 0
  %1385 = vmatpush1.bf16.msra.mxu0 %v996
  %1386 = vmatprep.subr.bf16.mxu0 0
  %1387 = vmatpush1.bf16.msra.mxu0 %v997
  %1388 = vmatprep.subr.bf16.mxu0 0
  %1389 = vmatpush1.bf16.msra.mxu0 %v998
  %1390 = vmatprep.subr.bf16.mxu0 0
  %1391 = vmatpush1.bf16.msra.mxu0 %v999
  %1392 = vmatprep.mubr.bf16.mxu0 %v374
  %1393 = vmatmul.mubr.bf16.gmra.mrb[0].mxu0 %v372
  %v1394 = vpop.f32.mrb[0].mxu0
  %v1395 = vadd.f32 %v1355, %v1394
  %v1396 = vpop.f32.mrb[0].mxu0
  %v1397 = vpop.f32.mrb[0].mxu0
  %v1398 = vpop.f32.mrb[0].mxu0
  %1399 = vdwg.mxu0
  %1400 = vmatprep.subr.bf16.mxu0 0
  %1401 = vmatpush1.bf16.msra.mxu0 %v1000
  %1402 = vmatprep.subr.bf16.mxu0 0
  %1403 = vmatpush1.bf16.msra.mxu0 %v1001
  %1404 = vmatprep.subr.bf16.mxu0 0
  %1405 = vmatpush1.bf16.msra.mxu0 %v1002
  %1406 = vmatprep.subr.bf16.mxu0 0
  %1407 = vmatpush1.bf16.msra.mxu0 %v1003
  %1408 = vmatprep.subr.bf16.mxu0 0
  %1409 = vmatpush1.bf16.msra.mxu0 %v1004
  %1410 = vmatprep.subr.bf16.mxu0 0
  %1411 = vmatpush1.bf16.msra.mxu0 %v1005
  %1412 = vmatprep.subr.bf16.mxu0 0
  %1413 = vmatpush1.bf16.msra.mxu0 %v1006
  %1414 = vmatprep.subr.bf16.mxu0 0
  %1415 = vmatpush1.bf16.msra.mxu0 %v1007
  %1416 = vmatprep.subr.bf16.mxu0 0
  %1417 = vmatpush1.bf16.msra.mxu0 %v1008
  %1418 = vmatprep.subr.bf16.mxu0 0
  %1419 = vmatpush1.bf16.msra.mxu0 %v1009
  %1420 = vmatprep.subr.bf16.mxu0 0
  %1421 = vmatpush1.bf16.msra.mxu0 %v1010
  %1422 = vmatprep.subr.bf16.mxu0 0
  %1423 = vmatpush1.bf16.msra.mxu0 %v1011
  %1424 = vmatprep.subr.bf16.mxu0 0
  %1425 = vmatpush1.bf16.msra.mxu0 %v1012
  %1426 = vmatprep.subr.bf16.mxu0 0
  %1427 = vmatpush1.bf16.msra.mxu0 %v1013
  %1428 = vmatprep.subr.bf16.mxu0 0
  %1429 = vmatpush1.bf16.msra.mxu0 %v1014
  %1430 = vmatprep.subr.bf16.mxu0 0
  %1431 = vmatpush1.bf16.msra.mxu0 %v1015
  %1432 = vmatprep.mubr.bf16.mxu0 %v371
  %1433 = vmatmul.mubr.bf16.gmra.mrb[0].mxu0 %v357
  %v1434 = vpop.f32.mrb[0].mxu0
  %v1435 = vadd.f32 %v1395, %v1434
  %v1436 = vpop.f32.mrb[0].mxu0
  %v1437 = vpop.f32.mrb[0].mxu0
  %v1438 = vpop.f32.mrb[0].mxu0
  %1439 = vdwg.mxu0
  %1440 = vmatprep.subr.bf16.mxu0 0
  %1441 = vmatpush1.bf16.msra.mxu0 %v1016
  %1442 = vmatprep.subr.bf16.mxu0 0
  %1443 = vmatpush1.bf16.msra.mxu0 %v1017
  %1444 = vmatprep.subr.bf16.mxu0 0
  %1445 = vmatpush1.bf16.msra.mxu0 %v1018
  %1446 = vmatprep.subr.bf16.mxu0 0
  %1447 = vmatpush1.bf16.msra.mxu0 %v1019
  %1448 = vmatprep.subr.bf16.mxu0 0
  %1449 = vmatpush1.bf16.msra.mxu0 %v1020
  %1450 = vmatprep.subr.bf16.mxu0 0
  %1451 = vmatpush1.bf16.msra.mxu0 %v1021
  %1452 = vmatprep.subr.bf16.mxu0 0
  %1453 = vmatpush1.bf16.msra.mxu0 %v1022
  %1454 = vmatprep.subr.bf16.mxu0 0
  %1455 = vmatpush1.bf16.msra.mxu0 %v1023
  %1456 = vmatprep.subr.bf16.mxu0 0
  %1457 = vmatpush1.bf16.msra.mxu0 %v1024
  %1458 = vmatprep.subr.bf16.mxu0 0
  %1459 = vmatpush1.bf16.msra.mxu0 %v1025
  %1460 = vmatprep.subr.bf16.mxu0 0
  %1461 = vmatpush1.bf16.msra.mxu0 %v1026
  %1462 = vmatprep.subr.bf16.mxu0 0
  %1463 = vmatpush1.bf16.msra.mxu0 %v1027
  %1464 = vmatprep.subr.bf16.mxu0 0
  %1465 = vmatpush1.bf16.msra.mxu0 %v1028
  %1466 = vmatprep.subr.bf16.mxu0 0
  %1467 = vmatpush1.bf16.msra.mxu0 %v1029
  %1468 = vmatprep.subr.bf16.mxu0 0
  %1469 = vmatpush1.bf16.msra.mxu0 %v1030
  %1470 = vmatprep.subr.bf16.mxu0 0
  %1471 = vmatpush1.bf16.msra.mxu0 %v1031
  %1472 = vmatprep.mubr.bf16.mxu0 %v375
  %1473 = vmatmul.mubr.bf16.gmra.mrb[0].mxu0 %v373
  %v1474 = vpop.f32.mrb[0].mxu0
  %v1475 = vadd.f32 %v1435, %v1474
  %v1476 = vpop.f32.mrb[0].mxu0
  %v1477 = vpop.f32.mrb[0].mxu0
  %v1478 = vpop.f32.mrb[0].mxu0
  %1479 = vdwg.mxu0
  %vm1480 = vcmask 1041408
  %v1481 = vsel %vm1480, %v1475, 0.0
  %v1482 = vrot.slane %v1481, 4
  %v1483 = vadd.f32 %v1481, %v1482
  %v1484 = vrot.slane %v1483, 2
  %v1485 = vadd.f32 %v1483, %v1484
  %v1486 = vrot.slane %v1485, 1
  %v1487 = vadd.f32 %v1485, %v1486
  %v1488 = vrcp.pop 2.0
  %v1489 = vmul.f32 %v1487, %v1488
  %v1490 = vsub.f32 %v1475, %v1489
  %v1491 = vmul.f32 %v1490, %v1490
  %v1492 = vsel %vm1480, %v1491, 0.0
  %v1493 = vrot.slane %v1492, 4
  %v1494 = vadd.f32 %v1492, %v1493
  %v1495 = vrot.slane %v1494, 2
  %v1496 = vadd.f32 %v1494, %v1495
  %v1497 = vrot.slane %v1496, 1
  %v1498 = vadd.f32 %v1496, %v1497
  %v1499 = vmul.f32 %v1498, %v1488
  %v1500 = vadd.f32 %v1499, 1e-05
  %v1501 = vrsqrt.pop %v1500
  %v1502 = vmul.f32 %v1490, %v1501
  %v1503 = vld [vmem:[%s2] sm:$0x1]
  %v1505 = vlaneseq
  %v1506 = vshrl.u32 %v1505, 7
  %v1507 = vsub.s32 0, %v1506
  %v1508 = vrot.slane %v1503, %v1507
  %v1510 = vmul.f32 %v1502, %v1508
  %v1511 = vld [vmem:[%s3] sm:$0x1]
  %v1513 = vlaneseq
  %v1514 = vshrl.u32 %v1513, 7
  %v1515 = vsub.s32 0, %v1514
  %v1516 = vrot.slane %v1511, %v1515
  %v1518 = vadd.f32 %v1510, %v1516
  %v1519 = vxor.u32 %v1518, 2147483648
  %v1520 = vmul.f32 %v1519, 1.442695
  %v1521 = vpow.pop %v1520
  %v1522 = vadd.f32 %v1521, 1.0
  %v1523 = vrcp.pop %v1522
  %v1524 = vmul.f32 1.0, %v1523
  %1525 = vst [vmem:[%s4] sm:$0x3] %v1524
  // Predicated region
  $region18: #{dc_discriminator_forward.7} parent=0 // pred_check
    _
  $region19: #{dc_discriminator_forward.7} parent=0 // pred_check_branch
    %1527 = sbr.rel (0) target = $region21
  $region20: #{dc_discriminator_forward.7} parent=0 // pred_region
    _
  $region21: #{dc_discriminator_forward.7} parent=0 // pred_fallthru
    _
  // Predicated region
  $region22: #{dc_discriminator_forward.7} parent=0 // pred_check
    _
  $region23: #{dc_discriminator_forward.7} parent=0 // pred_check_branch
    %1529 = sbr.rel (0) target = $region25
  $region24: #{dc_discriminator_forward.7} parent=0 // pred_region
    _
  $region25: #{dc_discriminator_forward.7} parent=0 // pred_fallthru
    _

</llo_original>
